<compile_context>
chip_gen: v5e
topology: v5e:2x2
jax: 0.10.0
libtpu: 0.0.40
codegen_flags: <defaults>
</compile_context>

<pallas_src>
import jax
import jax.numpy as jnp
from jax.experimental import pallas as pl
from jax.experimental.pallas import tpu as pltpu

# ---------------- static shape configuration ----------------
B = 16                      # total batch
BB = 8                      # batch block per grid step (multiple of 8 sublanes)
L_IN, C_IN = 44, 9
C1, C2 = 16, 32
K = 3
L1 = L_IN - (K - 1)         # 42 after conv1
P1 = L1 // 3                # 14 after pool1
L2 = P1 - (K - 1)           # 12 after conv2
P2 = L2 // 3                # 4  after pool2
FLAT = C2 * P2              # 128 (matches nn.Linear(32*4, 32))
H1, H2, OUT = 32, 16, 2
OUT_PAD = 128               # lane-dense output, sliced to OUT in the wrapper
EPS = 1e-5
LANES = 128

# ---------------- parameter slab layout (one f32 (280,128) buffer) ----------------
# All section starts are multiples of 8 so every static ref slice is sublane-aligned.
W1_ROW = 0                  # conv1 tap dk: rows [16*dk, 16*dk + C_IN), cols [0, C1)
W2_ROW = 48                 # conv2 tap dk: rows [48+16*dk, 48+16*dk + C1), cols [0, C2)
WF1_ROW = 96                # fc1 chunk t : rows [96+32*t, 96+32*t + C2), cols [0, H1)
WF2_ROW = 224               # fc2         : rows [224, 224+H1), cols [0, H2)
WF3_ROW = 256               # fc3 (padded): rows [256, 256+H2), cols [0, OUT_PAD)
PRM_ROW = 272               # rows 272..279: s1, t1', s2, t2', bf1, bf2, bf3(pad), 0
SLAB_ROWS = 280

_DN = (((2,), (0,)), ((), ()))   # contract activation channel dim with weight rows


def onedcnn_kernel(x_ref, slab_ref, o_ref, h1_ref, p1_ref, h2_ref):
    # ---- conv1 (valid, stride 1): 3 shifted MXU matmuls, dot-accumulate form ----
    acc = jax.lax.dot_general(
        x_ref[:, pl.ds(0, L1), :], slab_ref[W1_ROW:W1_ROW + C_IN, :C1],
        dimension_numbers=_DN, preferred_element_type=jnp.float32)
    for dk in range(1, K):
        acc += jax.lax.dot_general(
            x_ref[:, pl.ds(dk, L1), :],
            slab_ref[W1_ROW + 16 * dk:W1_ROW + 16 * dk + C_IN, :C1],
            dimension_numbers=_DN, preferred_element_type=jnp.float32)

    # BN1 (inference; conv bias folded into shift) + ReLU
    s1 = slab_ref[PRM_ROW + 0:PRM_ROW + 1, :C1].reshape(1, 1, C1)
    t1 = slab_ref[PRM_ROW + 1:PRM_ROW + 2, :C1].reshape(1, 1, C1)
    h1_ref[...] = jnp.maximum(acc * s1 + t1, 0.0)

    # maxpool1 (k=3, s=3): three stride-3 loads + elementwise max (no 4-D reshape)
    p1_ref[...] = jnp.maximum(
        jnp.maximum(h1_ref[:, pl.ds(0, P1, stride=3), :],
                    h1_ref[:, pl.ds(1, P1, stride=3), :]),
        h1_ref[:, pl.ds(2, P1, stride=3), :])

    # ---- conv2 ----
    acc2 = jax.lax.dot_general(
        p1_ref[:, pl.ds(0, L2), :], slab_ref[W2_ROW:W2_ROW + C1, :C2],
        dimension_numbers=_DN, preferred_element_type=jnp.float32)
    for dk in range(1, K):
        acc2 += jax.lax.dot_general(
            p1_ref[:, pl.ds(dk, L2), :],
            slab_ref[W2_ROW + 16 * dk:W2_ROW + 16 * dk + C1, :C2],
            dimension_numbers=_DN, preferred_element_type=jnp.float32)

    s2 = slab_ref[PRM_ROW + 2:PRM_ROW + 3, :C2].reshape(1, 1, C2)
    t2 = slab_ref[PRM_ROW + 3:PRM_ROW + 4, :C2].reshape(1, 1, C2)
    h2_ref[...] = jnp.maximum(acc2 * s2 + t2, 0.0)

    # maxpool2 (k=3, s=3)
    p2 = jnp.maximum(
        jnp.maximum(h2_ref[:, pl.ds(0, P2, stride=3), :],
                    h2_ref[:, pl.ds(1, P2, stride=3), :]),
        h2_ref[:, pl.ds(2, P2, stride=3), :])              # (BB, P2, C2)

    # ---- fc1 as P2 partial matmuls (replaces the concat-flatten relayout) ----
    h = jnp.dot(p2[:, 0, :], slab_ref[WF1_ROW:WF1_ROW + C2, :H1],
                preferred_element_type=jnp.float32)
    for t in range(1, P2):
        h += jnp.dot(p2[:, t, :],
                     slab_ref[WF1_ROW + 32 * t:WF1_ROW + 32 * t + C2, :H1],
                     preferred_element_type=jnp.float32)
    h = jnp.maximum(h + slab_ref[PRM_ROW + 4:PRM_ROW + 5, :H1], 0.0)

    # ---- fc2, fc3 (Dropout == identity in eval mode) ----
    h = jnp.maximum(
        jnp.dot(h, slab_ref[WF2_ROW:WF2_ROW + H1, :H2],
                preferred_element_type=jnp.float32)
        + slab_ref[PRM_ROW + 5:PRM_ROW + 6, :H2], 0.0)
    h = jnp.maximum(
        jnp.dot(h, slab_ref[WF3_ROW:WF3_ROW + H2, :],
                preferred_element_type=jnp.float32)
        + slab_ref[PRM_ROW + 6:PRM_ROW + 7, :], 0.0)        # (BB, OUT_PAD)
    o_ref[...] = h


def onedcnn_forward(x, slab):
    nb = x.shape[0] // BB
    out = pl.pallas_call(
        onedcnn_kernel,
        out_shape=jax.ShapeDtypeStruct((x.shape[0], OUT_PAD), jnp.float32),
        grid_spec=pltpu.PrefetchScalarGridSpec(
            num_scalar_prefetch=0,
            grid=(nb,),
            in_specs=[
                pl.BlockSpec((BB, L_IN, C_IN), lambda i: (i, 0, 0)),
                pl.BlockSpec((SLAB_ROWS, LANES), lambda i: (0, 0)),
            ],
            out_specs=pl.BlockSpec((BB, OUT_PAD), lambda i: (i, 0)),
            scratch_shapes=[
                pltpu.VMEM((BB, L1, C1), jnp.float32),   # conv1+BN+ReLU
                pltpu.VMEM((BB, P1, C1), jnp.float32),   # pool1
                pltpu.VMEM((BB, L2, C2), jnp.float32),   # conv2+BN+ReLU
            ],
        ),
        compiler_params=pltpu.CompilerParams(
            dimension_semantics=("parallel",)),            # megacore on v7x
    )(x, slab)
    return out[:, :OUT]


# --------------------- deterministic parameter construction ---------------------
def init_raw_params(key):
    ks = jax.random.split(key, 24)
    p = {}
    # PyTorch-layout weights
    p["w1"] = 0.2 * jax.random.normal(ks[0], (C1, C_IN, K), jnp.float32)
    p["b1"] = 0.1 * jax.random.normal(ks[1], (C1,), jnp.float32)
    p["g1"] = 1.0 + 0.1 * jax.random.normal(ks[2], (C1,), jnp.float32)
    p["be1"] = 0.1 * jax.random.normal(ks[3], (C1,), jnp.float32)
    p["m1"] = 0.05 * jax.random.normal(ks[4], (C1,), jnp.float32)
    p["v1"] = 1.0 + 0.2 * jnp.abs(jax.random.normal(ks[5], (C1,), jnp.float32))

    p["w2"] = 0.2 * jax.random.normal(ks[6], (C2, C1, K), jnp.float32)
    p["b2"] = 0.1 * jax.random.normal(ks[7], (C2,), jnp.float32)
    p["g2"] = 1.0 + 0.1 * jax.random.normal(ks[8], (C2,), jnp.float32)
    p["be2"] = 0.1 * jax.random.normal(ks[9], (C2,), jnp.float32)
    p["m2"] = 0.05 * jax.random.normal(ks[10], (C2,), jnp.float32)
    p["v2"] = 1.0 + 0.2 * jnp.abs(jax.random.normal(ks[11], (C2,), jnp.float32))

    p["wf1"] = 0.15 * jax.random.normal(ks[12], (H1, FLAT), jnp.float32)
    p["bf1"] = 0.1 * jax.random.normal(ks[13], (H1,), jnp.float32)
    p["wf2"] = 0.15 * jax.random.normal(ks[14], (H2, H1), jnp.float32)
    p["bf2"] = 0.1 * jax.random.normal(ks[15], (H2,), jnp.float32)
    p["wf3"] = 0.15 * jax.random.normal(ks[16], (OUT, H2), jnp.float32)
    p["bf3"] = 0.1 * jax.random.normal(ks[17], (OUT,), jnp.float32)
    return p


def build_param_slab(p):
    """Pack all PyTorch-layout params into one lane-padded (280,128) f32 slab."""
    # fold BN (inference) + conv bias into scale / shift
    s1 = p["g1"] / jnp.sqrt(p["v1"] + EPS)
    t1 = p["be1"] + (p["b1"] - p["m1"]) * s1
    s2 = p["g2"] / jnp.sqrt(p["v2"] + EPS)
    t2 = p["be2"] + (p["b2"] - p["m2"]) * s2

    slab = jnp.zeros((SLAB_ROWS, LANES), jnp.float32)
    # conv weights: (Cout, Cin, K) -> per-tap (Cin, Cout) blocks at 8-aligned rows
    for dk in range(K):
        slab = slab.at[W1_ROW + 16 * dk:W1_ROW + 16 * dk + C_IN, :C1].set(
            p["w1"][:, :, dk].T)
        slab = slab.at[W2_ROW + 16 * dk:W2_ROW + 16 * dk + C1, :C2].set(
            p["w2"][:, :, dk].T)
    # fc1: PyTorch flatten index = c*P2 + t; kernel computes sum_t p2[:,t,:] @ wf1_k[t]
    wf1_k = p["wf1"].T.reshape(C2, P2, H1).transpose(1, 0, 2)   # (P2, C2, H1)
    for t in range(P2):
        slab = slab.at[WF1_ROW + 32 * t:WF1_ROW + 32 * t + C2, :H1].set(wf1_k[t])
    slab = slab.at[WF2_ROW:WF2_ROW + H1, :H2].set(p["wf2"].T)
    slab = slab.at[WF3_ROW:WF3_ROW + H2, :OUT].set(p["wf3"].T)  # cols >= OUT stay 0
    # per-channel scales / shifts / biases
    slab = slab.at[PRM_ROW + 0, :C1].set(s1)
    slab = slab.at[PRM_ROW + 1, :C1].set(t1)
    slab = slab.at[PRM_ROW + 2, :C2].set(s2)
    slab = slab.at[PRM_ROW + 3, :C2].set(t2)
    slab = slab.at[PRM_ROW + 4, :H1].set(p["bf1"])
    slab = slab.at[PRM_ROW + 5, :H2].set(p["bf2"])
    slab = slab.at[PRM_ROW + 6, :OUT].set(p["bf3"])             # cols >= OUT stay 0
    return slab


# ------------------- pure-JAX PyTorch-semantics reference -------------------
def reference(x, p):
    xc = jnp.transpose(x, (0, 2, 1))                 # (B, C_in, L) == x.permute(0,2,1)

    def conv1d(inp, w_pt, b):                        # inp (B,Ci,L), w_pt (Co,Ci,K)
        lout = inp.shape[-1] - K + 1
        out = jnp.zeros((inp.shape[0], w_pt.shape[0], lout), jnp.float32)
        for dk in range(K):
            out += jnp.einsum("bcl,oc->bol", inp[:, :, dk:dk + lout], w_pt[:, :, dk])
        return out + b[None, :, None]

    def bn(inp, g, be, m, v):
        return (inp - m[None, :, None]) / jnp.sqrt(v[None, :, None] + EPS) \
               * g[None, :, None] + be[None, :, None]

    def pool3(inp):
        bb, cc, ll = inp.shape
        return jnp.max(inp.reshape(bb, cc, ll // 3, 3), axis=-1)

    h = pool3(jnp.maximum(bn(conv1d(xc, p["w1"], p["b1"]),
                             p["g1"], p["be1"], p["m1"], p["v1"]), 0.0))
    h = pool3(jnp.maximum(bn(conv1d(h, p["w2"], p["b2"]),
                             p["g2"], p["be2"], p["m2"], p["v2"]), 0.0))
    h = h.reshape(h.shape[0], -1)                    # (B, 128) PyTorch (c, t) order
    h = jnp.maximum(h @ p["wf1"].T + p["bf1"], 0.0)
    h = jnp.maximum(h @ p["wf2"].T + p["bf2"], 0.0)
    h = jnp.maximum(h @ p["wf3"].T + p["bf3"], 0.0)  # Dropout == identity (eval)
    return h


if __name__ == "__main__":
    key = jax.random.PRNGKey(0)
    kx, kp = jax.random.split(key)
    x = jax.random.normal(kx, (B, L_IN, C_IN), jnp.float32)

    raw = init_raw_params(kp)
    slab = build_param_slab(raw)

    out = jax.block_until_ready(onedcnn_forward(x, slab))
    ref = jax.block_until_ready(reference(x, raw))

    assert out.shape == (B, OUT)
    assert jnp.allclose(out, ref, rtol=2e-2, atol=2e-3), (out, ref)
    print("KERNEL_OK")
</pallas_src>

<mosaic_0001>
module attributes {stable_mosaic.version = 11 : i64} {
  func.func @onedcnn_kernel(%arg0: i32, %arg1: memref<8x44x9xf32, #tpu.memory_space<vmem>>, %arg2: memref<280x128xf32, #tpu.memory_space<vmem>>, %arg3: memref<8x128xf32, #tpu.memory_space<vmem>>, %arg4: memref<8x42x16xf32, #tpu.memory_space<vmem>>, %arg5: memref<8x14x16xf32, #tpu.memory_space<vmem>>, %arg6: memref<8x12x32xf32, #tpu.memory_space<vmem>>) attributes {dimension_semantics = [#tpu.dimension_semantics<parallel>], iteration_bounds = array<i64: 2>, scalar_prefetch = 0 : i64, scratch_operands = 3 : i64, tpu.core_type = #tpu.core_type<tc>, window_params = [{transform_indices = @transform_0, window_bounds = array<i64: 8, 44, 9>}, {pipeline_mode = #tpu.pipeline_mode<synchronous>, transform_indices = @transform_1, window_bounds = array<i64: 280, 128>}, {transform_indices = @transform_2, window_bounds = array<i64: 8, 128>}]} {
    %c0 = arith.constant 0 : index
    %c0_0 = arith.constant 0 : index
    %c0_1 = arith.constant 0 : index
    %0 = vector.load %arg1[%c0, %c0_0, %c0_1] : memref<8x44x9xf32, #tpu.memory_space<vmem>>, vector<8x42x9xf32>
    %c0_2 = arith.constant 0 : index
    %c0_3 = arith.constant 0 : index
    %1 = vector.load %arg2[%c0_2, %c0_3] : memref<280x128xf32, #tpu.memory_space<vmem>>, vector<9x16xf32>
    %cst = arith.constant dense<0.000000e+00> : vector<8x42x16xf32>
    %2 = tpu.matmul %0, %1, %cst {dimension_numbers = #tpu.dot_dimension_numbers<[2], [0], [0, 1], [1], [0, 0, 0, 1, 1, 1], [], []>} : vector<8x42x9xf32>, vector<9x16xf32>, vector<8x42x16xf32> -> vector<8x42x16xf32>
    %c0_4 = arith.constant 0 : index
    %c1 = arith.constant 1 : index
    %c0_5 = arith.constant 0 : index
    %3 = vector.load %arg1[%c0_4, %c1, %c0_5] : memref<8x44x9xf32, #tpu.memory_space<vmem>>, vector<8x42x9xf32>
    %c16 = arith.constant 16 : index
    %c0_6 = arith.constant 0 : index
    %4 = vector.load %arg2[%c16, %c0_6] : memref<280x128xf32, #tpu.memory_space<vmem>>, vector<9x16xf32>
    %cst_7 = arith.constant dense<0.000000e+00> : vector<8x42x16xf32>
    %5 = tpu.matmul %3, %4, %cst_7 {dimension_numbers = #tpu.dot_dimension_numbers<[2], [0], [0, 1], [1], [0, 0, 0, 1, 1, 1], [], []>} : vector<8x42x9xf32>, vector<9x16xf32>, vector<8x42x16xf32> -> vector<8x42x16xf32>
    %6 = arith.addf %2, %5 : vector<8x42x16xf32>
    %c0_8 = arith.constant 0 : index
    %c2 = arith.constant 2 : index
    %c0_9 = arith.constant 0 : index
    %7 = vector.load %arg1[%c0_8, %c2, %c0_9] : memref<8x44x9xf32, #tpu.memory_space<vmem>>, vector<8x42x9xf32>
    %c32 = arith.constant 32 : index
    %c0_10 = arith.constant 0 : index
    %8 = vector.load %arg2[%c32, %c0_10] : memref<280x128xf32, #tpu.memory_space<vmem>>, vector<9x16xf32>
    %cst_11 = arith.constant dense<0.000000e+00> : vector<8x42x16xf32>
    %9 = tpu.matmul %7, %8, %cst_11 {dimension_numbers = #tpu.dot_dimension_numbers<[2], [0], [0, 1], [1], [0, 0, 0, 1, 1, 1], [], []>} : vector<8x42x9xf32>, vector<9x16xf32>, vector<8x42x16xf32> -> vector<8x42x16xf32>
    %10 = arith.addf %6, %9 : vector<8x42x16xf32>
    %c272 = arith.constant 272 : index
    %c0_12 = arith.constant 0 : index
    %11 = vector.load %arg2[%c272, %c0_12] : memref<280x128xf32, #tpu.memory_space<vmem>>, vector<1x16xf32>
    %12 = vector.shape_cast %11 : vector<1x16xf32> to vector<1x1x16xf32>
    %c273 = arith.constant 273 : index
    %c0_13 = arith.constant 0 : index
    %13 = vector.load %arg2[%c273, %c0_13] : memref<280x128xf32, #tpu.memory_space<vmem>>, vector<1x16xf32>
    %14 = vector.shape_cast %13 : vector<1x16xf32> to vector<1x1x16xf32>
    %15 = vector.broadcast %12 : vector<1x1x16xf32> to vector<8x42x16xf32>
    %16 = arith.mulf %10, %15 : vector<8x42x16xf32>
    %17 = vector.broadcast %14 : vector<1x1x16xf32> to vector<8x42x16xf32>
    %18 = arith.addf %16, %17 : vector<8x42x16xf32>
    %cst_14 = arith.constant 0.000000e+00 : f32
    %19 = vector.broadcast %cst_14 : f32 to vector<8x42x16xf32>
    %20 = arith.maximumf %18, %19 : vector<8x42x16xf32>
    %c0_15 = arith.constant 0 : index
    %c0_16 = arith.constant 0 : index
    %c0_17 = arith.constant 0 : index
    %21 = vector.load %arg4[%c0_15, %c0_16, %c0_17] : memref<8x42x16xf32, #tpu.memory_space<vmem>>, vector<8x42x16xf32>
    tpu.vector_store %arg4[%c0_15, %c0_16, %c0_17], %20 {strides = array<i32>} : memref<8x42x16xf32, #tpu.memory_space<vmem>>, vector<8x42x16xf32>,
    %c0_18 = arith.constant 0 : index
    %c0_19 = arith.constant 0 : index
    %c0_20 = arith.constant 0 : index
    %22 = tpu.strided_load %arg4[%c0_18, %c0_19, %c0_20] {strides = array<i32: 1, 3, 1>} : memref<8x42x16xf32, #tpu.memory_space<vmem>>, vector<8x14x16xf32>
    %c0_21 = arith.constant 0 : index
    %c1_22 = arith.constant 1 : index
    %c0_23 = arith.constant 0 : index
    %23 = tpu.strided_load %arg4[%c0_21, %c1_22, %c0_23] {strides = array<i32: 1, 3, 1>} : memref<8x42x16xf32, #tpu.memory_space<vmem>>, vector<8x14x16xf32>
    %24 = arith.maximumf %22, %23 : vector<8x14x16xf32>
    %c0_24 = arith.constant 0 : index
    %c2_25 = arith.constant 2 : index
    %c0_26 = arith.constant 0 : index
    %25 = tpu.strided_load %arg4[%c0_24, %c2_25, %c0_26] {strides = array<i32: 1, 3, 1>} : memref<8x42x16xf32, #tpu.memory_space<vmem>>, vector<8x14x16xf32>
    %26 = arith.maximumf %24, %25 : vector<8x14x16xf32>
    %c0_27 = arith.constant 0 : index
    %c0_28 = arith.constant 0 : index
    %c0_29 = arith.constant 0 : index
    %27 = vector.load %arg5[%c0_27, %c0_28, %c0_29] : memref<8x14x16xf32, #tpu.memory_space<vmem>>, vector<8x14x16xf32>
    tpu.vector_store %arg5[%c0_27, %c0_28, %c0_29], %26 {strides = array<i32>} : memref<8x14x16xf32, #tpu.memory_space<vmem>>, vector<8x14x16xf32>,
    %c0_30 = arith.constant 0 : index
    %c0_31 = arith.constant 0 : index
    %c0_32 = arith.constant 0 : index
    %28 = vector.load %arg5[%c0_30, %c0_31, %c0_32] : memref<8x14x16xf32, #tpu.memory_space<vmem>>, vector<8x12x16xf32>
    %c48 = arith.constant 48 : index
    %c0_33 = arith.constant 0 : index
    %29 = vector.load %arg2[%c48, %c0_33] : memref<280x128xf32, #tpu.memory_space<vmem>>, vector<16x32xf32>
    %cst_34 = arith.constant dense<0.000000e+00> : vector<8x12x32xf32>
    %30 = tpu.matmul %28, %29, %cst_34 {dimension_numbers = #tpu.dot_dimension_numbers<[2], [0], [0, 1], [1], [0, 0, 0, 1, 1, 1], [], []>} : vector<8x12x16xf32>, vector<16x32xf32>, vector<8x12x32xf32> -> vector<8x12x32xf32>
    %c0_35 = arith.constant 0 : index
    %c1_36 = arith.constant 1 : index
    %c0_37 = arith.constant 0 : index
    %31 = vector.load %arg5[%c0_35, %c1_36, %c0_37] : memref<8x14x16xf32, #tpu.memory_space<vmem>>, vector<8x12x16xf32>
    %c64 = arith.constant 64 : index
    %c0_38 = arith.constant 0 : index
    %32 = vector.load %arg2[%c64, %c0_38] : memref<280x128xf32, #tpu.memory_space<vmem>>, vector<16x32xf32>
    %cst_39 = arith.constant dense<0.000000e+00> : vector<8x12x32xf32>
    %33 = tpu.matmul %31, %32, %cst_39 {dimension_numbers = #tpu.dot_dimension_numbers<[2], [0], [0, 1], [1], [0, 0, 0, 1, 1, 1], [], []>} : vector<8x12x16xf32>, vector<16x32xf32>, vector<8x12x32xf32> -> vector<8x12x32xf32>
    %34 = arith.addf %30, %33 : vector<8x12x32xf32>
    %c0_40 = arith.constant 0 : index
    %c2_41 = arith.constant 2 : index
    %c0_42 = arith.constant 0 : index
    %35 = vector.load %arg5[%c0_40, %c2_41, %c0_42] : memref<8x14x16xf32, #tpu.memory_space<vmem>>, vector<8x12x16xf32>
    %c80 = arith.constant 80 : index
    %c0_43 = arith.constant 0 : index
    %36 = vector.load %arg2[%c80, %c0_43] : memref<280x128xf32, #tpu.memory_space<vmem>>, vector<16x32xf32>
    %cst_44 = arith.constant dense<0.000000e+00> : vector<8x12x32xf32>
    %37 = tpu.matmul %35, %36, %cst_44 {dimension_numbers = #tpu.dot_dimension_numbers<[2], [0], [0, 1], [1], [0, 0, 0, 1, 1, 1], [], []>} : vector<8x12x16xf32>, vector<16x32xf32>, vector<8x12x32xf32> -> vector<8x12x32xf32>
    %38 = arith.addf %34, %37 : vector<8x12x32xf32>
    %c274 = arith.constant 274 : index
    %c0_45 = arith.constant 0 : index
    %39 = vector.load %arg2[%c274, %c0_45] : memref<280x128xf32, #tpu.memory_space<vmem>>, vector<1x32xf32>
    %40 = vector.shape_cast %39 : vector<1x32xf32> to vector<1x1x32xf32>
    %c275 = arith.constant 275 : index
    %c0_46 = arith.constant 0 : index
    %41 = vector.load %arg2[%c275, %c0_46] : memref<280x128xf32, #tpu.memory_space<vmem>>, vector<1x32xf32>
    %42 = vector.shape_cast %41 : vector<1x32xf32> to vector<1x1x32xf32>
    %43 = vector.broadcast %40 : vector<1x1x32xf32> to vector<8x12x32xf32>
    %44 = arith.mulf %38, %43 : vector<8x12x32xf32>
    %45 = vector.broadcast %42 : vector<1x1x32xf32> to vector<8x12x32xf32>
    %46 = arith.addf %44, %45 : vector<8x12x32xf32>
    %cst_47 = arith.constant 0.000000e+00 : f32
    %47 = vector.broadcast %cst_47 : f32 to vector<8x12x32xf32>
    %48 = arith.maximumf %46, %47 : vector<8x12x32xf32>
    %c0_48 = arith.constant 0 : index
    %c0_49 = arith.constant 0 : index
    %c0_50 = arith.constant 0 : index
    %49 = vector.load %arg6[%c0_48, %c0_49, %c0_50] : memref<8x12x32xf32, #tpu.memory_space<vmem>>, vector<8x12x32xf32>
    tpu.vector_store %arg6[%c0_48, %c0_49, %c0_50], %48 {strides = array<i32>} : memref<8x12x32xf32, #tpu.memory_space<vmem>>, vector<8x12x32xf32>,
    %c0_51 = arith.constant 0 : index
    %c0_52 = arith.constant 0 : index
    %c0_53 = arith.constant 0 : index
    %50 = tpu.strided_load %arg6[%c0_51, %c0_52, %c0_53] {strides = array<i32: 1, 3, 1>} : memref<8x12x32xf32, #tpu.memory_space<vmem>>, vector<8x4x32xf32>
    %c0_54 = arith.constant 0 : index
    %c1_55 = arith.constant 1 : index
    %c0_56 = arith.constant 0 : index
    %51 = tpu.strided_load %arg6[%c0_54, %c1_55, %c0_56] {strides = array<i32: 1, 3, 1>} : memref<8x12x32xf32, #tpu.memory_space<vmem>>, vector<8x4x32xf32>
    %52 = arith.maximumf %50, %51 : vector<8x4x32xf32>
    %c0_57 = arith.constant 0 : index
    %c2_58 = arith.constant 2 : index
    %c0_59 = arith.constant 0 : index
    %53 = tpu.strided_load %arg6[%c0_57, %c2_58, %c0_59] {strides = array<i32: 1, 3, 1>} : memref<8x12x32xf32, #tpu.memory_space<vmem>>, vector<8x4x32xf32>
    %54 = arith.maximumf %52, %53 : vector<8x4x32xf32>
    %55 = vector.extract_strided_slice %54 {offsets = [0, 0, 0], sizes = [8, 1, 32], strides = [1, 1, 1]} : vector<8x4x32xf32> to vector<8x1x32xf32>
    %56 = vector.shape_cast %55 : vector<8x1x32xf32> to vector<8x32xf32>
    %c96 = arith.constant 96 : index
    %c0_60 = arith.constant 0 : index
    %57 = vector.load %arg2[%c96, %c0_60] : memref<280x128xf32, #tpu.memory_space<vmem>>, vector<32x32xf32>
    %cst_61 = arith.constant dense<0.000000e+00> : vector<8x32xf32>
    %58 = tpu.matmul %56, %57, %cst_61 {dimension_numbers = #tpu.dot_dimension_numbers<[1], [0], [0], [1], [0, 0, 1, 1], [], []>} : vector<8x32xf32>, vector<32x32xf32>, vector<8x32xf32> -> vector<8x32xf32>
    %59 = vector.extract_strided_slice %54 {offsets = [0, 1, 0], sizes = [8, 1, 32], strides = [1, 1, 1]} : vector<8x4x32xf32> to vector<8x1x32xf32>
    %60 = vector.shape_cast %59 : vector<8x1x32xf32> to vector<8x32xf32>
    %c128 = arith.constant 128 : index
    %c0_62 = arith.constant 0 : index
    %61 = vector.load %arg2[%c128, %c0_62] : memref<280x128xf32, #tpu.memory_space<vmem>>, vector<32x32xf32>
    %cst_63 = arith.constant dense<0.000000e+00> : vector<8x32xf32>
    %62 = tpu.matmul %60, %61, %cst_63 {dimension_numbers = #tpu.dot_dimension_numbers<[1], [0], [0], [1], [0, 0, 1, 1], [], []>} : vector<8x32xf32>, vector<32x32xf32>, vector<8x32xf32> -> vector<8x32xf32>
    %63 = arith.addf %58, %62 : vector<8x32xf32>
    %64 = vector.extract_strided_slice %54 {offsets = [0, 2, 0], sizes = [8, 1, 32], strides = [1, 1, 1]} : vector<8x4x32xf32> to vector<8x1x32xf32>
    %65 = vector.shape_cast %64 : vector<8x1x32xf32> to vector<8x32xf32>
    %c160 = arith.constant 160 : index
    %c0_64 = arith.constant 0 : index
    %66 = vector.load %arg2[%c160, %c0_64] : memref<280x128xf32, #tpu.memory_space<vmem>>, vector<32x32xf32>
    %cst_65 = arith.constant dense<0.000000e+00> : vector<8x32xf32>
    %67 = tpu.matmul %65, %66, %cst_65 {dimension_numbers = #tpu.dot_dimension_numbers<[1], [0], [0], [1], [0, 0, 1, 1], [], []>} : vector<8x32xf32>, vector<32x32xf32>, vector<8x32xf32> -> vector<8x32xf32>
    %68 = arith.addf %63, %67 : vector<8x32xf32>
    %69 = vector.extract_strided_slice %54 {offsets = [0, 3, 0], sizes = [8, 1, 32], strides = [1, 1, 1]} : vector<8x4x32xf32> to vector<8x1x32xf32>
    %70 = vector.shape_cast %69 : vector<8x1x32xf32> to vector<8x32xf32>
    %c192 = arith.constant 192 : index
    %c0_66 = arith.constant 0 : index
    %71 = vector.load %arg2[%c192, %c0_66] : memref<280x128xf32, #tpu.memory_space<vmem>>, vector<32x32xf32>
    %cst_67 = arith.constant dense<0.000000e+00> : vector<8x32xf32>
    %72 = tpu.matmul %70, %71, %cst_67 {dimension_numbers = #tpu.dot_dimension_numbers<[1], [0], [0], [1], [0, 0, 1, 1], [], []>} : vector<8x32xf32>, vector<32x32xf32>, vector<8x32xf32> -> vector<8x32xf32>
    %73 = arith.addf %68, %72 : vector<8x32xf32>
    %c276 = arith.constant 276 : index
    %c0_68 = arith.constant 0 : index
    %74 = vector.load %arg2[%c276, %c0_68] : memref<280x128xf32, #tpu.memory_space<vmem>>, vector<1x32xf32>
    %75 = vector.broadcast %74 : vector<1x32xf32> to vector<8x32xf32>
    %76 = arith.addf %73, %75 : vector<8x32xf32>
    %cst_69 = arith.constant 0.000000e+00 : f32
    %77 = vector.broadcast %cst_69 : f32 to vector<8x32xf32>
    %78 = arith.maximumf %76, %77 : vector<8x32xf32>
    %c224 = arith.constant 224 : index
    %c0_70 = arith.constant 0 : index
    %79 = vector.load %arg2[%c224, %c0_70] : memref<280x128xf32, #tpu.memory_space<vmem>>, vector<32x16xf32>
    %cst_71 = arith.constant dense<0.000000e+00> : vector<8x16xf32>
    %80 = tpu.matmul %78, %79, %cst_71 {dimension_numbers = #tpu.dot_dimension_numbers<[1], [0], [0], [1], [0, 0, 1, 1], [], []>} : vector<8x32xf32>, vector<32x16xf32>, vector<8x16xf32> -> vector<8x16xf32>
    %c277 = arith.constant 277 : index
    %c0_72 = arith.constant 0 : index
    %81 = vector.load %arg2[%c277, %c0_72] : memref<280x128xf32, #tpu.memory_space<vmem>>, vector<1x16xf32>
    %82 = vector.broadcast %81 : vector<1x16xf32> to vector<8x16xf32>
    %83 = arith.addf %80, %82 : vector<8x16xf32>
    %cst_73 = arith.constant 0.000000e+00 : f32
    %84 = vector.broadcast %cst_73 : f32 to vector<8x16xf32>
    %85 = arith.maximumf %83, %84 : vector<8x16xf32>
    %c256 = arith.constant 256 : index
    %c0_74 = arith.constant 0 : index
    %86 = vector.load %arg2[%c256, %c0_74] : memref<280x128xf32, #tpu.memory_space<vmem>>, vector<16x128xf32>
    %cst_75 = arith.constant dense<0.000000e+00> : vector<8x128xf32>
    %87 = tpu.matmul %85, %86, %cst_75 {dimension_numbers = #tpu.dot_dimension_numbers<[1], [0], [0], [1], [0, 0, 1, 1], [], []>} : vector<8x16xf32>, vector<16x128xf32>, vector<8x128xf32> -> vector<8x128xf32>
    %c278 = arith.constant 278 : index
    %c0_76 = arith.constant 0 : index
    %88 = vector.load %arg2[%c278, %c0_76] : memref<280x128xf32, #tpu.memory_space<vmem>>, vector<1x128xf32>
    %89 = vector.broadcast %88 : vector<1x128xf32> to vector<8x128xf32>
    %90 = arith.addf %87, %89 : vector<8x128xf32>
    %cst_77 = arith.constant 0.000000e+00 : f32
    %91 = vector.broadcast %cst_77 : f32 to vector<8x128xf32>
    %92 = arith.maximumf %90, %91 : vector<8x128xf32>
    %c0_78 = arith.constant 0 : index
    %c0_79 = arith.constant 0 : index
    %93 = vector.load %arg3[%c0_78, %c0_79] : memref<8x128xf32, #tpu.memory_space<vmem>>, vector<8x128xf32>
    tpu.vector_store %arg3[%c0_78, %c0_79], %92 {strides = array<i32>} : memref<8x128xf32, #tpu.memory_space<vmem>>, vector<8x128xf32>,
    return
  }
  func.func @transform_0(%arg0: i32) -> (i32, i32, i32) {
    %c0_i32 = arith.constant 0 : i32
    %c0_i32_0 = arith.constant 0 : i32
    %c0_i32_1 = arith.constant 0 : i32
    return %arg0, %c0_i32, %c0_i32_0 : i32, i32, i32
  }
  func.func @transform_1(%arg0: i32) -> (i32, i32) {
    %c0_i32 = arith.constant 0 : i32
    %c0_i32_0 = arith.constant 0 : i32
    %c0_i32_1 = arith.constant 0 : i32
    return %c0_i32, %c0_i32_0 : i32, i32
  }
  func.func @transform_2(%arg0: i32) -> (i32, i32) {
    %c0_i32 = arith.constant 0 : i32
    %c0_i32_0 = arith.constant 0 : i32
    return %arg0, %c0_i32 : i32, i32
  }
}

</mosaic_0001>

<llo_original>
// kernel: tpu_custom_call.1
$region0: #{tpu_custom_call.1}
  #allocation0 [shape = 'u32[]', space=smem, size = 0x4, offset = 0x4, fixed_abs, tag = 'smem constant byte address 0x4 - core index']
  #allocation1 [shape = 'u32[72,128]{1,0:T(1,128)}', space=vmem, size = 0x9000, scoped, tag = 'internal scratch']
  #allocation2 [shape = 'f32[8,42,16]{2,1,0:T(8,128)}', space=vmem, size = 0x30000, scoped, tag = 'scratch operand']
  #allocation3 [shape = 'f32[8,14,16]{2,1,0:T(8,128)}', space=vmem, size = 0x10000, scoped, tag = 'scratch operand']
  #allocation4 [shape = 'f32[8,12,32]{2,1,0:T(8,128)}', space=vmem, size = 0x10000, scoped, tag = 'scratch operand']
  %s0 = inlined_call_operand.vmem [shape: f32[16,44,9], index: 0, kind: input, shape index: {}]
  %s1 = inlined_call_operand.vmem [shape: f32[280,128], index: 1, kind: input, shape index: {}]
  %s2 = inlined_call_operand.hbm [shape: f32[16,128], index: 2, kind: output, shape index: {}]
  %s3 = sld [smem:[#allocation0]]
  $region41: #{tpu_custom_call.1} parent=0
    _
  %s5 = ssub.s32 1, %s3
  %s6 = scalar_select 0, %s5, %s3
  $region1: #{tpu_custom_call.1} parent=0
    #allocation5 [shape = 'u8[8192]{0}', space=vmem, size = 0x2000, scoped, tag = 'output window, operand 0']
    #allocation6 [shape = 's32[2]{0}', space=sflag, size = 0x8, scoped, tag = 'scoped memory for tpu_custom_call.1']
    %7 = vsyncpa [#allocation6], 0
    %s8 = scalar_lea.sflag [#allocation6], 1
    %9 = vsyncpa %s8, 0
    loop: start=0, step=1, limit=4
    $region2: #{tpu_custom_call.1} parent=1 // loop_pre_header
      _
    $region3: #{tpu_custom_call.1} parent=1 // loop_header
      %s11 = sphi 0, %s15
      %p12 = scmp.ge.s32.totalorder %s11, 4
      %s21 = sphi 0, %s23
      %s24 = sphi 0, %s21
      %s25 = sphi 0, %s24
      %s41 = sphi 0, %s25
      %s45 = sphi 0, %s45
      %s47 = sphi 0, %s45
      %s48 = sphi 0, %s47
      %s62 = sphi 0, %s48
      %s68 = sphi 0, %s70
      %s71 = sphi 0, %s68
      %s72 = sphi 0, %s71
      %s88 = sphi 0, %s72
    $region4: #{tpu_custom_call.1} parent=1 // loop_header_branch
      %14 = sbr.rel (%p12) target = $region8
    $region5: #{tpu_custom_call.1} parent=1 // loop_body
      %s16 = ssub.s32 %s11, 1
      %s17 = ssub.s32 %s11, 2
      %s18 = sadd.s32 %s11, 1
      %s19 = ssub.s32 %s11, %s18
      %p20 = scmp.eq.s32.totalorder %s19, 0
      %s22 = sadd.s32 %s21, 1
      %s23 = scalar_select %p20, %s21, %s22
      %p26 = pneg %p20
      %p27 = scmp.eq.s32.totalorder %s11, 1
      %p28 = por %p26, %p27
      %p29 = scmp.ne.s32.totalorder %s21, %s24
      %p30 = scmp.eq.s32.totalorder %s11, 0
      %p31 = por %p29, %p30
      %p32 = scmp.ne.s32.totalorder %s21, %s24
      %p33 = scmp.eq.s32.totalorder %s16, 1
      %p34 = por %p32, %p33
      %p35 = scmp.ne.s32.totalorder %s24, %s25
      %p36 = scmp.eq.s32.totalorder %s16, 0
      %p37 = por %p35, %p36
      %p38 = scmp.ne.s32.totalorder %s24, %s25
      %p39 = scmp.eq.s32.totalorder %s17, 1
      %p40 = por %p38, %p39
      %p42 = scmp.ne.s32.totalorder %s25, %s41
      %p43 = scmp.eq.s32.totalorder %s17, 0
      %p44 = por %p42, %p43
      %s46 = sadd.s32 %s45, 1
      %p49 = scmp.eq.s32.totalorder %s11, 1
      %p50 = scmp.ne.s32.totalorder %s45, %s47
      %p51 = scmp.eq.s32.totalorder %s11, 0
      %p52 = por %p50, %p51
      %p53 = scmp.ne.s32.totalorder %s45, %s47
      %p54 = scmp.eq.s32.totalorder %s16, 1
      %p55 = por %p53, %p54
      %p56 = scmp.ne.s32.totalorder %s47, %s48
      %p57 = scmp.eq.s32.totalorder %s16, 0
      %p58 = por %p56, %p57
      %p59 = scmp.ne.s32.totalorder %s47, %s48
      %p60 = scmp.eq.s32.totalorder %s17, 1
      %p61 = por %p59, %p60
      %p63 = scmp.ne.s32.totalorder %s48, %s62
      %p64 = scmp.eq.s32.totalorder %s17, 0
      %p65 = por %p63, %p64
      %s66 = ssub.s32 %s11, %s18
      %p67 = scmp.eq.s32.totalorder %s66, 0
      %s69 = sadd.s32 %s68, 1
      %s70 = scalar_select %p67, %s68, %s69
      %p73 = pneg %p67
      %p74 = scmp.eq.s32.totalorder %s11, 1
      %p75 = por %p73, %p74
      %p76 = scmp.ne.s32.totalorder %s68, %s71
      %p77 = scmp.eq.s32.totalorder %s11, 0
      %p78 = por %p76, %p77
      %p79 = scmp.ne.s32.totalorder %s68, %s71
      %p80 = scmp.eq.s32.totalorder %s16, 1
      %p81 = por %p79, %p80
      %p82 = scmp.ne.s32.totalorder %s71, %s72
      %p83 = scmp.eq.s32.totalorder %s16, 0
      %p84 = por %p82, %p83
      %p85 = scmp.ne.s32.totalorder %s71, %s72
      %p86 = scmp.eq.s32.totalorder %s17, 1
      %p87 = por %p85, %p86
      %p89 = scmp.ne.s32.totalorder %s72, %s88
      %p90 = scmp.eq.s32.totalorder %s17, 0
      %p91 = por %p89, %p90
      %p92 = scmp.le.s32.totalorder 1, %s11
      %p93 = scmp.lt.s32.totalorder %s11, 3
      %p94 = pnand %p92, %p93
      %p95 = pneg %p94
      // Predicated region
      $region9: #{tpu_custom_call.1} parent=5 // pred_check
        _
      $region10: #{tpu_custom_call.1} parent=5 // pred_check_branch
        %97 = sbr.rel (%p94) target = $region12
      $region11: #{tpu_custom_call.1} parent=5 // pred_region
        %s98 = ssub.s32 %s11, 1
        // Predicated region
        $region13: #{tpu_custom_call.1} parent=11 // pred_check
          %p99 = pneg %p58
        $region14: #{tpu_custom_call.1} parent=11 // pred_check_branch
          %101 = sbr.rel (%p99) target = $region16
        $region15: #{tpu_custom_call.1} parent=11 // pred_region
          _
        $region16: #{tpu_custom_call.1} parent=11 // pred_fallthru
          _
      $region12: #{tpu_custom_call.1} parent=5 // pred_fallthru
        _
      %p102 = scmp.lt.s32.totalorder %s11, 2
      // Predicated region
      $region17: #{tpu_custom_call.1} parent=5 // pred_check
        %p103 = pneg %p102
      $region18: #{tpu_custom_call.1} parent=5 // pred_check_branch
        %105 = sbr.rel (%p103) target = $region20
      $region19: #{tpu_custom_call.1} parent=5 // pred_region
        // Predicated region
        $region21: #{tpu_custom_call.1} parent=19 // pred_check
          %p106 = pneg %p31
        $region22: #{tpu_custom_call.1} parent=19 // pred_check_branch
          %108 = sbr.rel (%p106) target = $region24
        $region23: #{tpu_custom_call.1} parent=19 // pred_region
          %s109 = smul.u32 8, %s11
          %p110 = scmp.lt.s32.totalorder %s109, 15
          %s111 = scalar_select %p110, %s109, 15
          %s112 = smul.addr %s111, 6
          %s113 = smul.addr %s112, 8
          %s114 = scalar_lea.vmem %s0, %s113
          %s115 = smul.u32 8, %s11
        $region24: #{tpu_custom_call.1} parent=19 // pred_fallthru
          _
      $region20: #{tpu_custom_call.1} parent=5 // pred_fallthru
        _
      %p116 = scmp.le.s32.totalorder 1, %s11
      %p117 = scmp.lt.s32.totalorder %s11, 3
      %p118 = pnand %p116, %p117
      %p119 = pneg %p118
      // Predicated region
      $region25: #{tpu_custom_call.1} parent=5 // pred_check
        _
      $region26: #{tpu_custom_call.1} parent=5 // pred_check_branch
        %121 = sbr.rel (%p118) target = $region28
      $region27: #{tpu_custom_call.1} parent=5 // pred_region
        %s122 = ssub.s32 %s11, 1
        %s123 = smul.u32 8, %s16
        %p124 = scmp.lt.s32.totalorder %s123, 15
        %s125 = scalar_select %p124, %s123, 15
        %s126 = smul.addr %s125, 6
        %s127 = smul.addr %s126, 8
        %s128 = scalar_lea.vmem %s0, %s127
        %p129 = pneg %p37
        %p130 = pneg %p34
        %p131 = pneg %p58
        %p132 = pneg %p55
        %p133 = pneg %p84
        %p134 = pneg %p81
        %s135 = sand.u32 %s71, 1
        %s136 = scalar_lea.sflag [#allocation6], %s135
        %s137 = sand.u32 %s71, 1
        %s138 = smul.addr %s137, 8
        %s139 = scalar_lea.vmem [#allocation5], %s138
        %s140 = smul.u32 8, %s16
        %p141 = scmp.lt.s32.totalorder %s140, 15
        %s142 = scalar_select %p141, %s140, 15
        %s143 = smul.addr %s142, 6
        %s144 = smul.addr %s143, 8
        %s145 = scalar_lea.vmem %s0, %s144
        %s146 = smul.u32 8, %s16
        %v147 = vld [vmem:[%s145] sm:$0xff]
        %v148 = vld [vmem:[%s145 + $0x8] sm:$0xff]
        %v149 = vld [vmem:[%s145 + $0x10] sm:$0xff]
        %v150 = vld [vmem:[%s145 + $0x18] sm:$0xff]
        %v151 = vld [vmem:[%s145 + $0x20] sm:$0xff]
        %v152 = vld [vmem:[%s145 + $0x28] sm:$0x3]
        %v153 = vld [vmem:[%s145 + $0x30] sm:$0xff]
        %v154 = vld [vmem:[%s145 + $0x38] sm:$0xff]
        %v155 = vld [vmem:[%s145 + $0x40] sm:$0xff]
        %v156 = vld [vmem:[%s145 + $0x48] sm:$0xff]
        %v157 = vld [vmem:[%s145 + $0x50] sm:$0xff]
        %v158 = vld [vmem:[%s145 + $0x58] sm:$0x3]
        %v159 = vld [vmem:[%s145 + $0x60] sm:$0xff]
        %v160 = vld [vmem:[%s145 + $0x68] sm:$0xff]
        %v161 = vld [vmem:[%s145 + $0x70] sm:$0xff]
        %v162 = vld [vmem:[%s145 + $0x78] sm:$0xff]
        %v163 = vld [vmem:[%s145 + $0x80] sm:$0xff]
        %v164 = vld [vmem:[%s145 + $0x88] sm:$0x3]
        %v165 = vld [vmem:[%s145 + $0x90] sm:$0xff]
        %v166 = vld [vmem:[%s145 + $0x98] sm:$0xff]
        %v167 = vld [vmem:[%s145 + $0xa0] sm:$0xff]
        %v168 = vld [vmem:[%s145 + $0xa8] sm:$0xff]
        %v169 = vld [vmem:[%s145 + $0xb0] sm:$0xff]
        %v170 = vld [vmem:[%s145 + $0xb8] sm:$0x3]
        %v171 = vld [vmem:[%s145 + $0xc0] sm:$0xff]
        %v172 = vld [vmem:[%s145 + $0xc8] sm:$0xff]
        %v173 = vld [vmem:[%s145 + $0xd0] sm:$0xff]
        %v174 = vld [vmem:[%s145 + $0xd8] sm:$0xff]
        %v175 = vld [vmem:[%s145 + $0xe0] sm:$0xff]
        %v176 = vld [vmem:[%s145 + $0xe8] sm:$0x3]
        %v177 = vld [vmem:[%s145 + $0xf0] sm:$0xff]
        %v178 = vld [vmem:[%s145 + $0xf8] sm:$0xff]
        %v179 = vld [vmem:[%s145 + $0x100] sm:$0xff]
        %v180 = vld [vmem:[%s145 + $0x108] sm:$0xff]
        %v181 = vld [vmem:[%s145 + $0x110] sm:$0xff]
        %v182 = vld [vmem:[%s145 + $0x118] sm:$0x3]
        %v183 = vld [vmem:[%s145 + $0x120] sm:$0xff]
        %v184 = vld [vmem:[%s145 + $0x128] sm:$0xff]
        %v185 = vld [vmem:[%s145 + $0x130] sm:$0xff]
        %v186 = vld [vmem:[%s145 + $0x138] sm:$0xff]
        %v187 = vld [vmem:[%s145 + $0x140] sm:$0xff]
        %v188 = vld [vmem:[%s145 + $0x148] sm:$0x3]
        %v189 = vld [vmem:[%s145 + $0x150] sm:$0xff]
        %v190 = vld [vmem:[%s145 + $0x158] sm:$0xff]
        %v191 = vld [vmem:[%s145 + $0x160] sm:$0xff]
        %v192 = vld [vmem:[%s145 + $0x168] sm:$0xff]
        %v193 = vld [vmem:[%s145 + $0x170] sm:$0xff]
        %v194 = vld [vmem:[%s145 + $0x178] sm:$0x3]
        %v195 = vld [vmem:[%s1] sm:$0xff]
        %v196 = vld [vmem:[%s1 + $0x8] sm:$0x1]
        %v197 = vld [vmem:[%s145 + $0x1] sm:$0xff]
        %v198 = vld [vmem:[%s145 + $0x9] sm:$0xff]
        %v199 = vld [vmem:[%s145 + $0x11] sm:$0xff]
        %v200 = vld [vmem:[%s145 + $0x19] sm:$0xff]
        %v201 = vld [vmem:[%s145 + $0x21] sm:$0xff]
        %v202 = vld [vmem:[%s145 + $0x29] sm:$0x3]
        %v203 = vld [vmem:[%s145 + $0x31] sm:$0xff]
        %v204 = vld [vmem:[%s145 + $0x39] sm:$0xff]
        %v205 = vld [vmem:[%s145 + $0x41] sm:$0xff]
        %v206 = vld [vmem:[%s145 + $0x49] sm:$0xff]
        %v207 = vld [vmem:[%s145 + $0x51] sm:$0xff]
        %v208 = vld [vmem:[%s145 + $0x59] sm:$0x3]
        %v209 = vld [vmem:[%s145 + $0x61] sm:$0xff]
        %v210 = vld [vmem:[%s145 + $0x69] sm:$0xff]
        %v211 = vld [vmem:[%s145 + $0x71] sm:$0xff]
        %v212 = vld [vmem:[%s145 + $0x79] sm:$0xff]
        %v213 = vld [vmem:[%s145 + $0x81] sm:$0xff]
        %v214 = vld [vmem:[%s145 + $0x89] sm:$0x3]
        %v215 = vld [vmem:[%s145 + $0x91] sm:$0xff]
        %v216 = vld [vmem:[%s145 + $0x99] sm:$0xff]
        %v217 = vld [vmem:[%s145 + $0xa1] sm:$0xff]
        %v218 = vld [vmem:[%s145 + $0xa9] sm:$0xff]
        %v219 = vld [vmem:[%s145 + $0xb1] sm:$0xff]
        %v220 = vld [vmem:[%s145 + $0xb9] sm:$0x3]
        %v221 = vld [vmem:[%s145 + $0xc1] sm:$0xff]
        %v222 = vld [vmem:[%s145 + $0xc9] sm:$0xff]
        %v223 = vld [vmem:[%s145 + $0xd1] sm:$0xff]
        %v224 = vld [vmem:[%s145 + $0xd9] sm:$0xff]
        %v225 = vld [vmem:[%s145 + $0xe1] sm:$0xff]
        %v226 = vld [vmem:[%s145 + $0xe9] sm:$0x3]
        %v227 = vld [vmem:[%s145 + $0xf1] sm:$0xff]
        %v228 = vld [vmem:[%s145 + $0xf9] sm:$0xff]
        %v229 = vld [vmem:[%s145 + $0x101] sm:$0xff]
        %v230 = vld [vmem:[%s145 + $0x109] sm:$0xff]
        %v231 = vld [vmem:[%s145 + $0x111] sm:$0xff]
        %v232 = vld [vmem:[%s145 + $0x119] sm:$0x3]
        %v233 = vld [vmem:[%s145 + $0x121] sm:$0xff]
        %v234 = vld [vmem:[%s145 + $0x129] sm:$0xff]
        %v235 = vld [vmem:[%s145 + $0x131] sm:$0xff]
        %v236 = vld [vmem:[%s145 + $0x139] sm:$0xff]
        %v237 = vld [vmem:[%s145 + $0x141] sm:$0xff]
        %v238 = vld [vmem:[%s145 + $0x149] sm:$0x3]
        %v239 = vld [vmem:[%s145 + $0x151] sm:$0xff]
        %v240 = vld [vmem:[%s145 + $0x159] sm:$0xff]
        %v241 = vld [vmem:[%s145 + $0x161] sm:$0xff]
        %v242 = vld [vmem:[%s145 + $0x169] sm:$0xff]
        %v243 = vld [vmem:[%s145 + $0x171] sm:$0xff]
        %v244 = vld [vmem:[%s145 + $0x179] sm:$0x3]
        %v245 = vld [vmem:[%s1 + $0x10] sm:$0xff]
        %v246 = vld [vmem:[%s1 + $0x18] sm:$0x1]
        %v295 = vrot.slane %v197, 2
        %v296 = vrot.slane %v197, 4
        %v297 = vrot.slane %v197, 6
        %v298 = vrot.slane %v198, 2
        %v299 = vrot.slane %v198, 4
        %v300 = vrot.slane %v198, 6
        %v301 = vrot.slane %v199, 2
        %v302 = vrot.slane %v199, 4
        %v303 = vrot.slane %v199, 6
        %v304 = vrot.slane %v200, 2
        %v305 = vrot.slane %v200, 4
        %v306 = vrot.slane %v200, 6
        %v307 = vrot.slane %v201, 2
        %v308 = vrot.slane %v201, 4
        %v309 = vrot.slane %v201, 6
        %v310 = vrot.slane %v203, 2
        %v311 = vrot.slane %v203, 4
        %v312 = vrot.slane %v203, 6
        %v313 = vrot.slane %v204, 2
        %v314 = vrot.slane %v204, 4
        %v315 = vrot.slane %v204, 6
        %v316 = vrot.slane %v205, 2
        %v317 = vrot.slane %v205, 4
        %v318 = vrot.slane %v205, 6
        %v319 = vrot.slane %v206, 2
        %v320 = vrot.slane %v206, 4
        %v321 = vrot.slane %v206, 6
        %v322 = vrot.slane %v207, 2
        %v323 = vrot.slane %v207, 4
        %v324 = vrot.slane %v207, 6
        %v325 = vrot.slane %v209, 2
        %v326 = vrot.slane %v209, 4
        %v327 = vrot.slane %v209, 6
        %v328 = vrot.slane %v210, 2
        %v329 = vrot.slane %v210, 4
        %v330 = vrot.slane %v210, 6
        %v331 = vrot.slane %v211, 2
        %v332 = vrot.slane %v211, 4
        %v333 = vrot.slane %v211, 6
        %v334 = vrot.slane %v212, 2
        %v335 = vrot.slane %v212, 4
        %v336 = vrot.slane %v212, 6
        %v337 = vrot.slane %v213, 2
        %v338 = vrot.slane %v213, 4
        %v339 = vrot.slane %v213, 6
        %v340 = vrot.slane %v215, 2
        %v341 = vrot.slane %v215, 4
        %v342 = vrot.slane %v215, 6
        %v343 = vrot.slane %v216, 2
        %v344 = vrot.slane %v216, 4
        %v345 = vrot.slane %v216, 6
        %v346 = vrot.slane %v217, 2
        %v347 = vrot.slane %v217, 4
        %v348 = vrot.slane %v217, 6
        %v349 = vrot.slane %v218, 2
        %v350 = vrot.slane %v218, 4
        %v351 = vrot.slane %v218, 6
        %v352 = vrot.slane %v219, 2
        %v353 = vrot.slane %v219, 4
        %v354 = vrot.slane %v219, 6
        %v355 = vrot.slane %v221, 2
        %v356 = vrot.slane %v221, 4
        %v357 = vrot.slane %v221, 6
        %v358 = vrot.slane %v222, 2
        %v359 = vrot.slane %v222, 4
        %v360 = vrot.slane %v222, 6
        %v361 = vrot.slane %v223, 2
        %v362 = vrot.slane %v223, 4
        %v363 = vrot.slane %v223, 6
        %v364 = vrot.slane %v224, 2
        %v365 = vrot.slane %v224, 4
        %v366 = vrot.slane %v224, 6
        %v367 = vrot.slane %v225, 2
        %v368 = vrot.slane %v225, 4
        %v369 = vrot.slane %v225, 6
        %v370 = vrot.slane %v227, 2
        %v371 = vrot.slane %v227, 4
        %v372 = vrot.slane %v227, 6
        %v373 = vrot.slane %v228, 2
        %v374 = vrot.slane %v228, 4
        %v375 = vrot.slane %v228, 6
        %v376 = vrot.slane %v229, 2
        %v377 = vrot.slane %v229, 4
        %v378 = vrot.slane %v229, 6
        %v379 = vrot.slane %v230, 2
        %v380 = vrot.slane %v230, 4
        %v381 = vrot.slane %v230, 6
        %v382 = vrot.slane %v231, 2
        %v383 = vrot.slane %v231, 4
        %v384 = vrot.slane %v231, 6
        %v385 = vrot.slane %v233, 2
        %v386 = vrot.slane %v233, 4
        %v387 = vrot.slane %v233, 6
        %v388 = vrot.slane %v234, 2
        %v389 = vrot.slane %v234, 4
        %v390 = vrot.slane %v234, 6
        %v391 = vrot.slane %v235, 2
        %v392 = vrot.slane %v235, 4
        %v393 = vrot.slane %v235, 6
        %v394 = vrot.slane %v236, 2
        %v395 = vrot.slane %v236, 4
        %v396 = vrot.slane %v236, 6
        %v397 = vrot.slane %v237, 2
        %v398 = vrot.slane %v237, 4
        %v399 = vrot.slane %v237, 6
        %v400 = vrot.slane %v239, 2
        %v401 = vrot.slane %v239, 4
        %v402 = vrot.slane %v239, 6
        %v403 = vrot.slane %v240, 2
        %v404 = vrot.slane %v240, 4
        %v405 = vrot.slane %v240, 6
        %v406 = vrot.slane %v241, 2
        %v407 = vrot.slane %v241, 4
        %v408 = vrot.slane %v241, 6
        %v409 = vrot.slane %v242, 2
        %v410 = vrot.slane %v242, 4
        %v411 = vrot.slane %v242, 6
        %v412 = vrot.slane %v243, 2
        %v413 = vrot.slane %v243, 4
        %v414 = vrot.slane %v243, 6
        %415 = vst [vmem:[#allocation1] ss:$4 sm:$0xff] %v197
        %s416 = scalar_lea.vmem [#allocation1], 1
        %417 = vst [vmem:[%s416] ss:$4 sm:$0xff] %v295
        %s418 = scalar_lea.vmem [#allocation1], 2
        %419 = vst [vmem:[%s418] ss:$4 sm:$0xff] %v296
        %s420 = scalar_lea.vmem [#allocation1], 3
        %421 = vst [vmem:[%s420] ss:$4 sm:$0xff] %v297
        %s422 = scalar_lea.vmem [#allocation1], 32
        %423 = vst [vmem:[%s422] ss:$4 sm:$0xff] %v198
        %s424 = scalar_lea.vmem [#allocation1], 33
        %425 = vst [vmem:[%s424] ss:$4 sm:$0xff] %v298
        %s426 = scalar_lea.vmem [#allocation1], 34
        %427 = vst [vmem:[%s426] ss:$4 sm:$0xff] %v299
        %s428 = scalar_lea.vmem [#allocation1], 35
        %429 = vst [vmem:[%s428] ss:$4 sm:$0xff] %v300
        %v430 = vld.sshfl [vmem:[#allocation1] sm:$0xff pattern:$0x73625140]
        %v431 = vld.sshfl [vmem:[#allocation1 + $0x20] sm:$0xff pattern:$0x73625140]
        %432 = vst [vmem:[#allocation1] ss:$4 sm:$0xff] %v199
        %433 = vst [vmem:[%s416] ss:$4 sm:$0xff] %v301
        %434 = vst [vmem:[%s418] ss:$4 sm:$0xff] %v302
        %435 = vst [vmem:[%s420] ss:$4 sm:$0xff] %v303
        %436 = vst [vmem:[%s422] ss:$4 sm:$0xff] %v200
        %437 = vst [vmem:[%s424] ss:$4 sm:$0xff] %v304
        %438 = vst [vmem:[%s426] ss:$4 sm:$0xff] %v305
        %439 = vst [vmem:[%s428] ss:$4 sm:$0xff] %v306
        %v440 = vld.sshfl [vmem:[#allocation1] sm:$0xff pattern:$0x73625140]
        %v441 = vld.sshfl [vmem:[#allocation1 + $0x20] sm:$0xff pattern:$0x73625140]
        %442 = vst [vmem:[#allocation1] ss:$4 sm:$0xff] %v201
        %443 = vst [vmem:[%s416] ss:$4 sm:$0xff] %v307
        %444 = vst [vmem:[%s418] ss:$4 sm:$0xff] %v308
        %445 = vst [vmem:[%s420] ss:$4 sm:$0xff] %v309
        %446 = vst [vmem:[%s422] ss:$4 sm:$0xff] %v202
        %447 = vst [vmem:[%s424] ss:$4 sm:$0xff] %v203
        %448 = vst [vmem:[%s426] ss:$4 sm:$0xff] %v310
        %449 = vst [vmem:[%s428] ss:$4 sm:$0xff] %v311
        %v450 = vld.sshfl [vmem:[#allocation1] sm:$0xff pattern:$0x73625140]
        %v451 = vld.sshfl [vmem:[#allocation1 + $0x20] sm:$0xff pattern:$0x73625140]
        %452 = vst [vmem:[#allocation1] ss:$4 sm:$0xff] %v312
        %453 = vst [vmem:[%s416] ss:$4 sm:$0xff] %v204
        %454 = vst [vmem:[%s418] ss:$4 sm:$0xff] %v313
        %455 = vst [vmem:[%s420] ss:$4 sm:$0xff] %v314
        %456 = vst [vmem:[%s422] ss:$4 sm:$0xff] %v315
        %457 = vst [vmem:[%s424] ss:$4 sm:$0xff] %v205
        %458 = vst [vmem:[%s426] ss:$4 sm:$0xff] %v316
        %459 = vst [vmem:[%s428] ss:$4 sm:$0xff] %v317
        %v460 = vld.sshfl [vmem:[#allocation1] sm:$0xff pattern:$0x73625140]
        %v461 = vld.sshfl [vmem:[#allocation1 + $0x20] sm:$0xff pattern:$0x73625140]
        %462 = vst [vmem:[#allocation1] ss:$4 sm:$0xff] %v318
        %463 = vst [vmem:[%s416] ss:$4 sm:$0xff] %v206
        %464 = vst [vmem:[%s418] ss:$4 sm:$0xff] %v319
        %465 = vst [vmem:[%s420] ss:$4 sm:$0xff] %v320
        %466 = vst [vmem:[%s422] ss:$4 sm:$0xff] %v321
        %467 = vst [vmem:[%s424] ss:$4 sm:$0xff] %v207
        %468 = vst [vmem:[%s426] ss:$4 sm:$0xff] %v322
        %469 = vst [vmem:[%s428] ss:$4 sm:$0xff] %v323
        %v470 = vld.sshfl [vmem:[#allocation1] sm:$0xff pattern:$0x73625140]
        %v471 = vld.sshfl [vmem:[#allocation1 + $0x20] sm:$0xff pattern:$0x73625140]
        %472 = vst [vmem:[#allocation1] ss:$4 sm:$0xff] %v324
        %473 = vst [vmem:[%s416] ss:$4 sm:$0xff] %v208
        %474 = vst [vmem:[%s418] ss:$4 sm:$0xff] %v209
        %475 = vst [vmem:[%s420] ss:$4 sm:$0xff] %v325
        %476 = vst [vmem:[%s422] ss:$4 sm:$0xff] %v326
        %477 = vst [vmem:[%s424] ss:$4 sm:$0xff] %v327
        %478 = vst [vmem:[%s426] ss:$4 sm:$0xff] %v210
        %479 = vst [vmem:[%s428] ss:$4 sm:$0xff] %v328
        %v480 = vld.sshfl [vmem:[#allocation1] sm:$0xff pattern:$0x73625140]
        %v481 = vld.sshfl [vmem:[#allocation1 + $0x20] sm:$0xff pattern:$0x73625140]
        %482 = vst [vmem:[#allocation1] ss:$4 sm:$0xff] %v329
        %483 = vst [vmem:[%s416] ss:$4 sm:$0xff] %v330
        %484 = vst [vmem:[%s418] ss:$4 sm:$0xff] %v211
        %485 = vst [vmem:[%s420] ss:$4 sm:$0xff] %v331
        %486 = vst [vmem:[%s422] ss:$4 sm:$0xff] %v332
        %487 = vst [vmem:[%s424] ss:$4 sm:$0xff] %v333
        %488 = vst [vmem:[%s426] ss:$4 sm:$0xff] %v212
        %489 = vst [vmem:[%s428] ss:$4 sm:$0xff] %v334
        %v490 = vld.sshfl [vmem:[#allocation1] sm:$0xff pattern:$0x73625140]
        %v491 = vld.sshfl [vmem:[#allocation1 + $0x20] sm:$0xff pattern:$0x73625140]
        %492 = vst [vmem:[#allocation1] ss:$4 sm:$0xff] %v335
        %493 = vst [vmem:[%s416] ss:$4 sm:$0xff] %v336
        %494 = vst [vmem:[%s418] ss:$4 sm:$0xff] %v213
        %495 = vst [vmem:[%s420] ss:$4 sm:$0xff] %v337
        %496 = vst [vmem:[%s422] ss:$4 sm:$0xff] %v338
        %497 = vst [vmem:[%s424] ss:$4 sm:$0xff] %v339
        %498 = vst [vmem:[%s426] ss:$4 sm:$0xff] %v214
        %499 = vst [vmem:[%s428] ss:$4 sm:$0xff] %v215
        %v500 = vld.sshfl [vmem:[#allocation1] sm:$0xff pattern:$0x73625140]
        %v501 = vld.sshfl [vmem:[#allocation1 + $0x20] sm:$0xff pattern:$0x73625140]
        %502 = vst [vmem:[#allocation1] ss:$4 sm:$0xff] %v340
        %503 = vst [vmem:[%s416] ss:$4 sm:$0xff] %v341
        %504 = vst [vmem:[%s418] ss:$4 sm:$0xff] %v342
        %505 = vst [vmem:[%s420] ss:$4 sm:$0xff] %v216
        %506 = vst [vmem:[%s422] ss:$4 sm:$0xff] %v343
        %507 = vst [vmem:[%s424] ss:$4 sm:$0xff] %v344
        %508 = vst [vmem:[%s426] ss:$4 sm:$0xff] %v345
        %509 = vst [vmem:[%s428] ss:$4 sm:$0xff] %v217
        %v510 = vld.sshfl [vmem:[#allocation1] sm:$0xff pattern:$0x73625140]
        %v511 = vld.sshfl [vmem:[#allocation1 + $0x20] sm:$0xff pattern:$0x73625140]
        %512 = vst [vmem:[#allocation1] ss:$4 sm:$0xff] %v346
        %513 = vst [vmem:[%s416] ss:$4 sm:$0xff] %v347
        %514 = vst [vmem:[%s418] ss:$4 sm:$0xff] %v348
        %515 = vst [vmem:[%s420] ss:$4 sm:$0xff] %v218
        %516 = vst [vmem:[%s422] ss:$4 sm:$0xff] %v349
        %517 = vst [vmem:[%s424] ss:$4 sm:$0xff] %v350
        %518 = vst [vmem:[%s426] ss:$4 sm:$0xff] %v351
        %519 = vst [vmem:[%s428] ss:$4 sm:$0xff] %v219
        %v520 = vld.sshfl [vmem:[#allocation1] sm:$0xff pattern:$0x73625140]
        %v521 = vld.sshfl [vmem:[#allocation1 + $0x20] sm:$0xff pattern:$0x73625140]
        %522 = vst [vmem:[#allocation1] ss:$4 sm:$0xff] %v352
        %523 = vst [vmem:[%s416] ss:$4 sm:$0xff] %v353
        %524 = vst [vmem:[%s418] ss:$4 sm:$0xff] %v354
        %525 = vst [vmem:[%s420] ss:$4 sm:$0xff] %v220
        %526 = vst [vmem:[%s422] ss:$4 sm:$0xff] %v221
        %527 = vst [vmem:[%s424] ss:$4 sm:$0xff] %v355
        %528 = vst [vmem:[%s426] ss:$4 sm:$0xff] %v356
        %529 = vst [vmem:[%s428] ss:$4 sm:$0xff] %v357
        %v530 = vld.sshfl [vmem:[#allocation1] sm:$0xff pattern:$0x73625140]
        %v531 = vld.sshfl [vmem:[#allocation1 + $0x20] sm:$0xff pattern:$0x73625140]
        %532 = vst [vmem:[#allocation1] ss:$4 sm:$0xff] %v222
        %533 = vst [vmem:[%s416] ss:$4 sm:$0xff] %v358
        %534 = vst [vmem:[%s418] ss:$4 sm:$0xff] %v359
        %535 = vst [vmem:[%s420] ss:$4 sm:$0xff] %v360
        %536 = vst [vmem:[%s422] ss:$4 sm:$0xff] %v223
        %537 = vst [vmem:[%s424] ss:$4 sm:$0xff] %v361
        %538 = vst [vmem:[%s426] ss:$4 sm:$0xff] %v362
        %539 = vst [vmem:[%s428] ss:$4 sm:$0xff] %v363
        %v540 = vld.sshfl [vmem:[#allocation1] sm:$0xff pattern:$0x73625140]
        %v541 = vld.sshfl [vmem:[#allocation1 + $0x20] sm:$0xff pattern:$0x73625140]
        %542 = vst [vmem:[#allocation1] ss:$4 sm:$0xff] %v224
        %543 = vst [vmem:[%s416] ss:$4 sm:$0xff] %v364
        %544 = vst [vmem:[%s418] ss:$4 sm:$0xff] %v365
        %545 = vst [vmem:[%s420] ss:$4 sm:$0xff] %v366
        %546 = vst [vmem:[%s422] ss:$4 sm:$0xff] %v225
        %547 = vst [vmem:[%s424] ss:$4 sm:$0xff] %v367
        %548 = vst [vmem:[%s426] ss:$4 sm:$0xff] %v368
        %549 = vst [vmem:[%s428] ss:$4 sm:$0xff] %v369
        %v550 = vld.sshfl [vmem:[#allocation1] sm:$0xff pattern:$0x73625140]
        %v551 = vld.sshfl [vmem:[#allocation1 + $0x20] sm:$0xff pattern:$0x73625140]
        %552 = vst [vmem:[#allocation1] ss:$4 sm:$0xff] %v226
        %553 = vst [vmem:[%s416] ss:$4 sm:$0xff] %v227
        %554 = vst [vmem:[%s418] ss:$4 sm:$0xff] %v370
        %555 = vst [vmem:[%s420] ss:$4 sm:$0xff] %v371
        %556 = vst [vmem:[%s422] ss:$4 sm:$0xff] %v372
        %557 = vst [vmem:[%s424] ss:$4 sm:$0xff] %v228
        %558 = vst [vmem:[%s426] ss:$4 sm:$0xff] %v373
        %559 = vst [vmem:[%s428] ss:$4 sm:$0xff] %v374
        %v560 = vld.sshfl [vmem:[#allocation1] sm:$0xff pattern:$0x73625140]
        %v561 = vld.sshfl [vmem:[#allocation1 + $0x20] sm:$0xff pattern:$0x73625140]
        %562 = vst [vmem:[#allocation1] ss:$4 sm:$0xff] %v375
        %563 = vst [vmem:[%s416] ss:$4 sm:$0xff] %v229
        %564 = vst [vmem:[%s418] ss:$4 sm:$0xff] %v376
        %565 = vst [vmem:[%s420] ss:$4 sm:$0xff] %v377
        %566 = vst [vmem:[%s422] ss:$4 sm:$0xff] %v378
        %567 = vst [vmem:[%s424] ss:$4 sm:$0xff] %v230
        %568 = vst [vmem:[%s426] ss:$4 sm:$0xff] %v379
        %569 = vst [vmem:[%s428] ss:$4 sm:$0xff] %v380
        %v570 = vld.sshfl [vmem:[#allocation1] sm:$0xff pattern:$0x73625140]
        %v571 = vld.sshfl [vmem:[#allocation1 + $0x20] sm:$0xff pattern:$0x73625140]
        %572 = vst [vmem:[#allocation1] ss:$4 sm:$0xff] %v381
        %573 = vst [vmem:[%s416] ss:$4 sm:$0xff] %v231
        %574 = vst [vmem:[%s418] ss:$4 sm:$0xff] %v382
        %575 = vst [vmem:[%s420] ss:$4 sm:$0xff] %v383
        %576 = vst [vmem:[%s422] ss:$4 sm:$0xff] %v384
        %577 = vst [vmem:[%s424] ss:$4 sm:$0xff] %v232
        %578 = vst [vmem:[%s426] ss:$4 sm:$0xff] %v233
        %579 = vst [vmem:[%s428] ss:$4 sm:$0xff] %v385
        %v580 = vld.sshfl [vmem:[#allocation1] sm:$0xff pattern:$0x73625140]
        %v581 = vld.sshfl [vmem:[#allocation1 + $0x20] sm:$0xff pattern:$0x73625140]
        %582 = vst [vmem:[#allocation1] ss:$4 sm:$0xff] %v386
        %583 = vst [vmem:[%s416] ss:$4 sm:$0xff] %v387
        %584 = vst [vmem:[%s418] ss:$4 sm:$0xff] %v234
        %585 = vst [vmem:[%s420] ss:$4 sm:$0xff] %v388
        %586 = vst [vmem:[%s422] ss:$4 sm:$0xff] %v389
        %587 = vst [vmem:[%s424] ss:$4 sm:$0xff] %v390
        %588 = vst [vmem:[%s426] ss:$4 sm:$0xff] %v235
        %589 = vst [vmem:[%s428] ss:$4 sm:$0xff] %v391
        %v590 = vld.sshfl [vmem:[#allocation1] sm:$0xff pattern:$0x73625140]
        %v591 = vld.sshfl [vmem:[#allocation1 + $0x20] sm:$0xff pattern:$0x73625140]
        %592 = vst [vmem:[#allocation1] ss:$4 sm:$0xff] %v392
        %593 = vst [vmem:[%s416] ss:$4 sm:$0xff] %v393
        %594 = vst [vmem:[%s418] ss:$4 sm:$0xff] %v236
        %595 = vst [vmem:[%s420] ss:$4 sm:$0xff] %v394
        %596 = vst [vmem:[%s422] ss:$4 sm:$0xff] %v395
        %597 = vst [vmem:[%s424] ss:$4 sm:$0xff] %v396
        %598 = vst [vmem:[%s426] ss:$4 sm:$0xff] %v237
        %599 = vst [vmem:[%s428] ss:$4 sm:$0xff] %v397
        %v600 = vld.sshfl [vmem:[#allocation1] sm:$0xff pattern:$0x73625140]
        %v601 = vld.sshfl [vmem:[#allocation1 + $0x20] sm:$0xff pattern:$0x73625140]
        %602 = vst [vmem:[#allocation1] ss:$4 sm:$0xff] %v398
        %603 = vst [vmem:[%s416] ss:$4 sm:$0xff] %v399
        %604 = vst [vmem:[%s418] ss:$4 sm:$0xff] %v238
        %605 = vst [vmem:[%s420] ss:$4 sm:$0xff] %v239
        %606 = vst [vmem:[%s422] ss:$4 sm:$0xff] %v400
        %607 = vst [vmem:[%s424] ss:$4 sm:$0xff] %v401
        %608 = vst [vmem:[%s426] ss:$4 sm:$0xff] %v402
        %609 = vst [vmem:[%s428] ss:$4 sm:$0xff] %v240
        %v610 = vld.sshfl [vmem:[#allocation1] sm:$0xff pattern:$0x73625140]
        %v611 = vld.sshfl [vmem:[#allocation1 + $0x20] sm:$0xff pattern:$0x73625140]
        %612 = vst [vmem:[#allocation1] ss:$4 sm:$0xff] %v403
        %613 = vst [vmem:[%s416] ss:$4 sm:$0xff] %v404
        %614 = vst [vmem:[%s418] ss:$4 sm:$0xff] %v405
        %615 = vst [vmem:[%s420] ss:$4 sm:$0xff] %v241
        %616 = vst [vmem:[%s422] ss:$4 sm:$0xff] %v406
        %617 = vst [vmem:[%s424] ss:$4 sm:$0xff] %v407
        %618 = vst [vmem:[%s426] ss:$4 sm:$0xff] %v408
        %619 = vst [vmem:[%s428] ss:$4 sm:$0xff] %v242
        %v620 = vld.sshfl [vmem:[#allocation1] sm:$0xff pattern:$0x73625140]
        %v621 = vld.sshfl [vmem:[#allocation1 + $0x20] sm:$0xff pattern:$0x73625140]
        %622 = vst [vmem:[#allocation1] ss:$4 sm:$0xff] %v409
        %623 = vst [vmem:[%s416] ss:$4 sm:$0xff] %v410
        %624 = vst [vmem:[%s418] ss:$4 sm:$0xff] %v411
        %625 = vst [vmem:[%s420] ss:$4 sm:$0xff] %v243
        %626 = vst [vmem:[%s422] ss:$4 sm:$0xff] %v412
        %627 = vst [vmem:[%s424] ss:$4 sm:$0xff] %v413
        %628 = vst [vmem:[%s426] ss:$4 sm:$0xff] %v414
        %629 = vst [vmem:[%s428] ss:$4 sm:$0xff] %v244
        %v630 = vld.sshfl [vmem:[#allocation1] sm:$0xff pattern:$0x73625140]
        %v631 = vld.sshfl [vmem:[#allocation1 + $0x20] sm:$0xff pattern:$0x73625140]
        %vm632 = vcmask 72704
        %v633 = vsel %vm632, %v430, 0
        %v635 = vsel %vm632, %v431, 0
        %v637 = vsel %vm632, %v440, 0
        %v639 = vsel %vm632, %v441, 0
        %v641 = vsel %vm632, %v450, 0
        %v643 = vsel %vm632, %v451, 0
        %v645 = vsel %vm632, %v460, 0
        %v647 = vsel %vm632, %v461, 0
        %v649 = vsel %vm632, %v470, 0
        %v651 = vsel %vm632, %v471, 0
        %v653 = vsel %vm632, %v480, 0
        %v655 = vsel %vm632, %v481, 0
        %v657 = vsel %vm632, %v490, 0
        %v659 = vsel %vm632, %v491, 0
        %v661 = vsel %vm632, %v500, 0
        %v663 = vsel %vm632, %v501, 0
        %v665 = vsel %vm632, %v510, 0
        %v667 = vsel %vm632, %v511, 0
        %v669 = vsel %vm632, %v520, 0
        %v671 = vsel %vm632, %v521, 0
        %v673 = vsel %vm632, %v530, 0
        %v675 = vsel %vm632, %v531, 0
        %v677 = vsel %vm632, %v540, 0
        %v679 = vsel %vm632, %v541, 0
        %v681 = vsel %vm632, %v550, 0
        %v683 = vsel %vm632, %v551, 0
        %v685 = vsel %vm632, %v560, 0
        %v687 = vsel %vm632, %v561, 0
        %v689 = vsel %vm632, %v570, 0
        %v691 = vsel %vm632, %v571, 0
        %v693 = vsel %vm632, %v580, 0
        %v695 = vsel %vm632, %v581, 0
        %v697 = vsel %vm632, %v590, 0
        %v699 = vsel %vm632, %v591, 0
        %v701 = vsel %vm632, %v600, 0
        %v703 = vsel %vm632, %v601, 0
        %v705 = vsel %vm632, %v610, 0
        %v707 = vsel %vm632, %v611, 0
        %v709 = vsel %vm632, %v620, 0
        %v711 = vsel %vm632, %v621, 0
        %v713 = vsel %vm632, %v630, 0
        %v715 = vsel %vm632, %v631, 0
        %vm717 = vcmask 1040384
        %v719 = vsel %vm717, %v246, 0
        %721 = vmatpush.msra.mxu0 0.0
        %722 = vmatpush.msra.mxu0 0.0
        %723 = vmatpush.msra.mxu0 0.0
        %724 = vmatpush.msra.mxu0 0.0
        %725 = vmatpush.msra.mxu0 0.0
        %726 = vmatpush.msra.mxu0 0.0
        %727 = vmatpush.msra.mxu0 0.0
        %728 = vmatpush.msra.mxu0 0.0
        %729 = vmatpush.msra.mxu0 0.0
        %730 = vmatpush.msra.mxu0 0.0
        %731 = vmatpush.msra.mxu0 0.0
        %732 = vmatpush.msra.mxu0 0.0
        %733 = vmatpush.msra.mxu0 0.0
        %734 = vmatpush.msra.mxu0 0.0
        %735 = vmatpush.msra.mxu0 %v719
        %736 = vmatpush.msra.mxu0 %v245
        %737 = vmatmul.f32.gmra.mxu0 %v633
        %v738 = vpop.f32.mrf.mxu0
        %v739 = vadd.f32 0.0, %v738
        %740 = vmatmul.f32.gmra.mxu0 %v635
        %v741 = vpop.f32.mrf.mxu0
        %v742 = vadd.f32 0.0, %v741
        %743 = vmatmul.f32.gmra.mxu0 %v637
        %v744 = vpop.f32.mrf.mxu0
        %v745 = vadd.f32 0.0, %v744
        %746 = vmatmul.f32.gmra.mxu0 %v639
        %v747 = vpop.f32.mrf.mxu0
        %v748 = vadd.f32 0.0, %v747
        %749 = vmatmul.f32.gmra.mxu0 %v641
        %v750 = vpop.f32.mrf.mxu0
        %v751 = vadd.f32 0.0, %v750
        %752 = vmatmul.f32.gmra.mxu0 %v643
        %v753 = vpop.f32.mrf.mxu0
        %v754 = vadd.f32 0.0, %v753
        %755 = vmatmul.f32.gmra.mxu0 %v645
        %v756 = vpop.f32.mrf.mxu0
        %v757 = vadd.f32 0.0, %v756
        %758 = vmatmul.f32.gmra.mxu0 %v647
        %v759 = vpop.f32.mrf.mxu0
        %v760 = vadd.f32 0.0, %v759
        %761 = vmatmul.f32.gmra.mxu0 %v649
        %v762 = vpop.f32.mrf.mxu0
        %v763 = vadd.f32 0.0, %v762
        %764 = vmatmul.f32.gmra.mxu0 %v651
        %v765 = vpop.f32.mrf.mxu0
        %v766 = vadd.f32 0.0, %v765
        %767 = vmatmul.f32.gmra.mxu0 %v653
        %v768 = vpop.f32.mrf.mxu0
        %v769 = vadd.f32 0.0, %v768
        %770 = vmatmul.f32.gmra.mxu0 %v655
        %v771 = vpop.f32.mrf.mxu0
        %v772 = vadd.f32 0.0, %v771
        %773 = vmatmul.f32.gmra.mxu0 %v657
        %v774 = vpop.f32.mrf.mxu0
        %v775 = vadd.f32 0.0, %v774
        %776 = vmatmul.f32.gmra.mxu0 %v659
        %v777 = vpop.f32.mrf.mxu0
        %v778 = vadd.f32 0.0, %v777
        %779 = vmatmul.f32.gmra.mxu0 %v661
        %v780 = vpop.f32.mrf.mxu0
        %v781 = vadd.f32 0.0, %v780
        %782 = vmatmul.f32.gmra.mxu0 %v663
        %v783 = vpop.f32.mrf.mxu0
        %v784 = vadd.f32 0.0, %v783
        %785 = vmatmul.f32.gmra.mxu0 %v665
        %v786 = vpop.f32.mrf.mxu0
        %v787 = vadd.f32 0.0, %v786
        %788 = vmatmul.f32.gmra.mxu0 %v667
        %v789 = vpop.f32.mrf.mxu0
        %v790 = vadd.f32 0.0, %v789
        %791 = vmatmul.f32.gmra.mxu0 %v669
        %v792 = vpop.f32.mrf.mxu0
        %v793 = vadd.f32 0.0, %v792
        %794 = vmatmul.f32.gmra.mxu0 %v671
        %v795 = vpop.f32.mrf.mxu0
        %v796 = vadd.f32 0.0, %v795
        %797 = vmatmul.f32.gmra.mxu0 %v673
        %v798 = vpop.f32.mrf.mxu0
        %v799 = vadd.f32 0.0, %v798
        %800 = vmatmul.f32.gmra.mxu0 %v675
        %v801 = vpop.f32.mrf.mxu0
        %v802 = vadd.f32 0.0, %v801
        %803 = vmatmul.f32.gmra.mxu0 %v677
        %v804 = vpop.f32.mrf.mxu0
        %v805 = vadd.f32 0.0, %v804
        %806 = vmatmul.f32.gmra.mxu0 %v679
        %v807 = vpop.f32.mrf.mxu0
        %v808 = vadd.f32 0.0, %v807
        %809 = vmatmul.f32.gmra.mxu0 %v681
        %v810 = vpop.f32.mrf.mxu0
        %v811 = vadd.f32 0.0, %v810
        %812 = vmatmul.f32.gmra.mxu0 %v683
        %v813 = vpop.f32.mrf.mxu0
        %v814 = vadd.f32 0.0, %v813
        %815 = vmatmul.f32.gmra.mxu0 %v685
        %v816 = vpop.f32.mrf.mxu0
        %v817 = vadd.f32 0.0, %v816
        %818 = vmatmul.f32.gmra.mxu0 %v687
        %v819 = vpop.f32.mrf.mxu0
        %v820 = vadd.f32 0.0, %v819
        %821 = vmatmul.f32.gmra.mxu0 %v689
        %v822 = vpop.f32.mrf.mxu0
        %v823 = vadd.f32 0.0, %v822
        %824 = vmatmul.f32.gmra.mxu0 %v691
        %v825 = vpop.f32.mrf.mxu0
        %v826 = vadd.f32 0.0, %v825
        %827 = vmatmul.f32.gmra.mxu0 %v693
        %v828 = vpop.f32.mrf.mxu0
        %v829 = vadd.f32 0.0, %v828
        %830 = vmatmul.f32.gmra.mxu0 %v695
        %v831 = vpop.f32.mrf.mxu0
        %v832 = vadd.f32 0.0, %v831
        %833 = vmatmul.f32.gmra.mxu0 %v697
        %v834 = vpop.f32.mrf.mxu0
        %v835 = vadd.f32 0.0, %v834
        %836 = vmatmul.f32.gmra.mxu0 %v699
        %v837 = vpop.f32.mrf.mxu0
        %v838 = vadd.f32 0.0, %v837
        %839 = vmatmul.f32.gmra.mxu0 %v701
        %v840 = vpop.f32.mrf.mxu0
        %v841 = vadd.f32 0.0, %v840
        %842 = vmatmul.f32.gmra.mxu0 %v703
        %v843 = vpop.f32.mrf.mxu0
        %v844 = vadd.f32 0.0, %v843
        %845 = vmatmul.f32.gmra.mxu0 %v705
        %v846 = vpop.f32.mrf.mxu0
        %v847 = vadd.f32 0.0, %v846
        %848 = vmatmul.f32.gmra.mxu0 %v707
        %v849 = vpop.f32.mrf.mxu0
        %v850 = vadd.f32 0.0, %v849
        %851 = vmatmul.f32.gmra.mxu0 %v709
        %v852 = vpop.f32.mrf.mxu0
        %v853 = vadd.f32 0.0, %v852
        %854 = vmatmul.f32.gmra.mxu0 %v711
        %v855 = vpop.f32.mrf.mxu0
        %v856 = vadd.f32 0.0, %v855
        %857 = vmatmul.f32.gmra.mxu0 %v713
        %v858 = vpop.f32.mrf.mxu0
        %v859 = vadd.f32 0.0, %v858
        %860 = vmatmul.f32.gmra.mxu0 %v715
        %v861 = vpop.f32.mrf.mxu0
        %v862 = vadd.f32 0.0, %v861
        %863 = vdwg.mxu0
        %v912 = vrot.slane %v147, 2
        %v913 = vrot.slane %v147, 4
        %v914 = vrot.slane %v147, 6
        %v915 = vrot.slane %v148, 2
        %v916 = vrot.slane %v148, 4
        %v917 = vrot.slane %v148, 6
        %v918 = vrot.slane %v149, 2
        %v919 = vrot.slane %v149, 4
        %v920 = vrot.slane %v149, 6
        %v921 = vrot.slane %v150, 2
        %v922 = vrot.slane %v150, 4
        %v923 = vrot.slane %v150, 6
        %v924 = vrot.slane %v151, 2
        %v925 = vrot.slane %v151, 4
        %v926 = vrot.slane %v151, 6
        %v927 = vrot.slane %v153, 2
        %v928 = vrot.slane %v153, 4
        %v929 = vrot.slane %v153, 6
        %v930 = vrot.slane %v154, 2
        %v931 = vrot.slane %v154, 4
        %v932 = vrot.slane %v154, 6
        %v933 = vrot.slane %v155, 2
        %v934 = vrot.slane %v155, 4
        %v935 = vrot.slane %v155, 6
        %v936 = vrot.slane %v156, 2
        %v937 = vrot.slane %v156, 4
        %v938 = vrot.slane %v156, 6
        %v939 = vrot.slane %v157, 2
        %v940 = vrot.slane %v157, 4
        %v941 = vrot.slane %v157, 6
        %v942 = vrot.slane %v159, 2
        %v943 = vrot.slane %v159, 4
        %v944 = vrot.slane %v159, 6
        %v945 = vrot.slane %v160, 2
        %v946 = vrot.slane %v160, 4
        %v947 = vrot.slane %v160, 6
        %v948 = vrot.slane %v161, 2
        %v949 = vrot.slane %v161, 4
        %v950 = vrot.slane %v161, 6
        %v951 = vrot.slane %v162, 2
        %v952 = vrot.slane %v162, 4
        %v953 = vrot.slane %v162, 6
        %v954 = vrot.slane %v163, 2
        %v955 = vrot.slane %v163, 4
        %v956 = vrot.slane %v163, 6
        %v957 = vrot.slane %v165, 2
        %v958 = vrot.slane %v165, 4
        %v959 = vrot.slane %v165, 6
        %v960 = vrot.slane %v166, 2
        %v961 = vrot.slane %v166, 4
        %v962 = vrot.slane %v166, 6
        %v963 = vrot.slane %v167, 2
        %v964 = vrot.slane %v167, 4
        %v965 = vrot.slane %v167, 6
        %v966 = vrot.slane %v168, 2
        %v967 = vrot.slane %v168, 4
        %v968 = vrot.slane %v168, 6
        %v969 = vrot.slane %v169, 2
        %v970 = vrot.slane %v169, 4
        %v971 = vrot.slane %v169, 6
        %v972 = vrot.slane %v171, 2
        %v973 = vrot.slane %v171, 4
        %v974 = vrot.slane %v171, 6
        %v975 = vrot.slane %v172, 2
        %v976 = vrot.slane %v172, 4
        %v977 = vrot.slane %v172, 6
        %v978 = vrot.slane %v173, 2
        %v979 = vrot.slane %v173, 4
        %v980 = vrot.slane %v173, 6
        %v981 = vrot.slane %v174, 2
        %v982 = vrot.slane %v174, 4
        %v983 = vrot.slane %v174, 6
        %v984 = vrot.slane %v175, 2
        %v985 = vrot.slane %v175, 4
        %v986 = vrot.slane %v175, 6
        %v987 = vrot.slane %v177, 2
        %v988 = vrot.slane %v177, 4
        %v989 = vrot.slane %v177, 6
        %v990 = vrot.slane %v178, 2
        %v991 = vrot.slane %v178, 4
        %v992 = vrot.slane %v178, 6
        %v993 = vrot.slane %v179, 2
        %v994 = vrot.slane %v179, 4
        %v995 = vrot.slane %v179, 6
        %v996 = vrot.slane %v180, 2
        %v997 = vrot.slane %v180, 4
        %v998 = vrot.slane %v180, 6
        %v999 = vrot.slane %v181, 2
        %v1000 = vrot.slane %v181, 4
        %v1001 = vrot.slane %v181, 6
        %v1002 = vrot.slane %v183, 2
        %v1003 = vrot.slane %v183, 4
        %v1004 = vrot.slane %v183, 6
        %v1005 = vrot.slane %v184, 2
        %v1006 = vrot.slane %v184, 4
        %v1007 = vrot.slane %v184, 6
        %v1008 = vrot.slane %v185, 2
        %v1009 = vrot.slane %v185, 4
        %v1010 = vrot.slane %v185, 6
        %v1011 = vrot.slane %v186, 2
        %v1012 = vrot.slane %v186, 4
        %v1013 = vrot.slane %v186, 6
        %v1014 = vrot.slane %v187, 2
        %v1015 = vrot.slane %v187, 4
        %v1016 = vrot.slane %v187, 6
        %v1017 = vrot.slane %v189, 2
        %v1018 = vrot.slane %v189, 4
        %v1019 = vrot.slane %v189, 6
        %v1020 = vrot.slane %v190, 2
        %v1021 = vrot.slane %v190, 4
        %v1022 = vrot.slane %v190, 6
        %v1023 = vrot.slane %v191, 2
        %v1024 = vrot.slane %v191, 4
        %v1025 = vrot.slane %v191, 6
        %v1026 = vrot.slane %v192, 2
        %v1027 = vrot.slane %v192, 4
        %v1028 = vrot.slane %v192, 6
        %v1029 = vrot.slane %v193, 2
        %v1030 = vrot.slane %v193, 4
        %v1031 = vrot.slane %v193, 6
        %1032 = vst [vmem:[#allocation1] ss:$4 sm:$0xff] %v147
        %s1033 = scalar_lea.vmem [#allocation1], 1
        %1034 = vst [vmem:[%s1033] ss:$4 sm:$0xff] %v912
        %s1035 = scalar_lea.vmem [#allocation1], 2
        %1036 = vst [vmem:[%s1035] ss:$4 sm:$0xff] %v913
        %s1037 = scalar_lea.vmem [#allocation1], 3
        %1038 = vst [vmem:[%s1037] ss:$4 sm:$0xff] %v914
        %s1039 = scalar_lea.vmem [#allocation1], 32
        %1040 = vst [vmem:[%s1039] ss:$4 sm:$0xff] %v148
        %s1041 = scalar_lea.vmem [#allocation1], 33
        %1042 = vst [vmem:[%s1041] ss:$4 sm:$0xff] %v915
        %s1043 = scalar_lea.vmem [#allocation1], 34
        %1044 = vst [vmem:[%s1043] ss:$4 sm:$0xff] %v916
        %s1045 = scalar_lea.vmem [#allocation1], 35
        %1046 = vst [vmem:[%s1045] ss:$4 sm:$0xff] %v917
        %v1047 = vld.sshfl [vmem:[#allocation1] sm:$0xff pattern:$0x73625140]
        %v1048 = vld.sshfl [vmem:[#allocation1 + $0x20] sm:$0xff pattern:$0x73625140]
        %1049 = vst [vmem:[#allocation1] ss:$4 sm:$0xff] %v149
        %1050 = vst [vmem:[%s1033] ss:$4 sm:$0xff] %v918
        %1051 = vst [vmem:[%s1035] ss:$4 sm:$0xff] %v919
        %1052 = vst [vmem:[%s1037] ss:$4 sm:$0xff] %v920
        %1053 = vst [vmem:[%s1039] ss:$4 sm:$0xff] %v150
        %1054 = vst [vmem:[%s1041] ss:$4 sm:$0xff] %v921
        %1055 = vst [vmem:[%s1043] ss:$4 sm:$0xff] %v922
        %1056 = vst [vmem:[%s1045] ss:$4 sm:$0xff] %v923
        %v1057 = vld.sshfl [vmem:[#allocation1] sm:$0xff pattern:$0x73625140]
        %v1058 = vld.sshfl [vmem:[#allocation1 + $0x20] sm:$0xff pattern:$0x73625140]
        %1059 = vst [vmem:[#allocation1] ss:$4 sm:$0xff] %v151
        %1060 = vst [vmem:[%s1033] ss:$4 sm:$0xff] %v924
        %1061 = vst [vmem:[%s1035] ss:$4 sm:$0xff] %v925
        %1062 = vst [vmem:[%s1037] ss:$4 sm:$0xff] %v926
        %1063 = vst [vmem:[%s1039] ss:$4 sm:$0xff] %v152
        %1064 = vst [vmem:[%s1041] ss:$4 sm:$0xff] %v153
        %1065 = vst [vmem:[%s1043] ss:$4 sm:$0xff] %v927
        %1066 = vst [vmem:[%s1045] ss:$4 sm:$0xff] %v928
        %v1067 = vld.sshfl [vmem:[#allocation1] sm:$0xff pattern:$0x73625140]
        %v1068 = vld.sshfl [vmem:[#allocation1 + $0x20] sm:$0xff pattern:$0x73625140]
        %1069 = vst [vmem:[#allocation1] ss:$4 sm:$0xff] %v929
        %1070 = vst [vmem:[%s1033] ss:$4 sm:$0xff] %v154
        %1071 = vst [vmem:[%s1035] ss:$4 sm:$0xff] %v930
        %1072 = vst [vmem:[%s1037] ss:$4 sm:$0xff] %v931
        %1073 = vst [vmem:[%s1039] ss:$4 sm:$0xff] %v932
        %1074 = vst [vmem:[%s1041] ss:$4 sm:$0xff] %v155
        %1075 = vst [vmem:[%s1043] ss:$4 sm:$0xff] %v933
        %1076 = vst [vmem:[%s1045] ss:$4 sm:$0xff] %v934
        %v1077 = vld.sshfl [vmem:[#allocation1] sm:$0xff pattern:$0x73625140]
        %v1078 = vld.sshfl [vmem:[#allocation1 + $0x20] sm:$0xff pattern:$0x73625140]
        %1079 = vst [vmem:[#allocation1] ss:$4 sm:$0xff] %v935
        %1080 = vst [vmem:[%s1033] ss:$4 sm:$0xff] %v156
        %1081 = vst [vmem:[%s1035] ss:$4 sm:$0xff] %v936
        %1082 = vst [vmem:[%s1037] ss:$4 sm:$0xff] %v937
        %1083 = vst [vmem:[%s1039] ss:$4 sm:$0xff] %v938
        %1084 = vst [vmem:[%s1041] ss:$4 sm:$0xff] %v157
        %1085 = vst [vmem:[%s1043] ss:$4 sm:$0xff] %v939
        %1086 = vst [vmem:[%s1045] ss:$4 sm:$0xff] %v940
        %v1087 = vld.sshfl [vmem:[#allocation1] sm:$0xff pattern:$0x73625140]
        %v1088 = vld.sshfl [vmem:[#allocation1 + $0x20] sm:$0xff pattern:$0x73625140]
        %1089 = vst [vmem:[#allocation1] ss:$4 sm:$0xff] %v941
        %1090 = vst [vmem:[%s1033] ss:$4 sm:$0xff] %v158
        %1091 = vst [vmem:[%s1035] ss:$4 sm:$0xff] %v159
        %1092 = vst [vmem:[%s1037] ss:$4 sm:$0xff] %v942
        %1093 = vst [vmem:[%s1039] ss:$4 sm:$0xff] %v943
        %1094 = vst [vmem:[%s1041] ss:$4 sm:$0xff] %v944
        %1095 = vst [vmem:[%s1043] ss:$4 sm:$0xff] %v160
        %1096 = vst [vmem:[%s1045] ss:$4 sm:$0xff] %v945
        %v1097 = vld.sshfl [vmem:[#allocation1] sm:$0xff pattern:$0x73625140]
        %v1098 = vld.sshfl [vmem:[#allocation1 + $0x20] sm:$0xff pattern:$0x73625140]
        %1099 = vst [vmem:[#allocation1] ss:$4 sm:$0xff] %v946
        %1100 = vst [vmem:[%s1033] ss:$4 sm:$0xff] %v947
        %1101 = vst [vmem:[%s1035] ss:$4 sm:$0xff] %v161
        %1102 = vst [vmem:[%s1037] ss:$4 sm:$0xff] %v948
        %1103 = vst [vmem:[%s1039] ss:$4 sm:$0xff] %v949
        %1104 = vst [vmem:[%s1041] ss:$4 sm:$0xff] %v950
        %1105 = vst [vmem:[%s1043] ss:$4 sm:$0xff] %v162
        %1106 = vst [vmem:[%s1045] ss:$4 sm:$0xff] %v951
        %v1107 = vld.sshfl [vmem:[#allocation1] sm:$0xff pattern:$0x73625140]
        %v1108 = vld.sshfl [vmem:[#allocation1 + $0x20] sm:$0xff pattern:$0x73625140]
        %1109 = vst [vmem:[#allocation1] ss:$4 sm:$0xff] %v952
        %1110 = vst [vmem:[%s1033] ss:$4 sm:$0xff] %v953
        %1111 = vst [vmem:[%s1035] ss:$4 sm:$0xff] %v163
        %1112 = vst [vmem:[%s1037] ss:$4 sm:$0xff] %v954
        %1113 = vst [vmem:[%s1039] ss:$4 sm:$0xff] %v955
        %1114 = vst [vmem:[%s1041] ss:$4 sm:$0xff] %v956
        %1115 = vst [vmem:[%s1043] ss:$4 sm:$0xff] %v164
        %1116 = vst [vmem:[%s1045] ss:$4 sm:$0xff] %v165
        %v1117 = vld.sshfl [vmem:[#allocation1] sm:$0xff pattern:$0x73625140]
        %v1118 = vld.sshfl [vmem:[#allocation1 + $0x20] sm:$0xff pattern:$0x73625140]
        %1119 = vst [vmem:[#allocation1] ss:$4 sm:$0xff] %v957
        %1120 = vst [vmem:[%s1033] ss:$4 sm:$0xff] %v958
        %1121 = vst [vmem:[%s1035] ss:$4 sm:$0xff] %v959
        %1122 = vst [vmem:[%s1037] ss:$4 sm:$0xff] %v166
        %1123 = vst [vmem:[%s1039] ss:$4 sm:$0xff] %v960
        %1124 = vst [vmem:[%s1041] ss:$4 sm:$0xff] %v961
        %1125 = vst [vmem:[%s1043] ss:$4 sm:$0xff] %v962
        %1126 = vst [vmem:[%s1045] ss:$4 sm:$0xff] %v167
        %v1127 = vld.sshfl [vmem:[#allocation1] sm:$0xff pattern:$0x73625140]
        %v1128 = vld.sshfl [vmem:[#allocation1 + $0x20] sm:$0xff pattern:$0x73625140]
        %1129 = vst [vmem:[#allocation1] ss:$4 sm:$0xff] %v963
        %1130 = vst [vmem:[%s1033] ss:$4 sm:$0xff] %v964
        %1131 = vst [vmem:[%s1035] ss:$4 sm:$0xff] %v965
        %1132 = vst [vmem:[%s1037] ss:$4 sm:$0xff] %v168
        %1133 = vst [vmem:[%s1039] ss:$4 sm:$0xff] %v966
        %1134 = vst [vmem:[%s1041] ss:$4 sm:$0xff] %v967
        %1135 = vst [vmem:[%s1043] ss:$4 sm:$0xff] %v968
        %1136 = vst [vmem:[%s1045] ss:$4 sm:$0xff] %v169
        %v1137 = vld.sshfl [vmem:[#allocation1] sm:$0xff pattern:$0x73625140]
        %v1138 = vld.sshfl [vmem:[#allocation1 + $0x20] sm:$0xff pattern:$0x73625140]
        %1139 = vst [vmem:[#allocation1] ss:$4 sm:$0xff] %v969
        %1140 = vst [vmem:[%s1033] ss:$4 sm:$0xff] %v970
        %1141 = vst [vmem:[%s1035] ss:$4 sm:$0xff] %v971
        %1142 = vst [vmem:[%s1037] ss:$4 sm:$0xff] %v170
        %1143 = vst [vmem:[%s1039] ss:$4 sm:$0xff] %v171
        %1144 = vst [vmem:[%s1041] ss:$4 sm:$0xff] %v972
        %1145 = vst [vmem:[%s1043] ss:$4 sm:$0xff] %v973
        %1146 = vst [vmem:[%s1045] ss:$4 sm:$0xff] %v974
        %v1147 = vld.sshfl [vmem:[#allocation1] sm:$0xff pattern:$0x73625140]
        %v1148 = vld.sshfl [vmem:[#allocation1 + $0x20] sm:$0xff pattern:$0x73625140]
        %1149 = vst [vmem:[#allocation1] ss:$4 sm:$0xff] %v172
        %1150 = vst [vmem:[%s1033] ss:$4 sm:$0xff] %v975
        %1151 = vst [vmem:[%s1035] ss:$4 sm:$0xff] %v976
        %1152 = vst [vmem:[%s1037] ss:$4 sm:$0xff] %v977
        %1153 = vst [vmem:[%s1039] ss:$4 sm:$0xff] %v173
        %1154 = vst [vmem:[%s1041] ss:$4 sm:$0xff] %v978
        %1155 = vst [vmem:[%s1043] ss:$4 sm:$0xff] %v979
        %1156 = vst [vmem:[%s1045] ss:$4 sm:$0xff] %v980
        %v1157 = vld.sshfl [vmem:[#allocation1] sm:$0xff pattern:$0x73625140]
        %v1158 = vld.sshfl [vmem:[#allocation1 + $0x20] sm:$0xff pattern:$0x73625140]
        %1159 = vst [vmem:[#allocation1] ss:$4 sm:$0xff] %v174
        %1160 = vst [vmem:[%s1033] ss:$4 sm:$0xff] %v981
        %1161 = vst [vmem:[%s1035] ss:$4 sm:$0xff] %v982
        %1162 = vst [vmem:[%s1037] ss:$4 sm:$0xff] %v983
        %1163 = vst [vmem:[%s1039] ss:$4 sm:$0xff] %v175
        %1164 = vst [vmem:[%s1041] ss:$4 sm:$0xff] %v984
        %1165 = vst [vmem:[%s1043] ss:$4 sm:$0xff] %v985
        %1166 = vst [vmem:[%s1045] ss:$4 sm:$0xff] %v986
        %v1167 = vld.sshfl [vmem:[#allocation1] sm:$0xff pattern:$0x73625140]
        %v1168 = vld.sshfl [vmem:[#allocation1 + $0x20] sm:$0xff pattern:$0x73625140]
        %1169 = vst [vmem:[#allocation1] ss:$4 sm:$0xff] %v176
        %1170 = vst [vmem:[%s1033] ss:$4 sm:$0xff] %v177
        %1171 = vst [vmem:[%s1035] ss:$4 sm:$0xff] %v987
        %1172 = vst [vmem:[%s1037] ss:$4 sm:$0xff] %v988
        %1173 = vst [vmem:[%s1039] ss:$4 sm:$0xff] %v989
        %1174 = vst [vmem:[%s1041] ss:$4 sm:$0xff] %v178
        %1175 = vst [vmem:[%s1043] ss:$4 sm:$0xff] %v990
        %1176 = vst [vmem:[%s1045] ss:$4 sm:$0xff] %v991
        %v1177 = vld.sshfl [vmem:[#allocation1] sm:$0xff pattern:$0x73625140]
        %v1178 = vld.sshfl [vmem:[#allocation1 + $0x20] sm:$0xff pattern:$0x73625140]
        %1179 = vst [vmem:[#allocation1] ss:$4 sm:$0xff] %v992
        %1180 = vst [vmem:[%s1033] ss:$4 sm:$0xff] %v179
        %1181 = vst [vmem:[%s1035] ss:$4 sm:$0xff] %v993
        %1182 = vst [vmem:[%s1037] ss:$4 sm:$0xff] %v994
        %1183 = vst [vmem:[%s1039] ss:$4 sm:$0xff] %v995
        %1184 = vst [vmem:[%s1041] ss:$4 sm:$0xff] %v180
        %1185 = vst [vmem:[%s1043] ss:$4 sm:$0xff] %v996
        %1186 = vst [vmem:[%s1045] ss:$4 sm:$0xff] %v997
        %v1187 = vld.sshfl [vmem:[#allocation1] sm:$0xff pattern:$0x73625140]
        %v1188 = vld.sshfl [vmem:[#allocation1 + $0x20] sm:$0xff pattern:$0x73625140]
        %1189 = vst [vmem:[#allocation1] ss:$4 sm:$0xff] %v998
        %1190 = vst [vmem:[%s1033] ss:$4 sm:$0xff] %v181
        %1191 = vst [vmem:[%s1035] ss:$4 sm:$0xff] %v999
        %1192 = vst [vmem:[%s1037] ss:$4 sm:$0xff] %v1000
        %1193 = vst [vmem:[%s1039] ss:$4 sm:$0xff] %v1001
        %1194 = vst [vmem:[%s1041] ss:$4 sm:$0xff] %v182
        %1195 = vst [vmem:[%s1043] ss:$4 sm:$0xff] %v183
        %1196 = vst [vmem:[%s1045] ss:$4 sm:$0xff] %v1002
        %v1197 = vld.sshfl [vmem:[#allocation1] sm:$0xff pattern:$0x73625140]
        %v1198 = vld.sshfl [vmem:[#allocation1 + $0x20] sm:$0xff pattern:$0x73625140]
        %1199 = vst [vmem:[#allocation1] ss:$4 sm:$0xff] %v1003
        %1200 = vst [vmem:[%s1033] ss:$4 sm:$0xff] %v1004
        %1201 = vst [vmem:[%s1035] ss:$4 sm:$0xff] %v184
        %1202 = vst [vmem:[%s1037] ss:$4 sm:$0xff] %v1005
        %1203 = vst [vmem:[%s1039] ss:$4 sm:$0xff] %v1006
        %1204 = vst [vmem:[%s1041] ss:$4 sm:$0xff] %v1007
        %1205 = vst [vmem:[%s1043] ss:$4 sm:$0xff] %v185
        %1206 = vst [vmem:[%s1045] ss:$4 sm:$0xff] %v1008
        %v1207 = vld.sshfl [vmem:[#allocation1] sm:$0xff pattern:$0x73625140]
        %v1208 = vld.sshfl [vmem:[#allocation1 + $0x20] sm:$0xff pattern:$0x73625140]
        %1209 = vst [vmem:[#allocation1] ss:$4 sm:$0xff] %v1009
        %1210 = vst [vmem:[%s1033] ss:$4 sm:$0xff] %v1010
        %1211 = vst [vmem:[%s1035] ss:$4 sm:$0xff] %v186
        %1212 = vst [vmem:[%s1037] ss:$4 sm:$0xff] %v1011
        %1213 = vst [vmem:[%s1039] ss:$4 sm:$0xff] %v1012
        %1214 = vst [vmem:[%s1041] ss:$4 sm:$0xff] %v1013
        %1215 = vst [vmem:[%s1043] ss:$4 sm:$0xff] %v187
        %1216 = vst [vmem:[%s1045] ss:$4 sm:$0xff] %v1014
        %v1217 = vld.sshfl [vmem:[#allocation1] sm:$0xff pattern:$0x73625140]
        %v1218 = vld.sshfl [vmem:[#allocation1 + $0x20] sm:$0xff pattern:$0x73625140]
        %1219 = vst [vmem:[#allocation1] ss:$4 sm:$0xff] %v1015
        %1220 = vst [vmem:[%s1033] ss:$4 sm:$0xff] %v1016
        %1221 = vst [vmem:[%s1035] ss:$4 sm:$0xff] %v188
        %1222 = vst [vmem:[%s1037] ss:$4 sm:$0xff] %v189
        %1223 = vst [vmem:[%s1039] ss:$4 sm:$0xff] %v1017
        %1224 = vst [vmem:[%s1041] ss:$4 sm:$0xff] %v1018
        %1225 = vst [vmem:[%s1043] ss:$4 sm:$0xff] %v1019
        %1226 = vst [vmem:[%s1045] ss:$4 sm:$0xff] %v190
        %v1227 = vld.sshfl [vmem:[#allocation1] sm:$0xff pattern:$0x73625140]
        %v1228 = vld.sshfl [vmem:[#allocation1 + $0x20] sm:$0xff pattern:$0x73625140]
        %1229 = vst [vmem:[#allocation1] ss:$4 sm:$0xff] %v1020
        %1230 = vst [vmem:[%s1033] ss:$4 sm:$0xff] %v1021
        %1231 = vst [vmem:[%s1035] ss:$4 sm:$0xff] %v1022
        %1232 = vst [vmem:[%s1037] ss:$4 sm:$0xff] %v191
        %1233 = vst [vmem:[%s1039] ss:$4 sm:$0xff] %v1023
        %1234 = vst [vmem:[%s1041] ss:$4 sm:$0xff] %v1024
        %1235 = vst [vmem:[%s1043] ss:$4 sm:$0xff] %v1025
        %1236 = vst [vmem:[%s1045] ss:$4 sm:$0xff] %v192
        %v1237 = vld.sshfl [vmem:[#allocation1] sm:$0xff pattern:$0x73625140]
        %v1238 = vld.sshfl [vmem:[#allocation1 + $0x20] sm:$0xff pattern:$0x73625140]
        %1239 = vst [vmem:[#allocation1] ss:$4 sm:$0xff] %v1026
        %1240 = vst [vmem:[%s1033] ss:$4 sm:$0xff] %v1027
        %1241 = vst [vmem:[%s1035] ss:$4 sm:$0xff] %v1028
        %1242 = vst [vmem:[%s1037] ss:$4 sm:$0xff] %v193
        %1243 = vst [vmem:[%s1039] ss:$4 sm:$0xff] %v1029
        %1244 = vst [vmem:[%s1041] ss:$4 sm:$0xff] %v1030
        %1245 = vst [vmem:[%s1043] ss:$4 sm:$0xff] %v1031
        %1246 = vst [vmem:[%s1045] ss:$4 sm:$0xff] %v194
        %v1247 = vld.sshfl [vmem:[#allocation1] sm:$0xff pattern:$0x73625140]
        %v1248 = vld.sshfl [vmem:[#allocation1 + $0x20] sm:$0xff pattern:$0x73625140]
        %v1249 = vsel %vm632, %v1047, 0
        %v1251 = vsel %vm632, %v1048, 0
        %v1253 = vsel %vm632, %v1057, 0
        %v1255 = vsel %vm632, %v1058, 0
        %v1257 = vsel %vm632, %v1067, 0
        %v1259 = vsel %vm632, %v1068, 0
        %v1261 = vsel %vm632, %v1077, 0
        %v1263 = vsel %vm632, %v1078, 0
        %v1265 = vsel %vm632, %v1087, 0
        %v1267 = vsel %vm632, %v1088, 0
        %v1269 = vsel %vm632, %v1097, 0
        %v1271 = vsel %vm632, %v1098, 0
        %v1273 = vsel %vm632, %v1107, 0
        %v1275 = vsel %vm632, %v1108, 0
        %v1277 = vsel %vm632, %v1117, 0
        %v1279 = vsel %vm632, %v1118, 0
        %v1281 = vsel %vm632, %v1127, 0
        %v1283 = vsel %vm632, %v1128, 0
        %v1285 = vsel %vm632, %v1137, 0
        %v1287 = vsel %vm632, %v1138, 0
        %v1289 = vsel %vm632, %v1147, 0
        %v1291 = vsel %vm632, %v1148, 0
        %v1293 = vsel %vm632, %v1157, 0
        %v1295 = vsel %vm632, %v1158, 0
        %v1297 = vsel %vm632, %v1167, 0
        %v1299 = vsel %vm632, %v1168, 0
        %v1301 = vsel %vm632, %v1177, 0
        %v1303 = vsel %vm632, %v1178, 0
        %v1305 = vsel %vm632, %v1187, 0
        %v1307 = vsel %vm632, %v1188, 0
        %v1309 = vsel %vm632, %v1197, 0
        %v1311 = vsel %vm632, %v1198, 0
        %v1313 = vsel %vm632, %v1207, 0
        %v1315 = vsel %vm632, %v1208, 0
        %v1317 = vsel %vm632, %v1217, 0
        %v1319 = vsel %vm632, %v1218, 0
        %v1321 = vsel %vm632, %v1227, 0
        %v1323 = vsel %vm632, %v1228, 0
        %v1325 = vsel %vm632, %v1237, 0
        %v1327 = vsel %vm632, %v1238, 0
        %v1329 = vsel %vm632, %v1247, 0
        %v1331 = vsel %vm632, %v1248, 0
        %v1334 = vsel %vm717, %v196, 0
        %1336 = vmatpush.msra.mxu0 0.0
        %1337 = vmatpush.msra.mxu0 0.0
        %1338 = vmatpush.msra.mxu0 0.0
        %1339 = vmatpush.msra.mxu0 0.0
        %1340 = vmatpush.msra.mxu0 0.0
        %1341 = vmatpush.msra.mxu0 0.0
        %1342 = vmatpush.msra.mxu0 0.0
        %1343 = vmatpush.msra.mxu0 0.0
        %1344 = vmatpush.msra.mxu0 0.0
        %1345 = vmatpush.msra.mxu0 0.0
        %1346 = vmatpush.msra.mxu0 0.0
        %1347 = vmatpush.msra.mxu0 0.0
        %1348 = vmatpush.msra.mxu0 0.0
        %1349 = vmatpush.msra.mxu0 0.0
        %1350 = vmatpush.msra.mxu0 %v1334
        %1351 = vmatpush.msra.mxu0 %v195
        %1352 = vmatmul.f32.gmra.mxu0 %v1249
        %v1353 = vpop.f32.mrf.mxu0
        %v1354 = vadd.f32 %v739, %v1353
        %1355 = vmatmul.f32.gmra.mxu0 %v1251
        %v1356 = vpop.f32.mrf.mxu0
        %v1357 = vadd.f32 %v742, %v1356
        %1358 = vmatmul.f32.gmra.mxu0 %v1253
        %v1359 = vpop.f32.mrf.mxu0
        %v1360 = vadd.f32 %v745, %v1359
        %1361 = vmatmul.f32.gmra.mxu0 %v1255
        %v1362 = vpop.f32.mrf.mxu0
        %v1363 = vadd.f32 %v748, %v1362
        %1364 = vmatmul.f32.gmra.mxu0 %v1257
        %v1365 = vpop.f32.mrf.mxu0
        %v1366 = vadd.f32 %v751, %v1365
        %1367 = vmatmul.f32.gmra.mxu0 %v1259
        %v1368 = vpop.f32.mrf.mxu0
        %v1369 = vadd.f32 %v754, %v1368
        %1370 = vmatmul.f32.gmra.mxu0 %v1261
        %v1371 = vpop.f32.mrf.mxu0
        %v1372 = vadd.f32 %v757, %v1371
        %1373 = vmatmul.f32.gmra.mxu0 %v1263
        %v1374 = vpop.f32.mrf.mxu0
        %v1375 = vadd.f32 %v760, %v1374
        %1376 = vmatmul.f32.gmra.mxu0 %v1265
        %v1377 = vpop.f32.mrf.mxu0
        %v1378 = vadd.f32 %v763, %v1377
        %1379 = vmatmul.f32.gmra.mxu0 %v1267
        %v1380 = vpop.f32.mrf.mxu0
        %v1381 = vadd.f32 %v766, %v1380
        %1382 = vmatmul.f32.gmra.mxu0 %v1269
        %v1383 = vpop.f32.mrf.mxu0
        %v1384 = vadd.f32 %v769, %v1383
        %1385 = vmatmul.f32.gmra.mxu0 %v1271
        %v1386 = vpop.f32.mrf.mxu0
        %v1387 = vadd.f32 %v772, %v1386
        %1388 = vmatmul.f32.gmra.mxu0 %v1273
        %v1389 = vpop.f32.mrf.mxu0
        %v1390 = vadd.f32 %v775, %v1389
        %1391 = vmatmul.f32.gmra.mxu0 %v1275
        %v1392 = vpop.f32.mrf.mxu0
        %v1393 = vadd.f32 %v778, %v1392
        %1394 = vmatmul.f32.gmra.mxu0 %v1277
        %v1395 = vpop.f32.mrf.mxu0
        %v1396 = vadd.f32 %v781, %v1395
        %1397 = vmatmul.f32.gmra.mxu0 %v1279
        %v1398 = vpop.f32.mrf.mxu0
        %v1399 = vadd.f32 %v784, %v1398
        %1400 = vmatmul.f32.gmra.mxu0 %v1281
        %v1401 = vpop.f32.mrf.mxu0
        %v1402 = vadd.f32 %v787, %v1401
        %1403 = vmatmul.f32.gmra.mxu0 %v1283
        %v1404 = vpop.f32.mrf.mxu0
        %v1405 = vadd.f32 %v790, %v1404
        %1406 = vmatmul.f32.gmra.mxu0 %v1285
        %v1407 = vpop.f32.mrf.mxu0
        %v1408 = vadd.f32 %v793, %v1407
        %1409 = vmatmul.f32.gmra.mxu0 %v1287
        %v1410 = vpop.f32.mrf.mxu0
        %v1411 = vadd.f32 %v796, %v1410
        %1412 = vmatmul.f32.gmra.mxu0 %v1289
        %v1413 = vpop.f32.mrf.mxu0
        %v1414 = vadd.f32 %v799, %v1413
        %1415 = vmatmul.f32.gmra.mxu0 %v1291
        %v1416 = vpop.f32.mrf.mxu0
        %v1417 = vadd.f32 %v802, %v1416
        %1418 = vmatmul.f32.gmra.mxu0 %v1293
        %v1419 = vpop.f32.mrf.mxu0
        %v1420 = vadd.f32 %v805, %v1419
        %1421 = vmatmul.f32.gmra.mxu0 %v1295
        %v1422 = vpop.f32.mrf.mxu0
        %v1423 = vadd.f32 %v808, %v1422
        %1424 = vmatmul.f32.gmra.mxu0 %v1297
        %v1425 = vpop.f32.mrf.mxu0
        %v1426 = vadd.f32 %v811, %v1425
        %1427 = vmatmul.f32.gmra.mxu0 %v1299
        %v1428 = vpop.f32.mrf.mxu0
        %v1429 = vadd.f32 %v814, %v1428
        %1430 = vmatmul.f32.gmra.mxu0 %v1301
        %v1431 = vpop.f32.mrf.mxu0
        %v1432 = vadd.f32 %v817, %v1431
        %1433 = vmatmul.f32.gmra.mxu0 %v1303
        %v1434 = vpop.f32.mrf.mxu0
        %v1435 = vadd.f32 %v820, %v1434
        %1436 = vmatmul.f32.gmra.mxu0 %v1305
        %v1437 = vpop.f32.mrf.mxu0
        %v1438 = vadd.f32 %v823, %v1437
        %1439 = vmatmul.f32.gmra.mxu0 %v1307
        %v1440 = vpop.f32.mrf.mxu0
        %v1441 = vadd.f32 %v826, %v1440
        %1442 = vmatmul.f32.gmra.mxu0 %v1309
        %v1443 = vpop.f32.mrf.mxu0
        %v1444 = vadd.f32 %v829, %v1443
        %1445 = vmatmul.f32.gmra.mxu0 %v1311
        %v1446 = vpop.f32.mrf.mxu0
        %v1447 = vadd.f32 %v832, %v1446
        %1448 = vmatmul.f32.gmra.mxu0 %v1313
        %v1449 = vpop.f32.mrf.mxu0
        %v1450 = vadd.f32 %v835, %v1449
        %1451 = vmatmul.f32.gmra.mxu0 %v1315
        %v1452 = vpop.f32.mrf.mxu0
        %v1453 = vadd.f32 %v838, %v1452
        %1454 = vmatmul.f32.gmra.mxu0 %v1317
        %v1455 = vpop.f32.mrf.mxu0
        %v1456 = vadd.f32 %v841, %v1455
        %1457 = vmatmul.f32.gmra.mxu0 %v1319
        %v1458 = vpop.f32.mrf.mxu0
        %v1459 = vadd.f32 %v844, %v1458
        %1460 = vmatmul.f32.gmra.mxu0 %v1321
        %v1461 = vpop.f32.mrf.mxu0
        %v1462 = vadd.f32 %v847, %v1461
        %1463 = vmatmul.f32.gmra.mxu0 %v1323
        %v1464 = vpop.f32.mrf.mxu0
        %v1465 = vadd.f32 %v850, %v1464
        %1466 = vmatmul.f32.gmra.mxu0 %v1325
        %v1467 = vpop.f32.mrf.mxu0
        %v1468 = vadd.f32 %v853, %v1467
        %1469 = vmatmul.f32.gmra.mxu0 %v1327
        %v1470 = vpop.f32.mrf.mxu0
        %v1471 = vadd.f32 %v856, %v1470
        %1472 = vmatmul.f32.gmra.mxu0 %v1329
        %v1473 = vpop.f32.mrf.mxu0
        %v1474 = vadd.f32 %v859, %v1473
        %1475 = vmatmul.f32.gmra.mxu0 %v1331
        %v1476 = vpop.f32.mrf.mxu0
        %v1477 = vadd.f32 %v862, %v1476
        %1478 = vdwg.mxu0
        %v1521 = vrot.slane %v1354, 2
        %v1522 = vrot.slane %v1354, 4
        %v1523 = vrot.slane %v1354, 6
        %v1524 = vrot.slane %v1357, 2
        %v1525 = vrot.slane %v1357, 4
        %v1526 = vrot.slane %v1357, 6
        %v1527 = vrot.slane %v1360, 2
        %v1528 = vrot.slane %v1360, 4
        %v1529 = vrot.slane %v1360, 6
        %v1530 = vrot.slane %v1363, 2
        %v1531 = vrot.slane %v1363, 4
        %v1532 = vrot.slane %v1363, 6
        %v1533 = vrot.slane %v1366, 2
        %v1534 = vrot.slane %v1366, 4
        %v1535 = vrot.slane %v1366, 6
        %v1536 = vrot.slane %v1369, 2
        %v1537 = vrot.slane %v1369, 4
        %v1538 = vrot.slane %v1369, 6
        %v1539 = vrot.slane %v1372, 2
        %v1540 = vrot.slane %v1372, 4
        %v1541 = vrot.slane %v1372, 6
        %v1542 = vrot.slane %v1375, 2
        %v1543 = vrot.slane %v1375, 4
        %v1544 = vrot.slane %v1375, 6
        %v1545 = vrot.slane %v1378, 2
        %v1546 = vrot.slane %v1378, 4
        %v1547 = vrot.slane %v1378, 6
        %v1548 = vrot.slane %v1381, 2
        %v1549 = vrot.slane %v1381, 4
        %v1550 = vrot.slane %v1381, 6
        %v1551 = vrot.slane %v1384, 2
        %v1552 = vrot.slane %v1384, 4
        %v1553 = vrot.slane %v1384, 6
        %v1554 = vrot.slane %v1387, 2
        %v1555 = vrot.slane %v1387, 4
        %v1556 = vrot.slane %v1387, 6
        %v1557 = vrot.slane %v1390, 2
        %v1558 = vrot.slane %v1390, 4
        %v1559 = vrot.slane %v1390, 6
        %v1560 = vrot.slane %v1393, 2
        %v1561 = vrot.slane %v1393, 4
        %v1562 = vrot.slane %v1393, 6
        %v1563 = vrot.slane %v1396, 2
        %v1564 = vrot.slane %v1396, 4
        %v1565 = vrot.slane %v1396, 6
        %v1566 = vrot.slane %v1399, 2
        %v1567 = vrot.slane %v1399, 4
        %v1568 = vrot.slane %v1399, 6
        %v1569 = vrot.slane %v1402, 2
        %v1570 = vrot.slane %v1402, 4
        %v1571 = vrot.slane %v1402, 6
        %v1572 = vrot.slane %v1405, 2
        %v1573 = vrot.slane %v1405, 4
        %v1574 = vrot.slane %v1405, 6
        %v1575 = vrot.slane %v1408, 2
        %v1576 = vrot.slane %v1408, 4
        %v1577 = vrot.slane %v1408, 6
        %v1578 = vrot.slane %v1411, 2
        %v1579 = vrot.slane %v1411, 4
        %v1580 = vrot.slane %v1411, 6
        %v1581 = vrot.slane %v1414, 2
        %v1582 = vrot.slane %v1414, 4
        %v1583 = vrot.slane %v1414, 6
        %v1584 = vrot.slane %v1417, 2
        %v1585 = vrot.slane %v1417, 4
        %v1586 = vrot.slane %v1417, 6
        %v1587 = vrot.slane %v1420, 2
        %v1588 = vrot.slane %v1420, 4
        %v1589 = vrot.slane %v1420, 6
        %v1590 = vrot.slane %v1423, 2
        %v1591 = vrot.slane %v1423, 4
        %v1592 = vrot.slane %v1423, 6
        %v1593 = vrot.slane %v1426, 2
        %v1594 = vrot.slane %v1426, 4
        %v1595 = vrot.slane %v1426, 6
        %v1596 = vrot.slane %v1429, 2
        %v1597 = vrot.slane %v1429, 4
        %v1598 = vrot.slane %v1429, 6
        %v1599 = vrot.slane %v1432, 2
        %v1600 = vrot.slane %v1432, 4
        %v1601 = vrot.slane %v1432, 6
        %v1602 = vrot.slane %v1435, 2
        %v1603 = vrot.slane %v1435, 4
        %v1604 = vrot.slane %v1435, 6
        %v1605 = vrot.slane %v1438, 2
        %v1606 = vrot.slane %v1438, 4
        %v1607 = vrot.slane %v1438, 6
        %v1608 = vrot.slane %v1441, 2
        %v1609 = vrot.slane %v1441, 4
        %v1610 = vrot.slane %v1441, 6
        %v1611 = vrot.slane %v1444, 2
        %v1612 = vrot.slane %v1444, 4
        %v1613 = vrot.slane %v1444, 6
        %v1614 = vrot.slane %v1447, 2
        %v1615 = vrot.slane %v1447, 4
        %v1616 = vrot.slane %v1447, 6
        %v1617 = vrot.slane %v1450, 2
        %v1618 = vrot.slane %v1450, 4
        %v1619 = vrot.slane %v1450, 6
        %v1620 = vrot.slane %v1453, 2
        %v1621 = vrot.slane %v1453, 4
        %v1622 = vrot.slane %v1453, 6
        %v1623 = vrot.slane %v1456, 2
        %v1624 = vrot.slane %v1456, 4
        %v1625 = vrot.slane %v1456, 6
        %v1626 = vrot.slane %v1459, 2
        %v1627 = vrot.slane %v1459, 4
        %v1628 = vrot.slane %v1459, 6
        %v1629 = vrot.slane %v1462, 2
        %v1630 = vrot.slane %v1462, 4
        %v1631 = vrot.slane %v1462, 6
        %v1632 = vrot.slane %v1465, 2
        %v1633 = vrot.slane %v1465, 4
        %v1634 = vrot.slane %v1465, 6
        %v1635 = vrot.slane %v1468, 2
        %v1636 = vrot.slane %v1468, 4
        %v1637 = vrot.slane %v1468, 6
        %v1638 = vrot.slane %v1471, 2
        %v1639 = vrot.slane %v1471, 4
        %v1640 = vrot.slane %v1471, 6
        %v1641 = vrot.slane %v1474, 2
        %v1642 = vrot.slane %v1474, 4
        %v1643 = vrot.slane %v1474, 6
        %v1644 = vrot.slane %v1477, 2
        %v1645 = vrot.slane %v1477, 4
        %v1646 = vrot.slane %v1477, 6
        %v1773 = vld [vmem:[%s145 + $0x2] sm:$0xff]
        %v1774 = vld [vmem:[%s145 + $0xa] sm:$0xff]
        %v1775 = vld [vmem:[%s145 + $0x12] sm:$0xff]
        %v1776 = vld [vmem:[%s145 + $0x1a] sm:$0xff]
        %v1777 = vld [vmem:[%s145 + $0x22] sm:$0xff]
        %v1778 = vld [vmem:[%s145 + $0x2a] sm:$0x3]
        %v1779 = vld [vmem:[%s145 + $0x32] sm:$0xff]
        %v1780 = vld [vmem:[%s145 + $0x3a] sm:$0xff]
        %v1781 = vld [vmem:[%s145 + $0x42] sm:$0xff]
        %v1782 = vld [vmem:[%s145 + $0x4a] sm:$0xff]
        %v1783 = vld [vmem:[%s145 + $0x52] sm:$0xff]
        %v1784 = vld [vmem:[%s145 + $0x5a] sm:$0x3]
        %v1785 = vld [vmem:[%s145 + $0x62] sm:$0xff]
        %v1786 = vld [vmem:[%s145 + $0x6a] sm:$0xff]
        %v1787 = vld [vmem:[%s145 + $0x72] sm:$0xff]
        %v1788 = vld [vmem:[%s145 + $0x7a] sm:$0xff]
        %v1789 = vld [vmem:[%s145 + $0x82] sm:$0xff]
        %v1790 = vld [vmem:[%s145 + $0x8a] sm:$0x3]
        %v1791 = vld [vmem:[%s145 + $0x92] sm:$0xff]
        %v1792 = vld [vmem:[%s145 + $0x9a] sm:$0xff]
        %v1793 = vld [vmem:[%s145 + $0xa2] sm:$0xff]
        %v1794 = vld [vmem:[%s145 + $0xaa] sm:$0xff]
        %v1795 = vld [vmem:[%s145 + $0xb2] sm:$0xff]
        %v1796 = vld [vmem:[%s145 + $0xba] sm:$0x3]
        %v1797 = vld [vmem:[%s145 + $0xc2] sm:$0xff]
        %v1798 = vld [vmem:[%s145 + $0xca] sm:$0xff]
        %v1799 = vld [vmem:[%s145 + $0xd2] sm:$0xff]
        %v1800 = vld [vmem:[%s145 + $0xda] sm:$0xff]
        %v1801 = vld [vmem:[%s145 + $0xe2] sm:$0xff]
        %v1802 = vld [vmem:[%s145 + $0xea] sm:$0x3]
        %v1803 = vld [vmem:[%s145 + $0xf2] sm:$0xff]
        %v1804 = vld [vmem:[%s145 + $0xfa] sm:$0xff]
        %v1805 = vld [vmem:[%s145 + $0x102] sm:$0xff]
        %v1806 = vld [vmem:[%s145 + $0x10a] sm:$0xff]
        %v1807 = vld [vmem:[%s145 + $0x112] sm:$0xff]
        %v1808 = vld [vmem:[%s145 + $0x11a] sm:$0x3]
        %v1809 = vld [vmem:[%s145 + $0x122] sm:$0xff]
        %v1810 = vld [vmem:[%s145 + $0x12a] sm:$0xff]
        %v1811 = vld [vmem:[%s145 + $0x132] sm:$0xff]
        %v1812 = vld [vmem:[%s145 + $0x13a] sm:$0xff]
        %v1813 = vld [vmem:[%s145 + $0x142] sm:$0xff]
        %v1814 = vld [vmem:[%s145 + $0x14a] sm:$0x3]
        %v1815 = vld [vmem:[%s145 + $0x152] sm:$0xff]
        %v1816 = vld [vmem:[%s145 + $0x15a] sm:$0xff]
        %v1817 = vld [vmem:[%s145 + $0x162] sm:$0xff]
        %v1818 = vld [vmem:[%s145 + $0x16a] sm:$0xff]
        %v1819 = vld [vmem:[%s145 + $0x172] sm:$0xff]
        %v1820 = vld [vmem:[%s145 + $0x17a] sm:$0x3]
        %v1821 = vld [vmem:[%s1 + $0x20] sm:$0xff]
        %v1822 = vld [vmem:[%s1 + $0x28] sm:$0x1]
        %v1871 = vrot.slane %v1773, 2
        %v1872 = vrot.slane %v1773, 4
        %v1873 = vrot.slane %v1773, 6
        %v1874 = vrot.slane %v1774, 2
        %v1875 = vrot.slane %v1774, 4
        %v1876 = vrot.slane %v1774, 6
        %v1877 = vrot.slane %v1775, 2
        %v1878 = vrot.slane %v1775, 4
        %v1879 = vrot.slane %v1775, 6
        %v1880 = vrot.slane %v1776, 2
        %v1881 = vrot.slane %v1776, 4
        %v1882 = vrot.slane %v1776, 6
        %v1883 = vrot.slane %v1777, 2
        %v1884 = vrot.slane %v1777, 4
        %v1885 = vrot.slane %v1777, 6
        %v1886 = vrot.slane %v1779, 2
        %v1887 = vrot.slane %v1779, 4
        %v1888 = vrot.slane %v1779, 6
        %v1889 = vrot.slane %v1780, 2
        %v1890 = vrot.slane %v1780, 4
        %v1891 = vrot.slane %v1780, 6
        %v1892 = vrot.slane %v1781, 2
        %v1893 = vrot.slane %v1781, 4
        %v1894 = vrot.slane %v1781, 6
        %v1895 = vrot.slane %v1782, 2
        %v1896 = vrot.slane %v1782, 4
        %v1897 = vrot.slane %v1782, 6
        %v1898 = vrot.slane %v1783, 2
        %v1899 = vrot.slane %v1783, 4
        %v1900 = vrot.slane %v1783, 6
        %v1901 = vrot.slane %v1785, 2
        %v1902 = vrot.slane %v1785, 4
        %v1903 = vrot.slane %v1785, 6
        %v1904 = vrot.slane %v1786, 2
        %v1905 = vrot.slane %v1786, 4
        %v1906 = vrot.slane %v1786, 6
        %v1907 = vrot.slane %v1787, 2
        %v1908 = vrot.slane %v1787, 4
        %v1909 = vrot.slane %v1787, 6
        %v1910 = vrot.slane %v1788, 2
        %v1911 = vrot.slane %v1788, 4
        %v1912 = vrot.slane %v1788, 6
        %v1913 = vrot.slane %v1789, 2
        %v1914 = vrot.slane %v1789, 4
        %v1915 = vrot.slane %v1789, 6
        %v1916 = vrot.slane %v1791, 2
        %v1917 = vrot.slane %v1791, 4
        %v1918 = vrot.slane %v1791, 6
        %v1919 = vrot.slane %v1792, 2
        %v1920 = vrot.slane %v1792, 4
        %v1921 = vrot.slane %v1792, 6
        %v1922 = vrot.slane %v1793, 2
        %v1923 = vrot.slane %v1793, 4
        %v1924 = vrot.slane %v1793, 6
        %v1925 = vrot.slane %v1794, 2
        %v1926 = vrot.slane %v1794, 4
        %v1927 = vrot.slane %v1794, 6
        %v1928 = vrot.slane %v1795, 2
        %v1929 = vrot.slane %v1795, 4
        %v1930 = vrot.slane %v1795, 6
        %v1931 = vrot.slane %v1797, 2
        %v1932 = vrot.slane %v1797, 4
        %v1933 = vrot.slane %v1797, 6
        %v1934 = vrot.slane %v1798, 2
        %v1935 = vrot.slane %v1798, 4
        %v1936 = vrot.slane %v1798, 6
        %v1937 = vrot.slane %v1799, 2
        %v1938 = vrot.slane %v1799, 4
        %v1939 = vrot.slane %v1799, 6
        %v1940 = vrot.slane %v1800, 2
        %v1941 = vrot.slane %v1800, 4
        %v1942 = vrot.slane %v1800, 6
        %v1943 = vrot.slane %v1801, 2
        %v1944 = vrot.slane %v1801, 4
        %v1945 = vrot.slane %v1801, 6
        %v1946 = vrot.slane %v1803, 2
        %v1947 = vrot.slane %v1803, 4
        %v1948 = vrot.slane %v1803, 6
        %v1949 = vrot.slane %v1804, 2
        %v1950 = vrot.slane %v1804, 4
        %v1951 = vrot.slane %v1804, 6
        %v1952 = vrot.slane %v1805, 2
        %v1953 = vrot.slane %v1805, 4
        %v1954 = vrot.slane %v1805, 6
        %v1955 = vrot.slane %v1806, 2
        %v1956 = vrot.slane %v1806, 4
        %v1957 = vrot.slane %v1806, 6
        %v1958 = vrot.slane %v1807, 2
        %v1959 = vrot.slane %v1807, 4
        %v1960 = vrot.slane %v1807, 6
        %v1961 = vrot.slane %v1809, 2
        %v1962 = vrot.slane %v1809, 4
        %v1963 = vrot.slane %v1809, 6
        %v1964 = vrot.slane %v1810, 2
        %v1965 = vrot.slane %v1810, 4
        %v1966 = vrot.slane %v1810, 6
        %v1967 = vrot.slane %v1811, 2
        %v1968 = vrot.slane %v1811, 4
        %v1969 = vrot.slane %v1811, 6
        %v1970 = vrot.slane %v1812, 2
        %v1971 = vrot.slane %v1812, 4
        %v1972 = vrot.slane %v1812, 6
        %v1973 = vrot.slane %v1813, 2
        %v1974 = vrot.slane %v1813, 4
        %v1975 = vrot.slane %v1813, 6
        %v1976 = vrot.slane %v1815, 2
        %v1977 = vrot.slane %v1815, 4
        %v1978 = vrot.slane %v1815, 6
        %v1979 = vrot.slane %v1816, 2
        %v1980 = vrot.slane %v1816, 4
        %v1981 = vrot.slane %v1816, 6
        %v1982 = vrot.slane %v1817, 2
        %v1983 = vrot.slane %v1817, 4
        %v1984 = vrot.slane %v1817, 6
        %v1985 = vrot.slane %v1818, 2
        %v1986 = vrot.slane %v1818, 4
        %v1987 = vrot.slane %v1818, 6
        %v1988 = vrot.slane %v1819, 2
        %v1989 = vrot.slane %v1819, 4
        %v1990 = vrot.slane %v1819, 6
        %1991 = vst [vmem:[#allocation1] ss:$4 sm:$0xff] %v1773
        %s1992 = scalar_lea.vmem [#allocation1], 1
        %1993 = vst [vmem:[%s1992] ss:$4 sm:$0xff] %v1871
        %s1994 = scalar_lea.vmem [#allocation1], 2
        %1995 = vst [vmem:[%s1994] ss:$4 sm:$0xff] %v1872
        %s1996 = scalar_lea.vmem [#allocation1], 3
        %1997 = vst [vmem:[%s1996] ss:$4 sm:$0xff] %v1873
        %s1998 = scalar_lea.vmem [#allocation1], 32
        %1999 = vst [vmem:[%s1998] ss:$4 sm:$0xff] %v1774
        %s2000 = scalar_lea.vmem [#allocation1], 33
        %2001 = vst [vmem:[%s2000] ss:$4 sm:$0xff] %v1874
        %s2002 = scalar_lea.vmem [#allocation1], 34
        %2003 = vst [vmem:[%s2002] ss:$4 sm:$0xff] %v1875
        %s2004 = scalar_lea.vmem [#allocation1], 35
        %2005 = vst [vmem:[%s2004] ss:$4 sm:$0xff] %v1876
        %v2006 = vld.sshfl [vmem:[#allocation1] sm:$0xff pattern:$0x73625140]
        %v2007 = vld.sshfl [vmem:[#allocation1 + $0x20] sm:$0xff pattern:$0x73625140]
        %2008 = vst [vmem:[#allocation1] ss:$4 sm:$0xff] %v1775
        %2009 = vst [vmem:[%s1992] ss:$4 sm:$0xff] %v1877
        %2010 = vst [vmem:[%s1994] ss:$4 sm:$0xff] %v1878
        %2011 = vst [vmem:[%s1996] ss:$4 sm:$0xff] %v1879
        %2012 = vst [vmem:[%s1998] ss:$4 sm:$0xff] %v1776
        %2013 = vst [vmem:[%s2000] ss:$4 sm:$0xff] %v1880
        %2014 = vst [vmem:[%s2002] ss:$4 sm:$0xff] %v1881
        %2015 = vst [vmem:[%s2004] ss:$4 sm:$0xff] %v1882
        %v2016 = vld.sshfl [vmem:[#allocation1] sm:$0xff pattern:$0x73625140]
        %v2017 = vld.sshfl [vmem:[#allocation1 + $0x20] sm:$0xff pattern:$0x73625140]
        %2018 = vst [vmem:[#allocation1] ss:$4 sm:$0xff] %v1777
        %2019 = vst [vmem:[%s1992] ss:$4 sm:$0xff] %v1883
        %2020 = vst [vmem:[%s1994] ss:$4 sm:$0xff] %v1884
        %2021 = vst [vmem:[%s1996] ss:$4 sm:$0xff] %v1885
        %2022 = vst [vmem:[%s1998] ss:$4 sm:$0xff] %v1778
        %2023 = vst [vmem:[%s2000] ss:$4 sm:$0xff] %v1779
        %2024 = vst [vmem:[%s2002] ss:$4 sm:$0xff] %v1886
        %2025 = vst [vmem:[%s2004] ss:$4 sm:$0xff] %v1887
        %v2026 = vld.sshfl [vmem:[#allocation1] sm:$0xff pattern:$0x73625140]
        %v2027 = vld.sshfl [vmem:[#allocation1 + $0x20] sm:$0xff pattern:$0x73625140]
        %2028 = vst [vmem:[#allocation1] ss:$4 sm:$0xff] %v1888
        %2029 = vst [vmem:[%s1992] ss:$4 sm:$0xff] %v1780
        %2030 = vst [vmem:[%s1994] ss:$4 sm:$0xff] %v1889
        %2031 = vst [vmem:[%s1996] ss:$4 sm:$0xff] %v1890
        %2032 = vst [vmem:[%s1998] ss:$4 sm:$0xff] %v1891
        %2033 = vst [vmem:[%s2000] ss:$4 sm:$0xff] %v1781
        %2034 = vst [vmem:[%s2002] ss:$4 sm:$0xff] %v1892
        %2035 = vst [vmem:[%s2004] ss:$4 sm:$0xff] %v1893
        %v2036 = vld.sshfl [vmem:[#allocation1] sm:$0xff pattern:$0x73625140]
        %v2037 = vld.sshfl [vmem:[#allocation1 + $0x20] sm:$0xff pattern:$0x73625140]
        %2038 = vst [vmem:[#allocation1] ss:$4 sm:$0xff] %v1894
        %2039 = vst [vmem:[%s1992] ss:$4 sm:$0xff] %v1782
        %2040 = vst [vmem:[%s1994] ss:$4 sm:$0xff] %v1895
        %2041 = vst [vmem:[%s1996] ss:$4 sm:$0xff] %v1896
        %2042 = vst [vmem:[%s1998] ss:$4 sm:$0xff] %v1897
        %2043 = vst [vmem:[%s2000] ss:$4 sm:$0xff] %v1783
        %2044 = vst [vmem:[%s2002] ss:$4 sm:$0xff] %v1898
        %2045 = vst [vmem:[%s2004] ss:$4 sm:$0xff] %v1899
        %v2046 = vld.sshfl [vmem:[#allocation1] sm:$0xff pattern:$0x73625140]
        %v2047 = vld.sshfl [vmem:[#allocation1 + $0x20] sm:$0xff pattern:$0x73625140]
        %2048 = vst [vmem:[#allocation1] ss:$4 sm:$0xff] %v1900
        %2049 = vst [vmem:[%s1992] ss:$4 sm:$0xff] %v1784
        %2050 = vst [vmem:[%s1994] ss:$4 sm:$0xff] %v1785
        %2051 = vst [vmem:[%s1996] ss:$4 sm:$0xff] %v1901
        %2052 = vst [vmem:[%s1998] ss:$4 sm:$0xff] %v1902
        %2053 = vst [vmem:[%s2000] ss:$4 sm:$0xff] %v1903
        %2054 = vst [vmem:[%s2002] ss:$4 sm:$0xff] %v1786
        %2055 = vst [vmem:[%s2004] ss:$4 sm:$0xff] %v1904
        %v2056 = vld.sshfl [vmem:[#allocation1] sm:$0xff pattern:$0x73625140]
        %v2057 = vld.sshfl [vmem:[#allocation1 + $0x20] sm:$0xff pattern:$0x73625140]
        %2058 = vst [vmem:[#allocation1] ss:$4 sm:$0xff] %v1905
        %2059 = vst [vmem:[%s1992] ss:$4 sm:$0xff] %v1906
        %2060 = vst [vmem:[%s1994] ss:$4 sm:$0xff] %v1787
        %2061 = vst [vmem:[%s1996] ss:$4 sm:$0xff] %v1907
        %2062 = vst [vmem:[%s1998] ss:$4 sm:$0xff] %v1908
        %2063 = vst [vmem:[%s2000] ss:$4 sm:$0xff] %v1909
        %2064 = vst [vmem:[%s2002] ss:$4 sm:$0xff] %v1788
        %2065 = vst [vmem:[%s2004] ss:$4 sm:$0xff] %v1910
        %v2066 = vld.sshfl [vmem:[#allocation1] sm:$0xff pattern:$0x73625140]
        %v2067 = vld.sshfl [vmem:[#allocation1 + $0x20] sm:$0xff pattern:$0x73625140]
        %2068 = vst [vmem:[#allocation1] ss:$4 sm:$0xff] %v1911
        %2069 = vst [vmem:[%s1992] ss:$4 sm:$0xff] %v1912
        %2070 = vst [vmem:[%s1994] ss:$4 sm:$0xff] %v1789
        %2071 = vst [vmem:[%s1996] ss:$4 sm:$0xff] %v1913
        %2072 = vst [vmem:[%s1998] ss:$4 sm:$0xff] %v1914
        %2073 = vst [vmem:[%s2000] ss:$4 sm:$0xff] %v1915
        %2074 = vst [vmem:[%s2002] ss:$4 sm:$0xff] %v1790
        %2075 = vst [vmem:[%s2004] ss:$4 sm:$0xff] %v1791
        %v2076 = vld.sshfl [vmem:[#allocation1] sm:$0xff pattern:$0x73625140]
        %v2077 = vld.sshfl [vmem:[#allocation1 + $0x20] sm:$0xff pattern:$0x73625140]
        %2078 = vst [vmem:[#allocation1] ss:$4 sm:$0xff] %v1916
        %2079 = vst [vmem:[%s1992] ss:$4 sm:$0xff] %v1917
        %2080 = vst [vmem:[%s1994] ss:$4 sm:$0xff] %v1918
        %2081 = vst [vmem:[%s1996] ss:$4 sm:$0xff] %v1792
        %2082 = vst [vmem:[%s1998] ss:$4 sm:$0xff] %v1919
        %2083 = vst [vmem:[%s2000] ss:$4 sm:$0xff] %v1920
        %2084 = vst [vmem:[%s2002] ss:$4 sm:$0xff] %v1921
        %2085 = vst [vmem:[%s2004] ss:$4 sm:$0xff] %v1793
        %v2086 = vld.sshfl [vmem:[#allocation1] sm:$0xff pattern:$0x73625140]
        %v2087 = vld.sshfl [vmem:[#allocation1 + $0x20] sm:$0xff pattern:$0x73625140]
        %2088 = vst [vmem:[#allocation1] ss:$4 sm:$0xff] %v1922
        %2089 = vst [vmem:[%s1992] ss:$4 sm:$0xff] %v1923
        %2090 = vst [vmem:[%s1994] ss:$4 sm:$0xff] %v1924
        %2091 = vst [vmem:[%s1996] ss:$4 sm:$0xff] %v1794
        %2092 = vst [vmem:[%s1998] ss:$4 sm:$0xff] %v1925
        %2093 = vst [vmem:[%s2000] ss:$4 sm:$0xff] %v1926
        %2094 = vst [vmem:[%s2002] ss:$4 sm:$0xff] %v1927
        %2095 = vst [vmem:[%s2004] ss:$4 sm:$0xff] %v1795
        %v2096 = vld.sshfl [vmem:[#allocation1] sm:$0xff pattern:$0x73625140]
        %v2097 = vld.sshfl [vmem:[#allocation1 + $0x20] sm:$0xff pattern:$0x73625140]
        %2098 = vst [vmem:[#allocation1] ss:$4 sm:$0xff] %v1928
        %2099 = vst [vmem:[%s1992] ss:$4 sm:$0xff] %v1929
        %2100 = vst [vmem:[%s1994] ss:$4 sm:$0xff] %v1930
        %2101 = vst [vmem:[%s1996] ss:$4 sm:$0xff] %v1796
        %2102 = vst [vmem:[%s1998] ss:$4 sm:$0xff] %v1797
        %2103 = vst [vmem:[%s2000] ss:$4 sm:$0xff] %v1931
        %2104 = vst [vmem:[%s2002] ss:$4 sm:$0xff] %v1932
        %2105 = vst [vmem:[%s2004] ss:$4 sm:$0xff] %v1933
        %v2106 = vld.sshfl [vmem:[#allocation1] sm:$0xff pattern:$0x73625140]
        %v2107 = vld.sshfl [vmem:[#allocation1 + $0x20] sm:$0xff pattern:$0x73625140]
        %2108 = vst [vmem:[#allocation1] ss:$4 sm:$0xff] %v1798
        %2109 = vst [vmem:[%s1992] ss:$4 sm:$0xff] %v1934
        %2110 = vst [vmem:[%s1994] ss:$4 sm:$0xff] %v1935
        %2111 = vst [vmem:[%s1996] ss:$4 sm:$0xff] %v1936
        %2112 = vst [vmem:[%s1998] ss:$4 sm:$0xff] %v1799
        %2113 = vst [vmem:[%s2000] ss:$4 sm:$0xff] %v1937
        %2114 = vst [vmem:[%s2002] ss:$4 sm:$0xff] %v1938
        %2115 = vst [vmem:[%s2004] ss:$4 sm:$0xff] %v1939
        %v2116 = vld.sshfl [vmem:[#allocation1] sm:$0xff pattern:$0x73625140]
        %v2117 = vld.sshfl [vmem:[#allocation1 + $0x20] sm:$0xff pattern:$0x73625140]
        %2118 = vst [vmem:[#allocation1] ss:$4 sm:$0xff] %v1800
        %2119 = vst [vmem:[%s1992] ss:$4 sm:$0xff] %v1940
        %2120 = vst [vmem:[%s1994] ss:$4 sm:$0xff] %v1941
        %2121 = vst [vmem:[%s1996] ss:$4 sm:$0xff] %v1942
        %2122 = vst [vmem:[%s1998] ss:$4 sm:$0xff] %v1801
        %2123 = vst [vmem:[%s2000] ss:$4 sm:$0xff] %v1943
        %2124 = vst [vmem:[%s2002] ss:$4 sm:$0xff] %v1944
        %2125 = vst [vmem:[%s2004] ss:$4 sm:$0xff] %v1945
        %v2126 = vld.sshfl [vmem:[#allocation1] sm:$0xff pattern:$0x73625140]
        %v2127 = vld.sshfl [vmem:[#allocation1 + $0x20] sm:$0xff pattern:$0x73625140]
        %2128 = vst [vmem:[#allocation1] ss:$4 sm:$0xff] %v1802
        %2129 = vst [vmem:[%s1992] ss:$4 sm:$0xff] %v1803
        %2130 = vst [vmem:[%s1994] ss:$4 sm:$0xff] %v1946
        %2131 = vst [vmem:[%s1996] ss:$4 sm:$0xff] %v1947
        %2132 = vst [vmem:[%s1998] ss:$4 sm:$0xff] %v1948
        %2133 = vst [vmem:[%s2000] ss:$4 sm:$0xff] %v1804
        %2134 = vst [vmem:[%s2002] ss:$4 sm:$0xff] %v1949
        %2135 = vst [vmem:[%s2004] ss:$4 sm:$0xff] %v1950
        %v2136 = vld.sshfl [vmem:[#allocation1] sm:$0xff pattern:$0x73625140]
        %v2137 = vld.sshfl [vmem:[#allocation1 + $0x20] sm:$0xff pattern:$0x73625140]
        %2138 = vst [vmem:[#allocation1] ss:$4 sm:$0xff] %v1951
        %2139 = vst [vmem:[%s1992] ss:$4 sm:$0xff] %v1805
        %2140 = vst [vmem:[%s1994] ss:$4 sm:$0xff] %v1952
        %2141 = vst [vmem:[%s1996] ss:$4 sm:$0xff] %v1953
        %2142 = vst [vmem:[%s1998] ss:$4 sm:$0xff] %v1954
        %2143 = vst [vmem:[%s2000] ss:$4 sm:$0xff] %v1806
        %2144 = vst [vmem:[%s2002] ss:$4 sm:$0xff] %v1955
        %2145 = vst [vmem:[%s2004] ss:$4 sm:$0xff] %v1956
        %v2146 = vld.sshfl [vmem:[#allocation1] sm:$0xff pattern:$0x73625140]
        %v2147 = vld.sshfl [vmem:[#allocation1 + $0x20] sm:$0xff pattern:$0x73625140]
        %2148 = vst [vmem:[#allocation1] ss:$4 sm:$0xff] %v1957
        %2149 = vst [vmem:[%s1992] ss:$4 sm:$0xff] %v1807
        %2150 = vst [vmem:[%s1994] ss:$4 sm:$0xff] %v1958
        %2151 = vst [vmem:[%s1996] ss:$4 sm:$0xff] %v1959
        %2152 = vst [vmem:[%s1998] ss:$4 sm:$0xff] %v1960
        %2153 = vst [vmem:[%s2000] ss:$4 sm:$0xff] %v1808
        %2154 = vst [vmem:[%s2002] ss:$4 sm:$0xff] %v1809
        %2155 = vst [vmem:[%s2004] ss:$4 sm:$0xff] %v1961
        %v2156 = vld.sshfl [vmem:[#allocation1] sm:$0xff pattern:$0x73625140]
        %v2157 = vld.sshfl [vmem:[#allocation1 + $0x20] sm:$0xff pattern:$0x73625140]
        %2158 = vst [vmem:[#allocation1] ss:$4 sm:$0xff] %v1962
        %2159 = vst [vmem:[%s1992] ss:$4 sm:$0xff] %v1963
        %2160 = vst [vmem:[%s1994] ss:$4 sm:$0xff] %v1810
        %2161 = vst [vmem:[%s1996] ss:$4 sm:$0xff] %v1964
        %2162 = vst [vmem:[%s1998] ss:$4 sm:$0xff] %v1965
        %2163 = vst [vmem:[%s2000] ss:$4 sm:$0xff] %v1966
        %2164 = vst [vmem:[%s2002] ss:$4 sm:$0xff] %v1811
        %2165 = vst [vmem:[%s2004] ss:$4 sm:$0xff] %v1967
        %v2166 = vld.sshfl [vmem:[#allocation1] sm:$0xff pattern:$0x73625140]
        %v2167 = vld.sshfl [vmem:[#allocation1 + $0x20] sm:$0xff pattern:$0x73625140]
        %2168 = vst [vmem:[#allocation1] ss:$4 sm:$0xff] %v1968
        %2169 = vst [vmem:[%s1992] ss:$4 sm:$0xff] %v1969
        %2170 = vst [vmem:[%s1994] ss:$4 sm:$0xff] %v1812
        %2171 = vst [vmem:[%s1996] ss:$4 sm:$0xff] %v1970
        %2172 = vst [vmem:[%s1998] ss:$4 sm:$0xff] %v1971
        %2173 = vst [vmem:[%s2000] ss:$4 sm:$0xff] %v1972
        %2174 = vst [vmem:[%s2002] ss:$4 sm:$0xff] %v1813
        %2175 = vst [vmem:[%s2004] ss:$4 sm:$0xff] %v1973
        %v2176 = vld.sshfl [vmem:[#allocation1] sm:$0xff pattern:$0x73625140]
        %v2177 = vld.sshfl [vmem:[#allocation1 + $0x20] sm:$0xff pattern:$0x73625140]
        %2178 = vst [vmem:[#allocation1] ss:$4 sm:$0xff] %v1974
        %2179 = vst [vmem:[%s1992] ss:$4 sm:$0xff] %v1975
        %2180 = vst [vmem:[%s1994] ss:$4 sm:$0xff] %v1814
        %2181 = vst [vmem:[%s1996] ss:$4 sm:$0xff] %v1815
        %2182 = vst [vmem:[%s1998] ss:$4 sm:$0xff] %v1976
        %2183 = vst [vmem:[%s2000] ss:$4 sm:$0xff] %v1977
        %2184 = vst [vmem:[%s2002] ss:$4 sm:$0xff] %v1978
        %2185 = vst [vmem:[%s2004] ss:$4 sm:$0xff] %v1816
        %v2186 = vld.sshfl [vmem:[#allocation1] sm:$0xff pattern:$0x73625140]
        %v2187 = vld.sshfl [vmem:[#allocation1 + $0x20] sm:$0xff pattern:$0x73625140]
        %2188 = vst [vmem:[#allocation1] ss:$4 sm:$0xff] %v1979
        %2189 = vst [vmem:[%s1992] ss:$4 sm:$0xff] %v1980
        %2190 = vst [vmem:[%s1994] ss:$4 sm:$0xff] %v1981
        %2191 = vst [vmem:[%s1996] ss:$4 sm:$0xff] %v1817
        %2192 = vst [vmem:[%s1998] ss:$4 sm:$0xff] %v1982
        %2193 = vst [vmem:[%s2000] ss:$4 sm:$0xff] %v1983
        %2194 = vst [vmem:[%s2002] ss:$4 sm:$0xff] %v1984
        %2195 = vst [vmem:[%s2004] ss:$4 sm:$0xff] %v1818
        %v2196 = vld.sshfl [vmem:[#allocation1] sm:$0xff pattern:$0x73625140]
        %v2197 = vld.sshfl [vmem:[#allocation1 + $0x20] sm:$0xff pattern:$0x73625140]
        %2198 = vst [vmem:[#allocation1] ss:$4 sm:$0xff] %v1985
        %2199 = vst [vmem:[%s1992] ss:$4 sm:$0xff] %v1986
        %2200 = vst [vmem:[%s1994] ss:$4 sm:$0xff] %v1987
        %2201 = vst [vmem:[%s1996] ss:$4 sm:$0xff] %v1819
        %2202 = vst [vmem:[%s1998] ss:$4 sm:$0xff] %v1988
        %2203 = vst [vmem:[%s2000] ss:$4 sm:$0xff] %v1989
        %2204 = vst [vmem:[%s2002] ss:$4 sm:$0xff] %v1990
        %2205 = vst [vmem:[%s2004] ss:$4 sm:$0xff] %v1820
        %v2206 = vld.sshfl [vmem:[#allocation1] sm:$0xff pattern:$0x73625140]
        %v2207 = vld.sshfl [vmem:[#allocation1 + $0x20] sm:$0xff pattern:$0x73625140]
        %v2208 = vsel %vm632, %v2006, 0
        %v2210 = vsel %vm632, %v2007, 0
        %v2212 = vsel %vm632, %v2016, 0
        %v2214 = vsel %vm632, %v2017, 0
        %v2216 = vsel %vm632, %v2026, 0
        %v2218 = vsel %vm632, %v2027, 0
        %v2220 = vsel %vm632, %v2036, 0
        %v2222 = vsel %vm632, %v2037, 0
        %v2224 = vsel %vm632, %v2046, 0
        %v2226 = vsel %vm632, %v2047, 0
        %v2228 = vsel %vm632, %v2056, 0
        %v2230 = vsel %vm632, %v2057, 0
        %v2232 = vsel %vm632, %v2066, 0
        %v2234 = vsel %vm632, %v2067, 0
        %v2236 = vsel %vm632, %v2076, 0
        %v2238 = vsel %vm632, %v2077, 0
        %v2240 = vsel %vm632, %v2086, 0
        %v2242 = vsel %vm632, %v2087, 0
        %v2244 = vsel %vm632, %v2096, 0
        %v2246 = vsel %vm632, %v2097, 0
        %v2248 = vsel %vm632, %v2106, 0
        %v2250 = vsel %vm632, %v2107, 0
        %v2252 = vsel %vm632, %v2116, 0
        %v2254 = vsel %vm632, %v2117, 0
        %v2256 = vsel %vm632, %v2126, 0
        %v2258 = vsel %vm632, %v2127, 0
        %v2260 = vsel %vm632, %v2136, 0
        %v2262 = vsel %vm632, %v2137, 0
        %v2264 = vsel %vm632, %v2146, 0
        %v2266 = vsel %vm632, %v2147, 0
        %v2268 = vsel %vm632, %v2156, 0
        %v2270 = vsel %vm632, %v2157, 0
        %v2272 = vsel %vm632, %v2166, 0
        %v2274 = vsel %vm632, %v2167, 0
        %v2276 = vsel %vm632, %v2176, 0
        %v2278 = vsel %vm632, %v2177, 0
        %v2280 = vsel %vm632, %v2186, 0
        %v2282 = vsel %vm632, %v2187, 0
        %v2284 = vsel %vm632, %v2196, 0
        %v2286 = vsel %vm632, %v2197, 0
        %v2288 = vsel %vm632, %v2206, 0
        %v2290 = vsel %vm632, %v2207, 0
        %v2293 = vsel %vm717, %v1822, 0
        %2295 = vmatpush.msra.mxu0 0.0
        %2296 = vmatpush.msra.mxu0 0.0
        %2297 = vmatpush.msra.mxu0 0.0
        %2298 = vmatpush.msra.mxu0 0.0
        %2299 = vmatpush.msra.mxu0 0.0
        %2300 = vmatpush.msra.mxu0 0.0
        %2301 = vmatpush.msra.mxu0 0.0
        %2302 = vmatpush.msra.mxu0 0.0
        %2303 = vmatpush.msra.mxu0 0.0
        %2304 = vmatpush.msra.mxu0 0.0
        %2305 = vmatpush.msra.mxu0 0.0
        %2306 = vmatpush.msra.mxu0 0.0
        %2307 = vmatpush.msra.mxu0 0.0
        %2308 = vmatpush.msra.mxu0 0.0
        %2309 = vmatpush.msra.mxu0 %v2293
        %2310 = vmatpush.msra.mxu0 %v1821
        %2311 = vmatmul.f32.gmra.mxu0 %v2208
        %v2312 = vpop.f32.mrf.mxu0
        %v2313 = vadd.f32 0.0, %v2312
        %2314 = vmatmul.f32.gmra.mxu0 %v2210
        %v2315 = vpop.f32.mrf.mxu0
        %v2316 = vadd.f32 0.0, %v2315
        %2317 = vmatmul.f32.gmra.mxu0 %v2212
        %v2318 = vpop.f32.mrf.mxu0
        %v2319 = vadd.f32 0.0, %v2318
        %2320 = vmatmul.f32.gmra.mxu0 %v2214
        %v2321 = vpop.f32.mrf.mxu0
        %v2322 = vadd.f32 0.0, %v2321
        %2323 = vmatmul.f32.gmra.mxu0 %v2216
        %v2324 = vpop.f32.mrf.mxu0
        %v2325 = vadd.f32 0.0, %v2324
        %2326 = vmatmul.f32.gmra.mxu0 %v2218
        %v2327 = vpop.f32.mrf.mxu0
        %v2328 = vadd.f32 0.0, %v2327
        %2329 = vmatmul.f32.gmra.mxu0 %v2220
        %v2330 = vpop.f32.mrf.mxu0
        %v2331 = vadd.f32 0.0, %v2330
        %2332 = vmatmul.f32.gmra.mxu0 %v2222
        %v2333 = vpop.f32.mrf.mxu0
        %v2334 = vadd.f32 0.0, %v2333
        %2335 = vmatmul.f32.gmra.mxu0 %v2224
        %v2336 = vpop.f32.mrf.mxu0
        %v2337 = vadd.f32 0.0, %v2336
        %2338 = vmatmul.f32.gmra.mxu0 %v2226
        %v2339 = vpop.f32.mrf.mxu0
        %v2340 = vadd.f32 0.0, %v2339
        %2341 = vmatmul.f32.gmra.mxu0 %v2228
        %v2342 = vpop.f32.mrf.mxu0
        %v2343 = vadd.f32 0.0, %v2342
        %2344 = vmatmul.f32.gmra.mxu0 %v2230
        %v2345 = vpop.f32.mrf.mxu0
        %v2346 = vadd.f32 0.0, %v2345
        %2347 = vmatmul.f32.gmra.mxu0 %v2232
        %v2348 = vpop.f32.mrf.mxu0
        %v2349 = vadd.f32 0.0, %v2348
        %2350 = vmatmul.f32.gmra.mxu0 %v2234
        %v2351 = vpop.f32.mrf.mxu0
        %v2352 = vadd.f32 0.0, %v2351
        %2353 = vmatmul.f32.gmra.mxu0 %v2236
        %v2354 = vpop.f32.mrf.mxu0
        %v2355 = vadd.f32 0.0, %v2354
        %2356 = vmatmul.f32.gmra.mxu0 %v2238
        %v2357 = vpop.f32.mrf.mxu0
        %v2358 = vadd.f32 0.0, %v2357
        %2359 = vmatmul.f32.gmra.mxu0 %v2240
        %v2360 = vpop.f32.mrf.mxu0
        %v2361 = vadd.f32 0.0, %v2360
        %2362 = vmatmul.f32.gmra.mxu0 %v2242
        %v2363 = vpop.f32.mrf.mxu0
        %v2364 = vadd.f32 0.0, %v2363
        %2365 = vmatmul.f32.gmra.mxu0 %v2244
        %v2366 = vpop.f32.mrf.mxu0
        %v2367 = vadd.f32 0.0, %v2366
        %2368 = vmatmul.f32.gmra.mxu0 %v2246
        %v2369 = vpop.f32.mrf.mxu0
        %v2370 = vadd.f32 0.0, %v2369
        %2371 = vmatmul.f32.gmra.mxu0 %v2248
        %v2372 = vpop.f32.mrf.mxu0
        %v2373 = vadd.f32 0.0, %v2372
        %2374 = vmatmul.f32.gmra.mxu0 %v2250
        %v2375 = vpop.f32.mrf.mxu0
        %v2376 = vadd.f32 0.0, %v2375
        %2377 = vmatmul.f32.gmra.mxu0 %v2252
        %v2378 = vpop.f32.mrf.mxu0
        %v2379 = vadd.f32 0.0, %v2378
        %2380 = vmatmul.f32.gmra.mxu0 %v2254
        %v2381 = vpop.f32.mrf.mxu0
        %v2382 = vadd.f32 0.0, %v2381
        %2383 = vmatmul.f32.gmra.mxu0 %v2256
        %v2384 = vpop.f32.mrf.mxu0
        %v2385 = vadd.f32 0.0, %v2384
        %2386 = vmatmul.f32.gmra.mxu0 %v2258
        %v2387 = vpop.f32.mrf.mxu0
        %v2388 = vadd.f32 0.0, %v2387
        %2389 = vmatmul.f32.gmra.mxu0 %v2260
        %v2390 = vpop.f32.mrf.mxu0
        %v2391 = vadd.f32 0.0, %v2390
        %2392 = vmatmul.f32.gmra.mxu0 %v2262
        %v2393 = vpop.f32.mrf.mxu0
        %v2394 = vadd.f32 0.0, %v2393
        %2395 = vmatmul.f32.gmra.mxu0 %v2264
        %v2396 = vpop.f32.mrf.mxu0
        %v2397 = vadd.f32 0.0, %v2396
        %2398 = vmatmul.f32.gmra.mxu0 %v2266
        %v2399 = vpop.f32.mrf.mxu0
        %v2400 = vadd.f32 0.0, %v2399
        %2401 = vmatmul.f32.gmra.mxu0 %v2268
        %v2402 = vpop.f32.mrf.mxu0
        %v2403 = vadd.f32 0.0, %v2402
        %2404 = vmatmul.f32.gmra.mxu0 %v2270
        %v2405 = vpop.f32.mrf.mxu0
        %v2406 = vadd.f32 0.0, %v2405
        %2407 = vmatmul.f32.gmra.mxu0 %v2272
        %v2408 = vpop.f32.mrf.mxu0
        %v2409 = vadd.f32 0.0, %v2408
        %2410 = vmatmul.f32.gmra.mxu0 %v2274
        %v2411 = vpop.f32.mrf.mxu0
        %v2412 = vadd.f32 0.0, %v2411
        %2413 = vmatmul.f32.gmra.mxu0 %v2276
        %v2414 = vpop.f32.mrf.mxu0
        %v2415 = vadd.f32 0.0, %v2414
        %2416 = vmatmul.f32.gmra.mxu0 %v2278
        %v2417 = vpop.f32.mrf.mxu0
        %v2418 = vadd.f32 0.0, %v2417
        %2419 = vmatmul.f32.gmra.mxu0 %v2280
        %v2420 = vpop.f32.mrf.mxu0
        %v2421 = vadd.f32 0.0, %v2420
        %2422 = vmatmul.f32.gmra.mxu0 %v2282
        %v2423 = vpop.f32.mrf.mxu0
        %v2424 = vadd.f32 0.0, %v2423
        %2425 = vmatmul.f32.gmra.mxu0 %v2284
        %v2426 = vpop.f32.mrf.mxu0
        %v2427 = vadd.f32 0.0, %v2426
        %2428 = vmatmul.f32.gmra.mxu0 %v2286
        %v2429 = vpop.f32.mrf.mxu0
        %v2430 = vadd.f32 0.0, %v2429
        %2431 = vmatmul.f32.gmra.mxu0 %v2288
        %v2432 = vpop.f32.mrf.mxu0
        %v2433 = vadd.f32 0.0, %v2432
        %2434 = vmatmul.f32.gmra.mxu0 %v2290
        %v2435 = vpop.f32.mrf.mxu0
        %v2436 = vadd.f32 0.0, %v2435
        %2437 = vdwg.mxu0
        %v2480 = vrot.slane %v2313, 2
        %v2481 = vrot.slane %v2313, 4
        %v2482 = vrot.slane %v2313, 6
        %v2483 = vrot.slane %v2316, 2
        %v2484 = vrot.slane %v2316, 4
        %v2485 = vrot.slane %v2316, 6
        %v2486 = vrot.slane %v2319, 2
        %v2487 = vrot.slane %v2319, 4
        %v2488 = vrot.slane %v2319, 6
        %v2489 = vrot.slane %v2322, 2
        %v2490 = vrot.slane %v2322, 4
        %v2491 = vrot.slane %v2322, 6
        %v2492 = vrot.slane %v2325, 2
        %v2493 = vrot.slane %v2325, 4
        %v2494 = vrot.slane %v2325, 6
        %v2495 = vrot.slane %v2328, 2
        %v2496 = vrot.slane %v2328, 4
        %v2497 = vrot.slane %v2328, 6
        %v2498 = vrot.slane %v2331, 2
        %v2499 = vrot.slane %v2331, 4
        %v2500 = vrot.slane %v2331, 6
        %v2501 = vrot.slane %v2334, 2
        %v2502 = vrot.slane %v2334, 4
        %v2503 = vrot.slane %v2334, 6
        %v2504 = vrot.slane %v2337, 2
        %v2505 = vrot.slane %v2337, 4
        %v2506 = vrot.slane %v2337, 6
        %v2507 = vrot.slane %v2340, 2
        %v2508 = vrot.slane %v2340, 4
        %v2509 = vrot.slane %v2340, 6
        %v2510 = vrot.slane %v2343, 2
        %v2511 = vrot.slane %v2343, 4
        %v2512 = vrot.slane %v2343, 6
        %v2513 = vrot.slane %v2346, 2
        %v2514 = vrot.slane %v2346, 4
        %v2515 = vrot.slane %v2346, 6
        %v2516 = vrot.slane %v2349, 2
        %v2517 = vrot.slane %v2349, 4
        %v2518 = vrot.slane %v2349, 6
        %v2519 = vrot.slane %v2352, 2
        %v2520 = vrot.slane %v2352, 4
        %v2521 = vrot.slane %v2352, 6
        %v2522 = vrot.slane %v2355, 2
        %v2523 = vrot.slane %v2355, 4
        %v2524 = vrot.slane %v2355, 6
        %v2525 = vrot.slane %v2358, 2
        %v2526 = vrot.slane %v2358, 4
        %v2527 = vrot.slane %v2358, 6
        %v2528 = vrot.slane %v2361, 2
        %v2529 = vrot.slane %v2361, 4
        %v2530 = vrot.slane %v2361, 6
        %v2531 = vrot.slane %v2364, 2
        %v2532 = vrot.slane %v2364, 4
        %v2533 = vrot.slane %v2364, 6
        %v2534 = vrot.slane %v2367, 2
        %v2535 = vrot.slane %v2367, 4
        %v2536 = vrot.slane %v2367, 6
        %v2537 = vrot.slane %v2370, 2
        %v2538 = vrot.slane %v2370, 4
        %v2539 = vrot.slane %v2370, 6
        %v2540 = vrot.slane %v2373, 2
        %v2541 = vrot.slane %v2373, 4
        %v2542 = vrot.slane %v2373, 6
        %v2543 = vrot.slane %v2376, 2
        %v2544 = vrot.slane %v2376, 4
        %v2545 = vrot.slane %v2376, 6
        %v2546 = vrot.slane %v2379, 2
        %v2547 = vrot.slane %v2379, 4
        %v2548 = vrot.slane %v2379, 6
        %v2549 = vrot.slane %v2382, 2
        %v2550 = vrot.slane %v2382, 4
        %v2551 = vrot.slane %v2382, 6
        %v2552 = vrot.slane %v2385, 2
        %v2553 = vrot.slane %v2385, 4
        %v2554 = vrot.slane %v2385, 6
        %v2555 = vrot.slane %v2388, 2
        %v2556 = vrot.slane %v2388, 4
        %v2557 = vrot.slane %v2388, 6
        %v2558 = vrot.slane %v2391, 2
        %v2559 = vrot.slane %v2391, 4
        %v2560 = vrot.slane %v2391, 6
        %v2561 = vrot.slane %v2394, 2
        %v2562 = vrot.slane %v2394, 4
        %v2563 = vrot.slane %v2394, 6
        %v2564 = vrot.slane %v2397, 2
        %v2565 = vrot.slane %v2397, 4
        %v2566 = vrot.slane %v2397, 6
        %v2567 = vrot.slane %v2400, 2
        %v2568 = vrot.slane %v2400, 4
        %v2569 = vrot.slane %v2400, 6
        %v2570 = vrot.slane %v2403, 2
        %v2571 = vrot.slane %v2403, 4
        %v2572 = vrot.slane %v2403, 6
        %v2573 = vrot.slane %v2406, 2
        %v2574 = vrot.slane %v2406, 4
        %v2575 = vrot.slane %v2406, 6
        %v2576 = vrot.slane %v2409, 2
        %v2577 = vrot.slane %v2409, 4
        %v2578 = vrot.slane %v2409, 6
        %v2579 = vrot.slane %v2412, 2
        %v2580 = vrot.slane %v2412, 4
        %v2581 = vrot.slane %v2412, 6
        %v2582 = vrot.slane %v2415, 2
        %v2583 = vrot.slane %v2415, 4
        %v2584 = vrot.slane %v2415, 6
        %v2585 = vrot.slane %v2418, 2
        %v2586 = vrot.slane %v2418, 4
        %v2587 = vrot.slane %v2418, 6
        %v2588 = vrot.slane %v2421, 2
        %v2589 = vrot.slane %v2421, 4
        %v2590 = vrot.slane %v2421, 6
        %v2591 = vrot.slane %v2424, 2
        %v2592 = vrot.slane %v2424, 4
        %v2593 = vrot.slane %v2424, 6
        %v2594 = vrot.slane %v2427, 2
        %v2595 = vrot.slane %v2427, 4
        %v2596 = vrot.slane %v2427, 6
        %v2597 = vrot.slane %v2430, 2
        %v2598 = vrot.slane %v2430, 4
        %v2599 = vrot.slane %v2430, 6
        %v2600 = vrot.slane %v2433, 2
        %v2601 = vrot.slane %v2433, 4
        %v2602 = vrot.slane %v2433, 6
        %v2603 = vrot.slane %v2436, 2
        %v2604 = vrot.slane %v2436, 4
        %v2605 = vrot.slane %v2436, 6
        %v2732 = vadd.f32 %v1354, %v2313
        %v2733 = vadd.f32 %v1521, %v2480
        %v2734 = vadd.f32 %v1522, %v2481
        %v2735 = vadd.f32 %v1523, %v2482
        %v2736 = vadd.f32 %v1357, %v2316
        %v2737 = vadd.f32 %v1524, %v2483
        %v2738 = vadd.f32 %v1525, %v2484
        %v2739 = vadd.f32 %v1526, %v2485
        %v2740 = vadd.f32 %v1360, %v2319
        %v2741 = vadd.f32 %v1527, %v2486
        %v2742 = vadd.f32 %v1528, %v2487
        %v2743 = vadd.f32 %v1529, %v2488
        %v2744 = vadd.f32 %v1363, %v2322
        %v2745 = vadd.f32 %v1530, %v2489
        %v2746 = vadd.f32 %v1531, %v2490
        %v2747 = vadd.f32 %v1532, %v2491
        %v2748 = vadd.f32 %v1366, %v2325
        %v2749 = vadd.f32 %v1533, %v2492
        %v2750 = vadd.f32 %v1534, %v2493
        %v2751 = vadd.f32 %v1535, %v2494
        %v2752 = vadd.f32 %v1369, %v2328
        %v2753 = vadd.f32 %v1536, %v2495
        %v2754 = vadd.f32 %v1537, %v2496
        %v2755 = vadd.f32 %v1538, %v2497
        %v2756 = vadd.f32 %v1372, %v2331
        %v2757 = vadd.f32 %v1539, %v2498
        %v2758 = vadd.f32 %v1540, %v2499
        %v2759 = vadd.f32 %v1541, %v2500
        %v2760 = vadd.f32 %v1375, %v2334
        %v2761 = vadd.f32 %v1542, %v2501
        %v2762 = vadd.f32 %v1543, %v2502
        %v2763 = vadd.f32 %v1544, %v2503
        %v2764 = vadd.f32 %v1378, %v2337
        %v2765 = vadd.f32 %v1545, %v2504
        %v2766 = vadd.f32 %v1546, %v2505
        %v2767 = vadd.f32 %v1547, %v2506
        %v2768 = vadd.f32 %v1381, %v2340
        %v2769 = vadd.f32 %v1548, %v2507
        %v2770 = vadd.f32 %v1549, %v2508
        %v2771 = vadd.f32 %v1550, %v2509
        %v2772 = vadd.f32 %v1384, %v2343
        %v2773 = vadd.f32 %v1551, %v2510
        %v2774 = vadd.f32 %v1552, %v2511
        %v2775 = vadd.f32 %v1553, %v2512
        %v2776 = vadd.f32 %v1387, %v2346
        %v2777 = vadd.f32 %v1554, %v2513
        %v2778 = vadd.f32 %v1555, %v2514
        %v2779 = vadd.f32 %v1556, %v2515
        %v2780 = vadd.f32 %v1390, %v2349
        %v2781 = vadd.f32 %v1557, %v2516
        %v2782 = vadd.f32 %v1558, %v2517
        %v2783 = vadd.f32 %v1559, %v2518
        %v2784 = vadd.f32 %v1393, %v2352
        %v2785 = vadd.f32 %v1560, %v2519
        %v2786 = vadd.f32 %v1561, %v2520
        %v2787 = vadd.f32 %v1562, %v2521
        %v2788 = vadd.f32 %v1396, %v2355
        %v2789 = vadd.f32 %v1563, %v2522
        %v2790 = vadd.f32 %v1564, %v2523
        %v2791 = vadd.f32 %v1565, %v2524
        %v2792 = vadd.f32 %v1399, %v2358
        %v2793 = vadd.f32 %v1566, %v2525
        %v2794 = vadd.f32 %v1567, %v2526
        %v2795 = vadd.f32 %v1568, %v2527
        %v2796 = vadd.f32 %v1402, %v2361
        %v2797 = vadd.f32 %v1569, %v2528
        %v2798 = vadd.f32 %v1570, %v2529
        %v2799 = vadd.f32 %v1571, %v2530
        %v2800 = vadd.f32 %v1405, %v2364
        %v2801 = vadd.f32 %v1572, %v2531
        %v2802 = vadd.f32 %v1573, %v2532
        %v2803 = vadd.f32 %v1574, %v2533
        %v2804 = vadd.f32 %v1408, %v2367
        %v2805 = vadd.f32 %v1575, %v2534
        %v2806 = vadd.f32 %v1576, %v2535
        %v2807 = vadd.f32 %v1577, %v2536
        %v2808 = vadd.f32 %v1411, %v2370
        %v2809 = vadd.f32 %v1578, %v2537
        %v2810 = vadd.f32 %v1579, %v2538
        %v2811 = vadd.f32 %v1580, %v2539
        %v2812 = vadd.f32 %v1414, %v2373
        %v2813 = vadd.f32 %v1581, %v2540
        %v2814 = vadd.f32 %v1582, %v2541
        %v2815 = vadd.f32 %v1583, %v2542
        %v2816 = vadd.f32 %v1417, %v2376
        %v2817 = vadd.f32 %v1584, %v2543
        %v2818 = vadd.f32 %v1585, %v2544
        %v2819 = vadd.f32 %v1586, %v2545
        %v2820 = vadd.f32 %v1420, %v2379
        %v2821 = vadd.f32 %v1587, %v2546
        %v2822 = vadd.f32 %v1588, %v2547
        %v2823 = vadd.f32 %v1589, %v2548
        %v2824 = vadd.f32 %v1423, %v2382
        %v2825 = vadd.f32 %v1590, %v2549
        %v2826 = vadd.f32 %v1591, %v2550
        %v2827 = vadd.f32 %v1592, %v2551
        %v2828 = vadd.f32 %v1426, %v2385
        %v2829 = vadd.f32 %v1593, %v2552
        %v2830 = vadd.f32 %v1594, %v2553
        %v2831 = vadd.f32 %v1595, %v2554
        %v2832 = vadd.f32 %v1429, %v2388
        %v2833 = vadd.f32 %v1596, %v2555
        %v2834 = vadd.f32 %v1597, %v2556
        %v2835 = vadd.f32 %v1598, %v2557
        %v2836 = vadd.f32 %v1432, %v2391
        %v2837 = vadd.f32 %v1599, %v2558
        %v2838 = vadd.f32 %v1600, %v2559
        %v2839 = vadd.f32 %v1601, %v2560
        %v2840 = vadd.f32 %v1435, %v2394
        %v2841 = vadd.f32 %v1602, %v2561
        %v2842 = vadd.f32 %v1603, %v2562
        %v2843 = vadd.f32 %v1604, %v2563
        %v2844 = vadd.f32 %v1438, %v2397
        %v2845 = vadd.f32 %v1605, %v2564
        %v2846 = vadd.f32 %v1606, %v2565
        %v2847 = vadd.f32 %v1607, %v2566
        %v2848 = vadd.f32 %v1441, %v2400
        %v2849 = vadd.f32 %v1608, %v2567
        %v2850 = vadd.f32 %v1609, %v2568
        %v2851 = vadd.f32 %v1610, %v2569
        %v2852 = vadd.f32 %v1444, %v2403
        %v2853 = vadd.f32 %v1611, %v2570
        %v2854 = vadd.f32 %v1612, %v2571
        %v2855 = vadd.f32 %v1613, %v2572
        %v2856 = vadd.f32 %v1447, %v2406
        %v2857 = vadd.f32 %v1614, %v2573
        %v2858 = vadd.f32 %v1615, %v2574
        %v2859 = vadd.f32 %v1616, %v2575
        %v2860 = vadd.f32 %v1450, %v2409
        %v2861 = vadd.f32 %v1617, %v2576
        %v2862 = vadd.f32 %v1618, %v2577
        %v2863 = vadd.f32 %v1619, %v2578
        %v2864 = vadd.f32 %v1453, %v2412
        %v2865 = vadd.f32 %v1620, %v2579
        %v2866 = vadd.f32 %v1621, %v2580
        %v2867 = vadd.f32 %v1622, %v2581
        %v2868 = vadd.f32 %v1456, %v2415
        %v2869 = vadd.f32 %v1623, %v2582
        %v2870 = vadd.f32 %v1624, %v2583
        %v2871 = vadd.f32 %v1625, %v2584
        %v2872 = vadd.f32 %v1459, %v2418
        %v2873 = vadd.f32 %v1626, %v2585
        %v2874 = vadd.f32 %v1627, %v2586
        %v2875 = vadd.f32 %v1628, %v2587
        %v2876 = vadd.f32 %v1462, %v2421
        %v2877 = vadd.f32 %v1629, %v2588
        %v2878 = vadd.f32 %v1630, %v2589
        %v2879 = vadd.f32 %v1631, %v2590
        %v2880 = vadd.f32 %v1465, %v2424
        %v2881 = vadd.f32 %v1632, %v2591
        %v2882 = vadd.f32 %v1633, %v2592
        %v2883 = vadd.f32 %v1634, %v2593
        %v2884 = vadd.f32 %v1468, %v2427
        %v2885 = vadd.f32 %v1635, %v2594
        %v2886 = vadd.f32 %v1636, %v2595
        %v2887 = vadd.f32 %v1637, %v2596
        %v2888 = vadd.f32 %v1471, %v2430
        %v2889 = vadd.f32 %v1638, %v2597
        %v2890 = vadd.f32 %v1639, %v2598
        %v2891 = vadd.f32 %v1640, %v2599
        %v2892 = vadd.f32 %v1474, %v2433
        %v2893 = vadd.f32 %v1641, %v2600
        %v2894 = vadd.f32 %v1642, %v2601
        %v2895 = vadd.f32 %v1643, %v2602
        %v2896 = vadd.f32 %v1477, %v2436
        %v2897 = vadd.f32 %v1644, %v2603
        %v2898 = vadd.f32 %v1645, %v2604
        %v2899 = vadd.f32 %v1646, %v2605
        %v2900 = vld [vmem:[%s1 + $0x110] sm:$0x1]
        %v2901 = vld [vmem:[%s1 + $0x111] sm:$0x1]
        %v2902 = vperm.slane %v2900, 0
        %v2904 = vrot.slane %v2902, 2
        %v2905 = vrot.slane %v2902, 4
        %v2906 = vrot.slane %v2902, 6
        %v2910 = vmul.f32 %v2732, %v2902
        %v2911 = vmul.f32 %v2733, %v2904
        %v2912 = vmul.f32 %v2734, %v2905
        %v2913 = vmul.f32 %v2735, %v2906
        %v2914 = vmul.f32 %v2736, %v2902
        %v2915 = vmul.f32 %v2737, %v2904
        %v2916 = vmul.f32 %v2738, %v2905
        %v2917 = vmul.f32 %v2739, %v2906
        %v2918 = vmul.f32 %v2740, %v2902
        %v2919 = vmul.f32 %v2741, %v2904
        %v2920 = vmul.f32 %v2742, %v2905
        %v2921 = vmul.f32 %v2743, %v2906
        %v2922 = vmul.f32 %v2744, %v2902
        %v2923 = vmul.f32 %v2745, %v2904
        %v2924 = vmul.f32 %v2746, %v2905
        %v2925 = vmul.f32 %v2747, %v2906
        %v2926 = vmul.f32 %v2748, %v2902
        %v2927 = vmul.f32 %v2749, %v2904
        %v2928 = vmul.f32 %v2750, %v2905
        %v2929 = vmul.f32 %v2751, %v2906
        %v2930 = vmul.f32 %v2752, %v2902
        %v2931 = vmul.f32 %v2753, %v2902
        %v2932 = vmul.f32 %v2754, %v2904
        %v2933 = vmul.f32 %v2755, %v2905
        %v2934 = vmul.f32 %v2756, %v2906
        %v2935 = vmul.f32 %v2757, %v2902
        %v2936 = vmul.f32 %v2758, %v2904
        %v2937 = vmul.f32 %v2759, %v2905
        %v2938 = vmul.f32 %v2760, %v2906
        %v2939 = vmul.f32 %v2761, %v2902
        %v2940 = vmul.f32 %v2762, %v2904
        %v2941 = vmul.f32 %v2763, %v2905
        %v2942 = vmul.f32 %v2764, %v2906
        %v2943 = vmul.f32 %v2765, %v2902
        %v2944 = vmul.f32 %v2766, %v2904
        %v2945 = vmul.f32 %v2767, %v2905
        %v2946 = vmul.f32 %v2768, %v2906
        %v2947 = vmul.f32 %v2769, %v2902
        %v2948 = vmul.f32 %v2770, %v2904
        %v2949 = vmul.f32 %v2771, %v2905
        %v2950 = vmul.f32 %v2772, %v2906
        %v2951 = vmul.f32 %v2773, %v2902
        %v2952 = vmul.f32 %v2774, %v2902
        %v2953 = vmul.f32 %v2775, %v2904
        %v2954 = vmul.f32 %v2776, %v2905
        %v2955 = vmul.f32 %v2777, %v2906
        %v2956 = vmul.f32 %v2778, %v2902
        %v2957 = vmul.f32 %v2779, %v2904
        %v2958 = vmul.f32 %v2780, %v2905
        %v2959 = vmul.f32 %v2781, %v2906
        %v2960 = vmul.f32 %v2782, %v2902
        %v2961 = vmul.f32 %v2783, %v2904
        %v2962 = vmul.f32 %v2784, %v2905
        %v2963 = vmul.f32 %v2785, %v2906
        %v2964 = vmul.f32 %v2786, %v2902
        %v2965 = vmul.f32 %v2787, %v2904
        %v2966 = vmul.f32 %v2788, %v2905
        %v2967 = vmul.f32 %v2789, %v2906
        %v2968 = vmul.f32 %v2790, %v2902
        %v2969 = vmul.f32 %v2791, %v2904
        %v2970 = vmul.f32 %v2792, %v2905
        %v2971 = vmul.f32 %v2793, %v2906
        %v2972 = vmul.f32 %v2794, %v2902
        %v2973 = vmul.f32 %v2795, %v2902
        %v2974 = vmul.f32 %v2796, %v2904
        %v2975 = vmul.f32 %v2797, %v2905
        %v2976 = vmul.f32 %v2798, %v2906
        %v2977 = vmul.f32 %v2799, %v2902
        %v2978 = vmul.f32 %v2800, %v2904
        %v2979 = vmul.f32 %v2801, %v2905
        %v2980 = vmul.f32 %v2802, %v2906
        %v2981 = vmul.f32 %v2803, %v2902
        %v2982 = vmul.f32 %v2804, %v2904
        %v2983 = vmul.f32 %v2805, %v2905
        %v2984 = vmul.f32 %v2806, %v2906
        %v2985 = vmul.f32 %v2807, %v2902
        %v2986 = vmul.f32 %v2808, %v2904
        %v2987 = vmul.f32 %v2809, %v2905
        %v2988 = vmul.f32 %v2810, %v2906
        %v2989 = vmul.f32 %v2811, %v2902
        %v2990 = vmul.f32 %v2812, %v2904
        %v2991 = vmul.f32 %v2813, %v2905
        %v2992 = vmul.f32 %v2814, %v2906
        %v2993 = vmul.f32 %v2815, %v2902
        %v2994 = vmul.f32 %v2816, %v2902
        %v2995 = vmul.f32 %v2817, %v2904
        %v2996 = vmul.f32 %v2818, %v2905
        %v2997 = vmul.f32 %v2819, %v2906
        %v2998 = vmul.f32 %v2820, %v2902
        %v2999 = vmul.f32 %v2821, %v2904
        %v3000 = vmul.f32 %v2822, %v2905
        %v3001 = vmul.f32 %v2823, %v2906
        %v3002 = vmul.f32 %v2824, %v2902
        %v3003 = vmul.f32 %v2825, %v2904
        %v3004 = vmul.f32 %v2826, %v2905
        %v3005 = vmul.f32 %v2827, %v2906
        %v3006 = vmul.f32 %v2828, %v2902
        %v3007 = vmul.f32 %v2829, %v2904
        %v3008 = vmul.f32 %v2830, %v2905
        %v3009 = vmul.f32 %v2831, %v2906
        %v3010 = vmul.f32 %v2832, %v2902
        %v3011 = vmul.f32 %v2833, %v2904
        %v3012 = vmul.f32 %v2834, %v2905
        %v3013 = vmul.f32 %v2835, %v2906
        %v3014 = vmul.f32 %v2836, %v2902
        %v3015 = vmul.f32 %v2837, %v2902
        %v3016 = vmul.f32 %v2838, %v2904
        %v3017 = vmul.f32 %v2839, %v2905
        %v3018 = vmul.f32 %v2840, %v2906
        %v3019 = vmul.f32 %v2841, %v2902
        %v3020 = vmul.f32 %v2842, %v2904
        %v3021 = vmul.f32 %v2843, %v2905
        %v3022 = vmul.f32 %v2844, %v2906
        %v3023 = vmul.f32 %v2845, %v2902
        %v3024 = vmul.f32 %v2846, %v2904
        %v3025 = vmul.f32 %v2847, %v2905
        %v3026 = vmul.f32 %v2848, %v2906
        %v3027 = vmul.f32 %v2849, %v2902
        %v3028 = vmul.f32 %v2850, %v2904
        %v3029 = vmul.f32 %v2851, %v2905
        %v3030 = vmul.f32 %v2852, %v2906
        %v3031 = vmul.f32 %v2853, %v2902
        %v3032 = vmul.f32 %v2854, %v2904
        %v3033 = vmul.f32 %v2855, %v2905
        %v3034 = vmul.f32 %v2856, %v2906
        %v3035 = vmul.f32 %v2857, %v2902
        %v3036 = vmul.f32 %v2858, %v2902
        %v3037 = vmul.f32 %v2859, %v2904
        %v3038 = vmul.f32 %v2860, %v2905
        %v3039 = vmul.f32 %v2861, %v2906
        %v3040 = vmul.f32 %v2862, %v2902
        %v3041 = vmul.f32 %v2863, %v2904
        %v3042 = vmul.f32 %v2864, %v2905
        %v3043 = vmul.f32 %v2865, %v2906
        %v3044 = vmul.f32 %v2866, %v2902
        %v3045 = vmul.f32 %v2867, %v2904
        %v3046 = vmul.f32 %v2868, %v2905
        %v3047 = vmul.f32 %v2869, %v2906
        %v3048 = vmul.f32 %v2870, %v2902
        %v3049 = vmul.f32 %v2871, %v2904
        %v3050 = vmul.f32 %v2872, %v2905
        %v3051 = vmul.f32 %v2873, %v2906
        %v3052 = vmul.f32 %v2874, %v2902
        %v3053 = vmul.f32 %v2875, %v2904
        %v3054 = vmul.f32 %v2876, %v2905
        %v3055 = vmul.f32 %v2877, %v2906
        %v3056 = vmul.f32 %v2878, %v2902
        %v3057 = vmul.f32 %v2879, %v2902
        %v3058 = vmul.f32 %v2880, %v2904
        %v3059 = vmul.f32 %v2881, %v2905
        %v3060 = vmul.f32 %v2882, %v2906
        %v3061 = vmul.f32 %v2883, %v2902
        %v3062 = vmul.f32 %v2884, %v2904
        %v3063 = vmul.f32 %v2885, %v2905
        %v3064 = vmul.f32 %v2886, %v2906
        %v3065 = vmul.f32 %v2887, %v2902
        %v3066 = vmul.f32 %v2888, %v2904
        %v3067 = vmul.f32 %v2889, %v2905
        %v3068 = vmul.f32 %v2890, %v2906
        %v3069 = vmul.f32 %v2891, %v2902
        %v3070 = vmul.f32 %v2892, %v2904
        %v3071 = vmul.f32 %v2893, %v2905
        %v3072 = vmul.f32 %v2894, %v2906
        %v3073 = vmul.f32 %v2895, %v2902
        %v3074 = vmul.f32 %v2896, %v2904
        %v3075 = vmul.f32 %v2897, %v2905
        %v3076 = vmul.f32 %v2898, %v2906
        %v3077 = vmul.f32 %v2899, %v2902
        %v3078 = vperm.slane %v2901, 0
        %v3080 = vrot.slane %v3078, 2
        %v3081 = vrot.slane %v3078, 4
        %v3082 = vrot.slane %v3078, 6
        %v3086 = vadd.f32 %v2910, %v3078
        %v3087 = vadd.f32 %v2911, %v3080
        %v3088 = vadd.f32 %v2912, %v3081
        %v3089 = vadd.f32 %v2913, %v3082
        %v3090 = vadd.f32 %v2914, %v3078
        %v3091 = vadd.f32 %v2915, %v3080
        %v3092 = vadd.f32 %v2916, %v3081
        %v3093 = vadd.f32 %v2917, %v3082
        %v3094 = vadd.f32 %v2918, %v3078
        %v3095 = vadd.f32 %v2919, %v3080
        %v3096 = vadd.f32 %v2920, %v3081
        %v3097 = vadd.f32 %v2921, %v3082
        %v3098 = vadd.f32 %v2922, %v3078
        %v3099 = vadd.f32 %v2923, %v3080
        %v3100 = vadd.f32 %v2924, %v3081
        %v3101 = vadd.f32 %v2925, %v3082
        %v3102 = vadd.f32 %v2926, %v3078
        %v3103 = vadd.f32 %v2927, %v3080
        %v3104 = vadd.f32 %v2928, %v3081
        %v3105 = vadd.f32 %v2929, %v3082
        %v3106 = vadd.f32 %v2930, %v3078
        %v3107 = vadd.f32 %v2931, %v3078
        %v3108 = vadd.f32 %v2932, %v3080
        %v3109 = vadd.f32 %v2933, %v3081
        %v3110 = vadd.f32 %v2934, %v3082
        %v3111 = vadd.f32 %v2935, %v3078
        %v3112 = vadd.f32 %v2936, %v3080
        %v3113 = vadd.f32 %v2937, %v3081
        %v3114 = vadd.f32 %v2938, %v3082
        %v3115 = vadd.f32 %v2939, %v3078
        %v3116 = vadd.f32 %v2940, %v3080
        %v3117 = vadd.f32 %v2941, %v3081
        %v3118 = vadd.f32 %v2942, %v3082
        %v3119 = vadd.f32 %v2943, %v3078
        %v3120 = vadd.f32 %v2944, %v3080
        %v3121 = vadd.f32 %v2945, %v3081
        %v3122 = vadd.f32 %v2946, %v3082
        %v3123 = vadd.f32 %v2947, %v3078
        %v3124 = vadd.f32 %v2948, %v3080
        %v3125 = vadd.f32 %v2949, %v3081
        %v3126 = vadd.f32 %v2950, %v3082
        %v3127 = vadd.f32 %v2951, %v3078
        %v3128 = vadd.f32 %v2952, %v3078
        %v3129 = vadd.f32 %v2953, %v3080
        %v3130 = vadd.f32 %v2954, %v3081
        %v3131 = vadd.f32 %v2955, %v3082
        %v3132 = vadd.f32 %v2956, %v3078
        %v3133 = vadd.f32 %v2957, %v3080
        %v3134 = vadd.f32 %v2958, %v3081
        %v3135 = vadd.f32 %v2959, %v3082
        %v3136 = vadd.f32 %v2960, %v3078
        %v3137 = vadd.f32 %v2961, %v3080
        %v3138 = vadd.f32 %v2962, %v3081
        %v3139 = vadd.f32 %v2963, %v3082
        %v3140 = vadd.f32 %v2964, %v3078
        %v3141 = vadd.f32 %v2965, %v3080
        %v3142 = vadd.f32 %v2966, %v3081
        %v3143 = vadd.f32 %v2967, %v3082
        %v3144 = vadd.f32 %v2968, %v3078
        %v3145 = vadd.f32 %v2969, %v3080
        %v3146 = vadd.f32 %v2970, %v3081
        %v3147 = vadd.f32 %v2971, %v3082
        %v3148 = vadd.f32 %v2972, %v3078
        %v3149 = vadd.f32 %v2973, %v3078
        %v3150 = vadd.f32 %v2974, %v3080
        %v3151 = vadd.f32 %v2975, %v3081
        %v3152 = vadd.f32 %v2976, %v3082
        %v3153 = vadd.f32 %v2977, %v3078
        %v3154 = vadd.f32 %v2978, %v3080
        %v3155 = vadd.f32 %v2979, %v3081
        %v3156 = vadd.f32 %v2980, %v3082
        %v3157 = vadd.f32 %v2981, %v3078
        %v3158 = vadd.f32 %v2982, %v3080
        %v3159 = vadd.f32 %v2983, %v3081
        %v3160 = vadd.f32 %v2984, %v3082
        %v3161 = vadd.f32 %v2985, %v3078
        %v3162 = vadd.f32 %v2986, %v3080
        %v3163 = vadd.f32 %v2987, %v3081
        %v3164 = vadd.f32 %v2988, %v3082
        %v3165 = vadd.f32 %v2989, %v3078
        %v3166 = vadd.f32 %v2990, %v3080
        %v3167 = vadd.f32 %v2991, %v3081
        %v3168 = vadd.f32 %v2992, %v3082
        %v3169 = vadd.f32 %v2993, %v3078
        %v3170 = vadd.f32 %v2994, %v3078
        %v3171 = vadd.f32 %v2995, %v3080
        %v3172 = vadd.f32 %v2996, %v3081
        %v3173 = vadd.f32 %v2997, %v3082
        %v3174 = vadd.f32 %v2998, %v3078
        %v3175 = vadd.f32 %v2999, %v3080
        %v3176 = vadd.f32 %v3000, %v3081
        %v3177 = vadd.f32 %v3001, %v3082
        %v3178 = vadd.f32 %v3002, %v3078
        %v3179 = vadd.f32 %v3003, %v3080
        %v3180 = vadd.f32 %v3004, %v3081
        %v3181 = vadd.f32 %v3005, %v3082
        %v3182 = vadd.f32 %v3006, %v3078
        %v3183 = vadd.f32 %v3007, %v3080
        %v3184 = vadd.f32 %v3008, %v3081
        %v3185 = vadd.f32 %v3009, %v3082
        %v3186 = vadd.f32 %v3010, %v3078
        %v3187 = vadd.f32 %v3011, %v3080
        %v3188 = vadd.f32 %v3012, %v3081
        %v3189 = vadd.f32 %v3013, %v3082
        %v3190 = vadd.f32 %v3014, %v3078
        %v3191 = vadd.f32 %v3015, %v3078
        %v3192 = vadd.f32 %v3016, %v3080
        %v3193 = vadd.f32 %v3017, %v3081
        %v3194 = vadd.f32 %v3018, %v3082
        %v3195 = vadd.f32 %v3019, %v3078
        %v3196 = vadd.f32 %v3020, %v3080
        %v3197 = vadd.f32 %v3021, %v3081
        %v3198 = vadd.f32 %v3022, %v3082
        %v3199 = vadd.f32 %v3023, %v3078
        %v3200 = vadd.f32 %v3024, %v3080
        %v3201 = vadd.f32 %v3025, %v3081
        %v3202 = vadd.f32 %v3026, %v3082
        %v3203 = vadd.f32 %v3027, %v3078
        %v3204 = vadd.f32 %v3028, %v3080
        %v3205 = vadd.f32 %v3029, %v3081
        %v3206 = vadd.f32 %v3030, %v3082
        %v3207 = vadd.f32 %v3031, %v3078
        %v3208 = vadd.f32 %v3032, %v3080
        %v3209 = vadd.f32 %v3033, %v3081
        %v3210 = vadd.f32 %v3034, %v3082
        %v3211 = vadd.f32 %v3035, %v3078
        %v3212 = vadd.f32 %v3036, %v3078
        %v3213 = vadd.f32 %v3037, %v3080
        %v3214 = vadd.f32 %v3038, %v3081
        %v3215 = vadd.f32 %v3039, %v3082
        %v3216 = vadd.f32 %v3040, %v3078
        %v3217 = vadd.f32 %v3041, %v3080
        %v3218 = vadd.f32 %v3042, %v3081
        %v3219 = vadd.f32 %v3043, %v3082
        %v3220 = vadd.f32 %v3044, %v3078
        %v3221 = vadd.f32 %v3045, %v3080
        %v3222 = vadd.f32 %v3046, %v3081
        %v3223 = vadd.f32 %v3047, %v3082
        %v3224 = vadd.f32 %v3048, %v3078
        %v3225 = vadd.f32 %v3049, %v3080
        %v3226 = vadd.f32 %v3050, %v3081
        %v3227 = vadd.f32 %v3051, %v3082
        %v3228 = vadd.f32 %v3052, %v3078
        %v3229 = vadd.f32 %v3053, %v3080
        %v3230 = vadd.f32 %v3054, %v3081
        %v3231 = vadd.f32 %v3055, %v3082
        %v3232 = vadd.f32 %v3056, %v3078
        %v3233 = vadd.f32 %v3057, %v3078
        %v3234 = vadd.f32 %v3058, %v3080
        %v3235 = vadd.f32 %v3059, %v3081
        %v3236 = vadd.f32 %v3060, %v3082
        %v3237 = vadd.f32 %v3061, %v3078
        %v3238 = vadd.f32 %v3062, %v3080
        %v3239 = vadd.f32 %v3063, %v3081
        %v3240 = vadd.f32 %v3064, %v3082
        %v3241 = vadd.f32 %v3065, %v3078
        %v3242 = vadd.f32 %v3066, %v3080
        %v3243 = vadd.f32 %v3067, %v3081
        %v3244 = vadd.f32 %v3068, %v3082
        %v3245 = vadd.f32 %v3069, %v3078
        %v3246 = vadd.f32 %v3070, %v3080
        %v3247 = vadd.f32 %v3071, %v3081
        %v3248 = vadd.f32 %v3072, %v3082
        %v3249 = vadd.f32 %v3073, %v3078
        %v3250 = vadd.f32 %v3074, %v3080
        %v3251 = vadd.f32 %v3075, %v3081
        %v3252 = vadd.f32 %v3076, %v3082
        %v3253 = vadd.f32 %v3077, %v3078
        %v3254 = vmax.f32 %v3086, 0.0
        %v3255 = vmax.f32 %v3087, 0.0
        %v3256 = vmax.f32 %v3088, 0.0
        %v3257 = vmax.f32 %v3089, 0.0
        %v3258 = vmax.f32 %v3090, 0.0
        %v3259 = vmax.f32 %v3091, 0.0
        %v3260 = vmax.f32 %v3092, 0.0
        %v3261 = vmax.f32 %v3093, 0.0
        %v3262 = vmax.f32 %v3094, 0.0
        %v3263 = vmax.f32 %v3095, 0.0
        %v3264 = vmax.f32 %v3096, 0.0
        %v3265 = vmax.f32 %v3097, 0.0
        %v3266 = vmax.f32 %v3098, 0.0
        %v3267 = vmax.f32 %v3099, 0.0
        %v3268 = vmax.f32 %v3100, 0.0
        %v3269 = vmax.f32 %v3101, 0.0
        %v3270 = vmax.f32 %v3102, 0.0
        %v3271 = vmax.f32 %v3103, 0.0
        %v3272 = vmax.f32 %v3104, 0.0
        %v3273 = vmax.f32 %v3105, 0.0
        %v3274 = vmax.f32 %v3106, 0.0
        %v3275 = vmax.f32 %v3107, 0.0
        %v3276 = vmax.f32 %v3108, 0.0
        %v3277 = vmax.f32 %v3109, 0.0
        %v3278 = vmax.f32 %v3110, 0.0
        %v3279 = vmax.f32 %v3111, 0.0
        %v3280 = vmax.f32 %v3112, 0.0
        %v3281 = vmax.f32 %v3113, 0.0
        %v3282 = vmax.f32 %v3114, 0.0
        %v3283 = vmax.f32 %v3115, 0.0
        %v3284 = vmax.f32 %v3116, 0.0
        %v3285 = vmax.f32 %v3117, 0.0
        %v3286 = vmax.f32 %v3118, 0.0
        %v3287 = vmax.f32 %v3119, 0.0
        %v3288 = vmax.f32 %v3120, 0.0
        %v3289 = vmax.f32 %v3121, 0.0
        %v3290 = vmax.f32 %v3122, 0.0
        %v3291 = vmax.f32 %v3123, 0.0
        %v3292 = vmax.f32 %v3124, 0.0
        %v3293 = vmax.f32 %v3125, 0.0
        %v3294 = vmax.f32 %v3126, 0.0
        %v3295 = vmax.f32 %v3127, 0.0
        %v3296 = vmax.f32 %v3128, 0.0
        %v3297 = vmax.f32 %v3129, 0.0
        %v3298 = vmax.f32 %v3130, 0.0
        %v3299 = vmax.f32 %v3131, 0.0
        %v3300 = vmax.f32 %v3132, 0.0
        %v3301 = vmax.f32 %v3133, 0.0
        %v3302 = vmax.f32 %v3134, 0.0
        %v3303 = vmax.f32 %v3135, 0.0
        %v3304 = vmax.f32 %v3136, 0.0
        %v3305 = vmax.f32 %v3137, 0.0
        %v3306 = vmax.f32 %v3138, 0.0
        %v3307 = vmax.f32 %v3139, 0.0
        %v3308 = vmax.f32 %v3140, 0.0
        %v3309 = vmax.f32 %v3141, 0.0
        %v3310 = vmax.f32 %v3142, 0.0
        %v3311 = vmax.f32 %v3143, 0.0
        %v3312 = vmax.f32 %v3144, 0.0
        %v3313 = vmax.f32 %v3145, 0.0
        %v3314 = vmax.f32 %v3146, 0.0
        %v3315 = vmax.f32 %v3147, 0.0
        %v3316 = vmax.f32 %v3148, 0.0
        %v3317 = vmax.f32 %v3149, 0.0
        %v3318 = vmax.f32 %v3150, 0.0
        %v3319 = vmax.f32 %v3151, 0.0
        %v3320 = vmax.f32 %v3152, 0.0
        %v3321 = vmax.f32 %v3153, 0.0
        %v3322 = vmax.f32 %v3154, 0.0
        %v3323 = vmax.f32 %v3155, 0.0
        %v3324 = vmax.f32 %v3156, 0.0
        %v3325 = vmax.f32 %v3157, 0.0
        %v3326 = vmax.f32 %v3158, 0.0
        %v3327 = vmax.f32 %v3159, 0.0
        %v3328 = vmax.f32 %v3160, 0.0
        %v3329 = vmax.f32 %v3161, 0.0
        %v3330 = vmax.f32 %v3162, 0.0
        %v3331 = vmax.f32 %v3163, 0.0
        %v3332 = vmax.f32 %v3164, 0.0
        %v3333 = vmax.f32 %v3165, 0.0
        %v3334 = vmax.f32 %v3166, 0.0
        %v3335 = vmax.f32 %v3167, 0.0
        %v3336 = vmax.f32 %v3168, 0.0
        %v3337 = vmax.f32 %v3169, 0.0
        %v3338 = vmax.f32 %v3170, 0.0
        %v3339 = vmax.f32 %v3171, 0.0
        %v3340 = vmax.f32 %v3172, 0.0
        %v3341 = vmax.f32 %v3173, 0.0
        %v3342 = vmax.f32 %v3174, 0.0
        %v3343 = vmax.f32 %v3175, 0.0
        %v3344 = vmax.f32 %v3176, 0.0
        %v3345 = vmax.f32 %v3177, 0.0
        %v3346 = vmax.f32 %v3178, 0.0
        %v3347 = vmax.f32 %v3179, 0.0
        %v3348 = vmax.f32 %v3180, 0.0
        %v3349 = vmax.f32 %v3181, 0.0
        %v3350 = vmax.f32 %v3182, 0.0
        %v3351 = vmax.f32 %v3183, 0.0
        %v3352 = vmax.f32 %v3184, 0.0
        %v3353 = vmax.f32 %v3185, 0.0
        %v3354 = vmax.f32 %v3186, 0.0
        %v3355 = vmax.f32 %v3187, 0.0
        %v3356 = vmax.f32 %v3188, 0.0
        %v3357 = vmax.f32 %v3189, 0.0
        %v3358 = vmax.f32 %v3190, 0.0
        %v3359 = vmax.f32 %v3191, 0.0
        %v3360 = vmax.f32 %v3192, 0.0
        %v3361 = vmax.f32 %v3193, 0.0
        %v3362 = vmax.f32 %v3194, 0.0
        %v3363 = vmax.f32 %v3195, 0.0
        %v3364 = vmax.f32 %v3196, 0.0
        %v3365 = vmax.f32 %v3197, 0.0
        %v3366 = vmax.f32 %v3198, 0.0
        %v3367 = vmax.f32 %v3199, 0.0
        %v3368 = vmax.f32 %v3200, 0.0
        %v3369 = vmax.f32 %v3201, 0.0
        %v3370 = vmax.f32 %v3202, 0.0
        %v3371 = vmax.f32 %v3203, 0.0
        %v3372 = vmax.f32 %v3204, 0.0
        %v3373 = vmax.f32 %v3205, 0.0
        %v3374 = vmax.f32 %v3206, 0.0
        %v3375 = vmax.f32 %v3207, 0.0
        %v3376 = vmax.f32 %v3208, 0.0
        %v3377 = vmax.f32 %v3209, 0.0
        %v3378 = vmax.f32 %v3210, 0.0
        %v3379 = vmax.f32 %v3211, 0.0
        %v3380 = vmax.f32 %v3212, 0.0
        %v3381 = vmax.f32 %v3213, 0.0
        %v3382 = vmax.f32 %v3214, 0.0
        %v3383 = vmax.f32 %v3215, 0.0
        %v3384 = vmax.f32 %v3216, 0.0
        %v3385 = vmax.f32 %v3217, 0.0
        %v3386 = vmax.f32 %v3218, 0.0
        %v3387 = vmax.f32 %v3219, 0.0
        %v3388 = vmax.f32 %v3220, 0.0
        %v3389 = vmax.f32 %v3221, 0.0
        %v3390 = vmax.f32 %v3222, 0.0
        %v3391 = vmax.f32 %v3223, 0.0
        %v3392 = vmax.f32 %v3224, 0.0
        %v3393 = vmax.f32 %v3225, 0.0
        %v3394 = vmax.f32 %v3226, 0.0
        %v3395 = vmax.f32 %v3227, 0.0
        %v3396 = vmax.f32 %v3228, 0.0
        %v3397 = vmax.f32 %v3229, 0.0
        %v3398 = vmax.f32 %v3230, 0.0
        %v3399 = vmax.f32 %v3231, 0.0
        %v3400 = vmax.f32 %v3232, 0.0
        %v3401 = vmax.f32 %v3233, 0.0
        %v3402 = vmax.f32 %v3234, 0.0
        %v3403 = vmax.f32 %v3235, 0.0
        %v3404 = vmax.f32 %v3236, 0.0
        %v3405 = vmax.f32 %v3237, 0.0
        %v3406 = vmax.f32 %v3238, 0.0
        %v3407 = vmax.f32 %v3239, 0.0
        %v3408 = vmax.f32 %v3240, 0.0
        %v3409 = vmax.f32 %v3241, 0.0
        %v3410 = vmax.f32 %v3242, 0.0
        %v3411 = vmax.f32 %v3243, 0.0
        %v3412 = vmax.f32 %v3244, 0.0
        %v3413 = vmax.f32 %v3245, 0.0
        %v3414 = vmax.f32 %v3246, 0.0
        %v3415 = vmax.f32 %v3247, 0.0
        %v3416 = vmax.f32 %v3248, 0.0
        %v3417 = vmax.f32 %v3249, 0.0
        %v3418 = vmax.f32 %v3250, 0.0
        %v3419 = vmax.f32 %v3251, 0.0
        %v3420 = vmax.f32 %v3252, 0.0
        %v3421 = vmax.f32 %v3253, 0.0
        %3590 = vst [vmem:[#allocation1] ss:$4 sm:$0xff] %v3254
        %s3591 = scalar_lea.vmem [#allocation1], 1
        %3592 = vst [vmem:[%s3591] ss:$4 sm:$0xff] %v3255
        %s3593 = scalar_lea.vmem [#allocation1], 2
        %3594 = vst [vmem:[%s3593] ss:$4 sm:$0xff] %v3256
        %s3595 = scalar_lea.vmem [#allocation1], 3
        %3596 = vst [vmem:[%s3595] ss:$4 sm:$0xff] %v3257
        %s3597 = scalar_lea.vmem [#allocation1], 32
        %3598 = vst [vmem:[%s3597] ss:$4 sm:$0xff] %v3258
        %s3599 = scalar_lea.vmem [#allocation1], 33
        %3600 = vst [vmem:[%s3599] ss:$4 sm:$0xff] %v3259
        %s3601 = scalar_lea.vmem [#allocation1], 34
        %3602 = vst [vmem:[%s3601] ss:$4 sm:$0xff] %v3260
        %s3603 = scalar_lea.vmem [#allocation1], 35
        %3604 = vst [vmem:[%s3603] ss:$4 sm:$0xff] %v3261
        %v3605 = vld.sshfl [vmem:[#allocation1] sm:$0xff pattern:$0x73625140]
        %v3606 = vld.sshfl [vmem:[#allocation1 + $0x20] sm:$0xff pattern:$0x73625140]
        %3607 = vst [vmem:[#allocation1] ss:$4 sm:$0xff] %v3262
        %3608 = vst [vmem:[%s3591] ss:$4 sm:$0xff] %v3263
        %3609 = vst [vmem:[%s3593] ss:$4 sm:$0xff] %v3264
        %3610 = vst [vmem:[%s3595] ss:$4 sm:$0xff] %v3265
        %3611 = vst [vmem:[%s3597] ss:$4 sm:$0xff] %v3266
        %3612 = vst [vmem:[%s3599] ss:$4 sm:$0xff] %v3267
        %3613 = vst [vmem:[%s3601] ss:$4 sm:$0xff] %v3268
        %3614 = vst [vmem:[%s3603] ss:$4 sm:$0xff] %v3269
        %v3615 = vld.sshfl [vmem:[#allocation1] sm:$0xff pattern:$0x73625140]
        %v3616 = vld.sshfl [vmem:[#allocation1 + $0x20] sm:$0xff pattern:$0x73625140]
        %3617 = vst [vmem:[#allocation1] ss:$4 sm:$0xff] %v3270
        %3618 = vst [vmem:[%s3591] ss:$4 sm:$0xff] %v3271
        %3619 = vst [vmem:[%s3593] ss:$4 sm:$0xff] %v3272
        %3620 = vst [vmem:[%s3595] ss:$4 sm:$0xff] %v3273
        %3621 = vst [vmem:[%s3597] ss:$4 sm:$0xff] %v3274
        %v3622 = vld.sshfl [vmem:[#allocation1] sm:$0xff pattern:$0x73625140]
        %v3623 = vld.sshfl [vmem:[#allocation1 + $0x20] sm:$0xff pattern:$0x73625140]
        %3624 = vst [vmem:[#allocation1] ss:$4 sm:$0xff] %v3275
        %3625 = vst [vmem:[%s3591] ss:$4 sm:$0xff] %v3276
        %3626 = vst [vmem:[%s3593] ss:$4 sm:$0xff] %v3277
        %3627 = vst [vmem:[%s3595] ss:$4 sm:$0xff] %v3278
        %3628 = vst [vmem:[%s3597] ss:$4 sm:$0xff] %v3279
        %3629 = vst [vmem:[%s3599] ss:$4 sm:$0xff] %v3280
        %3630 = vst [vmem:[%s3601] ss:$4 sm:$0xff] %v3281
        %3631 = vst [vmem:[%s3603] ss:$4 sm:$0xff] %v3282
        %v3632 = vld.sshfl [vmem:[#allocation1] sm:$0xff pattern:$0x73625140]
        %v3633 = vld.sshfl [vmem:[#allocation1 + $0x20] sm:$0xff pattern:$0x73625140]
        %3634 = vst [vmem:[#allocation1] ss:$4 sm:$0xff] %v3283
        %3635 = vst [vmem:[%s3591] ss:$4 sm:$0xff] %v3284
        %3636 = vst [vmem:[%s3593] ss:$4 sm:$0xff] %v3285
        %3637 = vst [vmem:[%s3595] ss:$4 sm:$0xff] %v3286
        %3638 = vst [vmem:[%s3597] ss:$4 sm:$0xff] %v3287
        %3639 = vst [vmem:[%s3599] ss:$4 sm:$0xff] %v3288
        %3640 = vst [vmem:[%s3601] ss:$4 sm:$0xff] %v3289
        %3641 = vst [vmem:[%s3603] ss:$4 sm:$0xff] %v3290
        %v3642 = vld.sshfl [vmem:[#allocation1] sm:$0xff pattern:$0x73625140]
        %v3643 = vld.sshfl [vmem:[#allocation1 + $0x20] sm:$0xff pattern:$0x73625140]
        %3644 = vst [vmem:[#allocation1] ss:$4 sm:$0xff] %v3291
        %3645 = vst [vmem:[%s3591] ss:$4 sm:$0xff] %v3292
        %3646 = vst [vmem:[%s3593] ss:$4 sm:$0xff] %v3293
        %3647 = vst [vmem:[%s3595] ss:$4 sm:$0xff] %v3294
        %3648 = vst [vmem:[%s3597] ss:$4 sm:$0xff] %v3295
        %v3649 = vld.sshfl [vmem:[#allocation1] sm:$0xff pattern:$0x73625140]
        %v3650 = vld.sshfl [vmem:[#allocation1 + $0x20] sm:$0xff pattern:$0x73625140]
        %3651 = vst [vmem:[#allocation1] ss:$4 sm:$0xff] %v3296
        %3652 = vst [vmem:[%s3591] ss:$4 sm:$0xff] %v3297
        %3653 = vst [vmem:[%s3593] ss:$4 sm:$0xff] %v3298
        %3654 = vst [vmem:[%s3595] ss:$4 sm:$0xff] %v3299
        %3655 = vst [vmem:[%s3597] ss:$4 sm:$0xff] %v3300
        %3656 = vst [vmem:[%s3599] ss:$4 sm:$0xff] %v3301
        %3657 = vst [vmem:[%s3601] ss:$4 sm:$0xff] %v3302
        %3658 = vst [vmem:[%s3603] ss:$4 sm:$0xff] %v3303
        %v3659 = vld.sshfl [vmem:[#allocation1] sm:$0xff pattern:$0x73625140]
        %v3660 = vld.sshfl [vmem:[#allocation1 + $0x20] sm:$0xff pattern:$0x73625140]
        %3661 = vst [vmem:[#allocation1] ss:$4 sm:$0xff] %v3304
        %3662 = vst [vmem:[%s3591] ss:$4 sm:$0xff] %v3305
        %3663 = vst [vmem:[%s3593] ss:$4 sm:$0xff] %v3306
        %3664 = vst [vmem:[%s3595] ss:$4 sm:$0xff] %v3307
        %3665 = vst [vmem:[%s3597] ss:$4 sm:$0xff] %v3308
        %3666 = vst [vmem:[%s3599] ss:$4 sm:$0xff] %v3309
        %3667 = vst [vmem:[%s3601] ss:$4 sm:$0xff] %v3310
        %3668 = vst [vmem:[%s3603] ss:$4 sm:$0xff] %v3311
        %v3669 = vld.sshfl [vmem:[#allocation1] sm:$0xff pattern:$0x73625140]
        %v3670 = vld.sshfl [vmem:[#allocation1 + $0x20] sm:$0xff pattern:$0x73625140]
        %3671 = vst [vmem:[#allocation1] ss:$4 sm:$0xff] %v3312
        %3672 = vst [vmem:[%s3591] ss:$4 sm:$0xff] %v3313
        %3673 = vst [vmem:[%s3593] ss:$4 sm:$0xff] %v3314
        %3674 = vst [vmem:[%s3595] ss:$4 sm:$0xff] %v3315
        %3675 = vst [vmem:[%s3597] ss:$4 sm:$0xff] %v3316
        %v3676 = vld.sshfl [vmem:[#allocation1] sm:$0xff pattern:$0x73625140]
        %v3677 = vld.sshfl [vmem:[#allocation1 + $0x20] sm:$0xff pattern:$0x73625140]
        %3678 = vst [vmem:[#allocation1] ss:$4 sm:$0xff] %v3317
        %3679 = vst [vmem:[%s3591] ss:$4 sm:$0xff] %v3318
        %3680 = vst [vmem:[%s3593] ss:$4 sm:$0xff] %v3319
        %3681 = vst [vmem:[%s3595] ss:$4 sm:$0xff] %v3320
        %3682 = vst [vmem:[%s3597] ss:$4 sm:$0xff] %v3321
        %3683 = vst [vmem:[%s3599] ss:$4 sm:$0xff] %v3322
        %3684 = vst [vmem:[%s3601] ss:$4 sm:$0xff] %v3323
        %3685 = vst [vmem:[%s3603] ss:$4 sm:$0xff] %v3324
        %v3686 = vld.sshfl [vmem:[#allocation1] sm:$0xff pattern:$0x73625140]
        %v3687 = vld.sshfl [vmem:[#allocation1 + $0x20] sm:$0xff pattern:$0x73625140]
        %3688 = vst [vmem:[#allocation1] ss:$4 sm:$0xff] %v3325
        %3689 = vst [vmem:[%s3591] ss:$4 sm:$0xff] %v3326
        %3690 = vst [vmem:[%s3593] ss:$4 sm:$0xff] %v3327
        %3691 = vst [vmem:[%s3595] ss:$4 sm:$0xff] %v3328
        %3692 = vst [vmem:[%s3597] ss:$4 sm:$0xff] %v3329
        %3693 = vst [vmem:[%s3599] ss:$4 sm:$0xff] %v3330
        %3694 = vst [vmem:[%s3601] ss:$4 sm:$0xff] %v3331
        %3695 = vst [vmem:[%s3603] ss:$4 sm:$0xff] %v3332
        %v3696 = vld.sshfl [vmem:[#allocation1] sm:$0xff pattern:$0x73625140]
        %v3697 = vld.sshfl [vmem:[#allocation1 + $0x20] sm:$0xff pattern:$0x73625140]
        %3698 = vst [vmem:[#allocation1] ss:$4 sm:$0xff] %v3333
        %3699 = vst [vmem:[%s3591] ss:$4 sm:$0xff] %v3334
        %3700 = vst [vmem:[%s3593] ss:$4 sm:$0xff] %v3335
        %3701 = vst [vmem:[%s3595] ss:$4 sm:$0xff] %v3336
        %3702 = vst [vmem:[%s3597] ss:$4 sm:$0xff] %v3337
        %v3703 = vld.sshfl [vmem:[#allocation1] sm:$0xff pattern:$0x73625140]
        %v3704 = vld.sshfl [vmem:[#allocation1 + $0x20] sm:$0xff pattern:$0x73625140]
        %3705 = vst [vmem:[#allocation1] ss:$4 sm:$0xff] %v3338
        %3706 = vst [vmem:[%s3591] ss:$4 sm:$0xff] %v3339
        %3707 = vst [vmem:[%s3593] ss:$4 sm:$0xff] %v3340
        %3708 = vst [vmem:[%s3595] ss:$4 sm:$0xff] %v3341
        %3709 = vst [vmem:[%s3597] ss:$4 sm:$0xff] %v3342
        %3710 = vst [vmem:[%s3599] ss:$4 sm:$0xff] %v3343
        %3711 = vst [vmem:[%s3601] ss:$4 sm:$0xff] %v3344
        %3712 = vst [vmem:[%s3603] ss:$4 sm:$0xff] %v3345
        %v3713 = vld.sshfl [vmem:[#allocation1] sm:$0xff pattern:$0x73625140]
        %v3714 = vld.sshfl [vmem:[#allocation1 + $0x20] sm:$0xff pattern:$0x73625140]
        %3715 = vst [vmem:[#allocation1] ss:$4 sm:$0xff] %v3346
        %3716 = vst [vmem:[%s3591] ss:$4 sm:$0xff] %v3347
        %3717 = vst [vmem:[%s3593] ss:$4 sm:$0xff] %v3348
        %3718 = vst [vmem:[%s3595] ss:$4 sm:$0xff] %v3349
        %3719 = vst [vmem:[%s3597] ss:$4 sm:$0xff] %v3350
        %3720 = vst [vmem:[%s3599] ss:$4 sm:$0xff] %v3351
        %3721 = vst [vmem:[%s3601] ss:$4 sm:$0xff] %v3352
        %3722 = vst [vmem:[%s3603] ss:$4 sm:$0xff] %v3353
        %v3723 = vld.sshfl [vmem:[#allocation1] sm:$0xff pattern:$0x73625140]
        %v3724 = vld.sshfl [vmem:[#allocation1 + $0x20] sm:$0xff pattern:$0x73625140]
        %3725 = vst [vmem:[#allocation1] ss:$4 sm:$0xff] %v3354
        %3726 = vst [vmem:[%s3591] ss:$4 sm:$0xff] %v3355
        %3727 = vst [vmem:[%s3593] ss:$4 sm:$0xff] %v3356
        %3728 = vst [vmem:[%s3595] ss:$4 sm:$0xff] %v3357
        %3729 = vst [vmem:[%s3597] ss:$4 sm:$0xff] %v3358
        %v3730 = vld.sshfl [vmem:[#allocation1] sm:$0xff pattern:$0x73625140]
        %v3731 = vld.sshfl [vmem:[#allocation1 + $0x20] sm:$0xff pattern:$0x73625140]
        %3732 = vst [vmem:[#allocation1] ss:$4 sm:$0xff] %v3359
        %3733 = vst [vmem:[%s3591] ss:$4 sm:$0xff] %v3360
        %3734 = vst [vmem:[%s3593] ss:$4 sm:$0xff] %v3361
        %3735 = vst [vmem:[%s3595] ss:$4 sm:$0xff] %v3362
        %3736 = vst [vmem:[%s3597] ss:$4 sm:$0xff] %v3363
        %3737 = vst [vmem:[%s3599] ss:$4 sm:$0xff] %v3364
        %3738 = vst [vmem:[%s3601] ss:$4 sm:$0xff] %v3365
        %3739 = vst [vmem:[%s3603] ss:$4 sm:$0xff] %v3366
        %v3740 = vld.sshfl [vmem:[#allocation1] sm:$0xff pattern:$0x73625140]
        %v3741 = vld.sshfl [vmem:[#allocation1 + $0x20] sm:$0xff pattern:$0x73625140]
        %3742 = vst [vmem:[#allocation1] ss:$4 sm:$0xff] %v3367
        %3743 = vst [vmem:[%s3591] ss:$4 sm:$0xff] %v3368
        %3744 = vst [vmem:[%s3593] ss:$4 sm:$0xff] %v3369
        %3745 = vst [vmem:[%s3595] ss:$4 sm:$0xff] %v3370
        %3746 = vst [vmem:[%s3597] ss:$4 sm:$0xff] %v3371
        %3747 = vst [vmem:[%s3599] ss:$4 sm:$0xff] %v3372
        %3748 = vst [vmem:[%s3601] ss:$4 sm:$0xff] %v3373
        %3749 = vst [vmem:[%s3603] ss:$4 sm:$0xff] %v3374
        %v3750 = vld.sshfl [vmem:[#allocation1] sm:$0xff pattern:$0x73625140]
        %v3751 = vld.sshfl [vmem:[#allocation1 + $0x20] sm:$0xff pattern:$0x73625140]
        %3752 = vst [vmem:[#allocation1] ss:$4 sm:$0xff] %v3375
        %3753 = vst [vmem:[%s3591] ss:$4 sm:$0xff] %v3376
        %3754 = vst [vmem:[%s3593] ss:$4 sm:$0xff] %v3377
        %3755 = vst [vmem:[%s3595] ss:$4 sm:$0xff] %v3378
        %3756 = vst [vmem:[%s3597] ss:$4 sm:$0xff] %v3379
        %v3757 = vld.sshfl [vmem:[#allocation1] sm:$0xff pattern:$0x73625140]
        %v3758 = vld.sshfl [vmem:[#allocation1 + $0x20] sm:$0xff pattern:$0x73625140]
        %3759 = vst [vmem:[#allocation1] ss:$4 sm:$0xff] %v3380
        %3760 = vst [vmem:[%s3591] ss:$4 sm:$0xff] %v3381
        %3761 = vst [vmem:[%s3593] ss:$4 sm:$0xff] %v3382
        %3762 = vst [vmem:[%s3595] ss:$4 sm:$0xff] %v3383
        %3763 = vst [vmem:[%s3597] ss:$4 sm:$0xff] %v3384
        %3764 = vst [vmem:[%s3599] ss:$4 sm:$0xff] %v3385
        %3765 = vst [vmem:[%s3601] ss:$4 sm:$0xff] %v3386
        %3766 = vst [vmem:[%s3603] ss:$4 sm:$0xff] %v3387
        %v3767 = vld.sshfl [vmem:[#allocation1] sm:$0xff pattern:$0x73625140]
        %v3768 = vld.sshfl [vmem:[#allocation1 + $0x20] sm:$0xff pattern:$0x73625140]
        %3769 = vst [vmem:[#allocation1] ss:$4 sm:$0xff] %v3388
        %3770 = vst [vmem:[%s3591] ss:$4 sm:$0xff] %v3389
        %3771 = vst [vmem:[%s3593] ss:$4 sm:$0xff] %v3390
        %3772 = vst [vmem:[%s3595] ss:$4 sm:$0xff] %v3391
        %3773 = vst [vmem:[%s3597] ss:$4 sm:$0xff] %v3392
        %3774 = vst [vmem:[%s3599] ss:$4 sm:$0xff] %v3393
        %3775 = vst [vmem:[%s3601] ss:$4 sm:$0xff] %v3394
        %3776 = vst [vmem:[%s3603] ss:$4 sm:$0xff] %v3395
        %v3777 = vld.sshfl [vmem:[#allocation1] sm:$0xff pattern:$0x73625140]
        %v3778 = vld.sshfl [vmem:[#allocation1 + $0x20] sm:$0xff pattern:$0x73625140]
        %3779 = vst [vmem:[#allocation1] ss:$4 sm:$0xff] %v3396
        %3780 = vst [vmem:[%s3591] ss:$4 sm:$0xff] %v3397
        %3781 = vst [vmem:[%s3593] ss:$4 sm:$0xff] %v3398
        %3782 = vst [vmem:[%s3595] ss:$4 sm:$0xff] %v3399
        %3783 = vst [vmem:[%s3597] ss:$4 sm:$0xff] %v3400
        %v3784 = vld.sshfl [vmem:[#allocation1] sm:$0xff pattern:$0x73625140]
        %v3785 = vld.sshfl [vmem:[#allocation1 + $0x20] sm:$0xff pattern:$0x73625140]
        %3786 = vst [vmem:[#allocation1] ss:$4 sm:$0xff] %v3401
        %3787 = vst [vmem:[%s3591] ss:$4 sm:$0xff] %v3402
        %3788 = vst [vmem:[%s3593] ss:$4 sm:$0xff] %v3403
        %3789 = vst [vmem:[%s3595] ss:$4 sm:$0xff] %v3404
        %3790 = vst [vmem:[%s3597] ss:$4 sm:$0xff] %v3405
        %3791 = vst [vmem:[%s3599] ss:$4 sm:$0xff] %v3406
        %3792 = vst [vmem:[%s3601] ss:$4 sm:$0xff] %v3407
        %3793 = vst [vmem:[%s3603] ss:$4 sm:$0xff] %v3408
        %v3794 = vld.sshfl [vmem:[#allocation1] sm:$0xff pattern:$0x73625140]
        %v3795 = vld.sshfl [vmem:[#allocation1 + $0x20] sm:$0xff pattern:$0x73625140]
        %3796 = vst [vmem:[#allocation1] ss:$4 sm:$0xff] %v3409
        %3797 = vst [vmem:[%s3591] ss:$4 sm:$0xff] %v3410
        %3798 = vst [vmem:[%s3593] ss:$4 sm:$0xff] %v3411
        %3799 = vst [vmem:[%s3595] ss:$4 sm:$0xff] %v3412
        %3800 = vst [vmem:[%s3597] ss:$4 sm:$0xff] %v3413
        %3801 = vst [vmem:[%s3599] ss:$4 sm:$0xff] %v3414
        %3802 = vst [vmem:[%s3601] ss:$4 sm:$0xff] %v3415
        %3803 = vst [vmem:[%s3603] ss:$4 sm:$0xff] %v3416
        %v3804 = vld.sshfl [vmem:[#allocation1] sm:$0xff pattern:$0x73625140]
        %v3805 = vld.sshfl [vmem:[#allocation1 + $0x20] sm:$0xff pattern:$0x73625140]
        %3806 = vst [vmem:[#allocation1] ss:$4 sm:$0xff] %v3417
        %3807 = vst [vmem:[%s3591] ss:$4 sm:$0xff] %v3418
        %3808 = vst [vmem:[%s3593] ss:$4 sm:$0xff] %v3419
        %3809 = vst [vmem:[%s3595] ss:$4 sm:$0xff] %v3420
        %3810 = vst [vmem:[%s3597] ss:$4 sm:$0xff] %v3421
        %v3811 = vld.sshfl [vmem:[#allocation1] sm:$0xff pattern:$0x73625140]
        %v3812 = vld.sshfl [vmem:[#allocation1 + $0x20] sm:$0xff pattern:$0x73625140]
        %vm3861 = vcmask 130048
        %3862 = vst.msk [vmem:[#allocation2] sm:$0xff] %vm3861, %v3605
        %3863 = vst.msk [vmem:[#allocation2 + $0x8] sm:$0xff] %vm3861, %v3606
        %3864 = vst.msk [vmem:[#allocation2 + $0x10] sm:$0xff] %vm3861, %v3615
        %3865 = vst.msk [vmem:[#allocation2 + $0x18] sm:$0xff] %vm3861, %v3616
        %3866 = vst.msk [vmem:[#allocation2 + $0x20] sm:$0xff] %vm3861, %v3622
        %vm3867 = vcmask 123904
        %3868 = vst.msk [vmem:[#allocation2 + $0x28] sm:$0x3] %vm3867, %v3623
        %3869 = vst.msk [vmem:[#allocation2 + $0x30] sm:$0xff] %vm3861, %v3632
        %3870 = vst.msk [vmem:[#allocation2 + $0x38] sm:$0xff] %vm3861, %v3633
        %3871 = vst.msk [vmem:[#allocation2 + $0x40] sm:$0xff] %vm3861, %v3642
        %3872 = vst.msk [vmem:[#allocation2 + $0x48] sm:$0xff] %vm3861, %v3643
        %3873 = vst.msk [vmem:[#allocation2 + $0x50] sm:$0xff] %vm3861, %v3649
        %3874 = vst.msk [vmem:[#allocation2 + $0x58] sm:$0x3] %vm3867, %v3650
        %3875 = vst.msk [vmem:[#allocation2 + $0x60] sm:$0xff] %vm3861, %v3659
        %3876 = vst.msk [vmem:[#allocation2 + $0x68] sm:$0xff] %vm3861, %v3660
        %3877 = vst.msk [vmem:[#allocation2 + $0x70] sm:$0xff] %vm3861, %v3669
        %3878 = vst.msk [vmem:[#allocation2 + $0x78] sm:$0xff] %vm3861, %v3670
        %3879 = vst.msk [vmem:[#allocation2 + $0x80] sm:$0xff] %vm3861, %v3676
        %3880 = vst.msk [vmem:[#allocation2 + $0x88] sm:$0x3] %vm3867, %v3677
        %3881 = vst.msk [vmem:[#allocation2 + $0x90] sm:$0xff] %vm3861, %v3686
        %3882 = vst.msk [vmem:[#allocation2 + $0x98] sm:$0xff] %vm3861, %v3687
        %3883 = vst.msk [vmem:[#allocation2 + $0xa0] sm:$0xff] %vm3861, %v3696
        %3884 = vst.msk [vmem:[#allocation2 + $0xa8] sm:$0xff] %vm3861, %v3697
        %3885 = vst.msk [vmem:[#allocation2 + $0xb0] sm:$0xff] %vm3861, %v3703
        %3886 = vst.msk [vmem:[#allocation2 + $0xb8] sm:$0x3] %vm3867, %v3704
        %3887 = vst.msk [vmem:[#allocation2 + $0xc0] sm:$0xff] %vm3861, %v3713
        %3888 = vst.msk [vmem:[#allocation2 + $0xc8] sm:$0xff] %vm3861, %v3714
        %3889 = vst.msk [vmem:[#allocation2 + $0xd0] sm:$0xff] %vm3861, %v3723
        %3890 = vst.msk [vmem:[#allocation2 + $0xd8] sm:$0xff] %vm3861, %v3724
        %3891 = vst.msk [vmem:[#allocation2 + $0xe0] sm:$0xff] %vm3861, %v3730
        %3892 = vst.msk [vmem:[#allocation2 + $0xe8] sm:$0x3] %vm3867, %v3731
        %3893 = vst.msk [vmem:[#allocation2 + $0xf0] sm:$0xff] %vm3861, %v3740
        %3894 = vst.msk [vmem:[#allocation2 + $0xf8] sm:$0xff] %vm3861, %v3741
        %3895 = vst.msk [vmem:[#allocation2 + $0x100] sm:$0xff] %vm3861, %v3750
        %3896 = vst.msk [vmem:[#allocation2 + $0x108] sm:$0xff] %vm3861, %v3751
        %3897 = vst.msk [vmem:[#allocation2 + $0x110] sm:$0xff] %vm3861, %v3757
        %3898 = vst.msk [vmem:[#allocation2 + $0x118] sm:$0x3] %vm3867, %v3758
        %3899 = vst.msk [vmem:[#allocation2 + $0x120] sm:$0xff] %vm3861, %v3767
        %3900 = vst.msk [vmem:[#allocation2 + $0x128] sm:$0xff] %vm3861, %v3768
        %3901 = vst.msk [vmem:[#allocation2 + $0x130] sm:$0xff] %vm3861, %v3777
        %3902 = vst.msk [vmem:[#allocation2 + $0x138] sm:$0xff] %vm3861, %v3778
        %3903 = vst.msk [vmem:[#allocation2 + $0x140] sm:$0xff] %vm3861, %v3784
        %3904 = vst.msk [vmem:[#allocation2 + $0x148] sm:$0x3] %vm3867, %v3785
        %3905 = vst.msk [vmem:[#allocation2 + $0x150] sm:$0xff] %vm3861, %v3794
        %3906 = vst.msk [vmem:[#allocation2 + $0x158] sm:$0xff] %vm3861, %v3795
        %3907 = vst.msk [vmem:[#allocation2 + $0x160] sm:$0xff] %vm3861, %v3804
        %3908 = vst.msk [vmem:[#allocation2 + $0x168] sm:$0xff] %vm3861, %v3805
        %3909 = vst.msk [vmem:[#allocation2 + $0x170] sm:$0xff] %vm3861, %v3811
        %3910 = vst.msk [vmem:[#allocation2 + $0x178] sm:$0x3] %vm3867, %v3812
        %v3911 = vld [vmem:[#allocation2] ss:$3 sm:$0xff]
        %s3912 = scalar_lea.vmem [#allocation2], 24
        %v3913 = vld [vmem:[%s3912] ss:$3 sm:$0x3f]
        %s3914 = scalar_lea.vmem [#allocation2], 48
        %v3915 = vld [vmem:[%s3914] ss:$3 sm:$0xff]
        %s3916 = scalar_lea.vmem [#allocation2], 72
        %v3917 = vld [vmem:[%s3916] ss:$3 sm:$0x3f]
        %s3918 = scalar_lea.vmem [#allocation2], 96
        %v3919 = vld [vmem:[%s3918] ss:$3 sm:$0xff]
        %s3920 = scalar_lea.vmem [#allocation2], 120
        %v3921 = vld [vmem:[%s3920] ss:$3 sm:$0x3f]
        %s3922 = scalar_lea.vmem [#allocation2], 144
        %v3923 = vld [vmem:[%s3922] ss:$3 sm:$0xff]
        %s3924 = scalar_lea.vmem [#allocation2], 168
        %v3925 = vld [vmem:[%s3924] ss:$3 sm:$0x3f]
        %s3926 = scalar_lea.vmem [#allocation2], 192
        %v3927 = vld [vmem:[%s3926] ss:$3 sm:$0xff]
        %s3928 = scalar_lea.vmem [#allocation2], 216
        %v3929 = vld [vmem:[%s3928] ss:$3 sm:$0x3f]
        %s3930 = scalar_lea.vmem [#allocation2], 240
        %v3931 = vld [vmem:[%s3930] ss:$3 sm:$0xff]
        %s3932 = scalar_lea.vmem [#allocation2], 264
        %v3933 = vld [vmem:[%s3932] ss:$3 sm:$0x3f]
        %s3934 = scalar_lea.vmem [#allocation2], 288
        %v3935 = vld [vmem:[%s3934] ss:$3 sm:$0xff]
        %s3936 = scalar_lea.vmem [#allocation2], 312
        %v3937 = vld [vmem:[%s3936] ss:$3 sm:$0x3f]
        %s3938 = scalar_lea.vmem [#allocation2], 336
        %v3939 = vld [vmem:[%s3938] ss:$3 sm:$0xff]
        %s3940 = scalar_lea.vmem [#allocation2], 360
        %v3941 = vld [vmem:[%s3940] ss:$3 sm:$0x3f]
        %s3942 = scalar_lea.vmem [#allocation2], 1
        %v3943 = vld [vmem:[%s3942] ss:$3 sm:$0xff]
        %s3944 = scalar_lea.vmem [#allocation2], 25
        %v3945 = vld [vmem:[%s3944] ss:$3 sm:$0x3f]
        %s3946 = scalar_lea.vmem [#allocation2], 49
        %v3947 = vld [vmem:[%s3946] ss:$3 sm:$0xff]
        %s3948 = scalar_lea.vmem [#allocation2], 73
        %v3949 = vld [vmem:[%s3948] ss:$3 sm:$0x3f]
        %s3950 = scalar_lea.vmem [#allocation2], 97
        %v3951 = vld [vmem:[%s3950] ss:$3 sm:$0xff]
        %s3952 = scalar_lea.vmem [#allocation2], 121
        %v3953 = vld [vmem:[%s3952] ss:$3 sm:$0x3f]
        %s3954 = scalar_lea.vmem [#allocation2], 145
        %v3955 = vld [vmem:[%s3954] ss:$3 sm:$0xff]
        %s3956 = scalar_lea.vmem [#allocation2], 169
        %v3957 = vld [vmem:[%s3956] ss:$3 sm:$0x3f]
        %s3958 = scalar_lea.vmem [#allocation2], 193
        %v3959 = vld [vmem:[%s3958] ss:$3 sm:$0xff]
        %s3960 = scalar_lea.vmem [#allocation2], 217
        %v3961 = vld [vmem:[%s3960] ss:$3 sm:$0x3f]
        %s3962 = scalar_lea.vmem [#allocation2], 241
        %v3963 = vld [vmem:[%s3962] ss:$3 sm:$0xff]
        %s3964 = scalar_lea.vmem [#allocation2], 265
        %v3965 = vld [vmem:[%s3964] ss:$3 sm:$0x3f]
        %s3966 = scalar_lea.vmem [#allocation2], 289
        %v3967 = vld [vmem:[%s3966] ss:$3 sm:$0xff]
        %s3968 = scalar_lea.vmem [#allocation2], 313
        %v3969 = vld [vmem:[%s3968] ss:$3 sm:$0x3f]
        %s3970 = scalar_lea.vmem [#allocation2], 337
        %v3971 = vld [vmem:[%s3970] ss:$3 sm:$0xff]
        %s3972 = scalar_lea.vmem [#allocation2], 361
        %v3973 = vld [vmem:[%s3972] ss:$3 sm:$0x3f]
        %v3974 = vmax.f32 %v3911, %v3943
        %v3975 = vmax.f32 %v3913, %v3945
        %v3976 = vmax.f32 %v3915, %v3947
        %v3977 = vmax.f32 %v3917, %v3949
        %v3978 = vmax.f32 %v3919, %v3951
        %v3979 = vmax.f32 %v3921, %v3953
        %v3980 = vmax.f32 %v3923, %v3955
        %v3981 = vmax.f32 %v3925, %v3957
        %v3982 = vmax.f32 %v3927, %v3959
        %v3983 = vmax.f32 %v3929, %v3961
        %v3984 = vmax.f32 %v3931, %v3963
        %v3985 = vmax.f32 %v3933, %v3965
        %v3986 = vmax.f32 %v3935, %v3967
        %v3987 = vmax.f32 %v3937, %v3969
        %v3988 = vmax.f32 %v3939, %v3971
        %v3989 = vmax.f32 %v3941, %v3973
        %s3990 = scalar_lea.vmem [#allocation2], 2
        %v3991 = vld [vmem:[%s3990] ss:$3 sm:$0xff]
        %s3992 = scalar_lea.vmem [#allocation2], 26
        %v3993 = vld [vmem:[%s3992] ss:$3 sm:$0x3f]
        %s3994 = scalar_lea.vmem [#allocation2], 50
        %v3995 = vld [vmem:[%s3994] ss:$3 sm:$0xff]
        %s3996 = scalar_lea.vmem [#allocation2], 74
        %v3997 = vld [vmem:[%s3996] ss:$3 sm:$0x3f]
        %s3998 = scalar_lea.vmem [#allocation2], 98
        %v3999 = vld [vmem:[%s3998] ss:$3 sm:$0xff]
        %s4000 = scalar_lea.vmem [#allocation2], 122
        %v4001 = vld [vmem:[%s4000] ss:$3 sm:$0x3f]
        %s4002 = scalar_lea.vmem [#allocation2], 146
        %v4003 = vld [vmem:[%s4002] ss:$3 sm:$0xff]
        %s4004 = scalar_lea.vmem [#allocation2], 170
        %v4005 = vld [vmem:[%s4004] ss:$3 sm:$0x3f]
        %s4006 = scalar_lea.vmem [#allocation2], 194
        %v4007 = vld [vmem:[%s4006] ss:$3 sm:$0xff]
        %s4008 = scalar_lea.vmem [#allocation2], 218
        %v4009 = vld [vmem:[%s4008] ss:$3 sm:$0x3f]
        %s4010 = scalar_lea.vmem [#allocation2], 242
        %v4011 = vld [vmem:[%s4010] ss:$3 sm:$0xff]
        %s4012 = scalar_lea.vmem [#allocation2], 266
        %v4013 = vld [vmem:[%s4012] ss:$3 sm:$0x3f]
        %s4014 = scalar_lea.vmem [#allocation2], 290
        %v4015 = vld [vmem:[%s4014] ss:$3 sm:$0xff]
        %s4016 = scalar_lea.vmem [#allocation2], 314
        %v4017 = vld [vmem:[%s4016] ss:$3 sm:$0x3f]
        %s4018 = scalar_lea.vmem [#allocation2], 338
        %v4019 = vld [vmem:[%s4018] ss:$3 sm:$0xff]
        %s4020 = scalar_lea.vmem [#allocation2], 362
        %v4021 = vld [vmem:[%s4020] ss:$3 sm:$0x3f]
        %v4022 = vmax.f32 %v3974, %v3991
        %v4023 = vmax.f32 %v3975, %v3993
        %v4024 = vmax.f32 %v3976, %v3995
        %v4025 = vmax.f32 %v3977, %v3997
        %v4026 = vmax.f32 %v3978, %v3999
        %v4027 = vmax.f32 %v3979, %v4001
        %v4028 = vmax.f32 %v3980, %v4003
        %v4029 = vmax.f32 %v3981, %v4005
        %v4030 = vmax.f32 %v3982, %v4007
        %v4031 = vmax.f32 %v3983, %v4009
        %v4032 = vmax.f32 %v3984, %v4011
        %v4033 = vmax.f32 %v3985, %v4013
        %v4034 = vmax.f32 %v3986, %v4015
        %v4035 = vmax.f32 %v3987, %v4017
        %v4036 = vmax.f32 %v3988, %v4019
        %v4037 = vmax.f32 %v3989, %v4021
        %4038 = vst.msk [vmem:[#allocation3] sm:$0xff] %vm3861, %v4022
        %vm4039 = vcmask 128000
        %4040 = vst.msk [vmem:[#allocation3 + $0x8] sm:$0x3f] %vm4039, %v4023
        %4041 = vst.msk [vmem:[#allocation3 + $0x10] sm:$0xff] %vm3861, %v4024
        %4042 = vst.msk [vmem:[#allocation3 + $0x18] sm:$0x3f] %vm4039, %v4025
        %4043 = vst.msk [vmem:[#allocation3 + $0x20] sm:$0xff] %vm3861, %v4026
        %4044 = vst.msk [vmem:[#allocation3 + $0x28] sm:$0x3f] %vm4039, %v4027
        %4045 = vst.msk [vmem:[#allocation3 + $0x30] sm:$0xff] %vm3861, %v4028
        %4046 = vst.msk [vmem:[#allocation3 + $0x38] sm:$0x3f] %vm4039, %v4029
        %4047 = vst.msk [vmem:[#allocation3 + $0x40] sm:$0xff] %vm3861, %v4030
        %4048 = vst.msk [vmem:[#allocation3 + $0x48] sm:$0x3f] %vm4039, %v4031
        %4049 = vst.msk [vmem:[#allocation3 + $0x50] sm:$0xff] %vm3861, %v4032
        %4050 = vst.msk [vmem:[#allocation3 + $0x58] sm:$0x3f] %vm4039, %v4033
        %4051 = vst.msk [vmem:[#allocation3 + $0x60] sm:$0xff] %vm3861, %v4034
        %4052 = vst.msk [vmem:[#allocation3 + $0x68] sm:$0x3f] %vm4039, %v4035
        %4053 = vst.msk [vmem:[#allocation3 + $0x70] sm:$0xff] %vm3861, %v4036
        %4054 = vst.msk [vmem:[#allocation3 + $0x78] sm:$0x3f] %vm4039, %v4037
        %v4055 = vld [vmem:[#allocation3] sm:$0xff]
        %v4056 = vld [vmem:[#allocation3 + $0x8] sm:$0xf]
        %v4057 = vld [vmem:[#allocation3 + $0x10] sm:$0xff]
        %v4058 = vld [vmem:[#allocation3 + $0x18] sm:$0xf]
        %v4059 = vld [vmem:[#allocation3 + $0x20] sm:$0xff]
        %v4060 = vld [vmem:[#allocation3 + $0x28] sm:$0xf]
        %v4061 = vld [vmem:[#allocation3 + $0x30] sm:$0xff]
        %v4062 = vld [vmem:[#allocation3 + $0x38] sm:$0xf]
        %v4063 = vld [vmem:[#allocation3 + $0x40] sm:$0xff]
        %v4064 = vld [vmem:[#allocation3 + $0x48] sm:$0xf]
        %v4065 = vld [vmem:[#allocation3 + $0x50] sm:$0xff]
        %v4066 = vld [vmem:[#allocation3 + $0x58] sm:$0xf]
        %v4067 = vld [vmem:[#allocation3 + $0x60] sm:$0xff]
        %v4068 = vld [vmem:[#allocation3 + $0x68] sm:$0xf]
        %v4069 = vld [vmem:[#allocation3 + $0x70] sm:$0xff]
        %v4070 = vld [vmem:[#allocation3 + $0x78] sm:$0xf]
        %v4071 = vld [vmem:[%s1 + $0x30] sm:$0xff]
        %v4072 = vld [vmem:[%s1 + $0x38] sm:$0xff]
        %v4073 = vld [vmem:[#allocation3 + $0x1] sm:$0xff]
        %v4074 = vld [vmem:[#allocation3 + $0x9] sm:$0xf]
        %v4075 = vld [vmem:[#allocation3 + $0x11] sm:$0xff]
        %v4076 = vld [vmem:[#allocation3 + $0x19] sm:$0xf]
        %v4077 = vld [vmem:[#allocation3 + $0x21] sm:$0xff]
        %v4078 = vld [vmem:[#allocation3 + $0x29] sm:$0xf]
        %v4079 = vld [vmem:[#allocation3 + $0x31] sm:$0xff]
        %v4080 = vld [vmem:[#allocation3 + $0x39] sm:$0xf]
        %v4081 = vld [vmem:[#allocation3 + $0x41] sm:$0xff]
        %v4082 = vld [vmem:[#allocation3 + $0x49] sm:$0xf]
        %v4083 = vld [vmem:[#allocation3 + $0x51] sm:$0xff]
        %v4084 = vld [vmem:[#allocation3 + $0x59] sm:$0xf]
        %v4085 = vld [vmem:[#allocation3 + $0x61] sm:$0xff]
        %v4086 = vld [vmem:[#allocation3 + $0x69] sm:$0xf]
        %v4087 = vld [vmem:[#allocation3 + $0x71] sm:$0xff]
        %v4088 = vld [vmem:[#allocation3 + $0x79] sm:$0xf]
        %v4089 = vld [vmem:[%s1 + $0x40] sm:$0xff]
        %v4090 = vld [vmem:[%s1 + $0x48] sm:$0xff]
        %v4107 = vrot.slane %v4073, 4
        %v4108 = vrot.slane %v4075, 4
        %v4109 = vrot.slane %v4077, 4
        %v4110 = vrot.slane %v4079, 4
        %v4111 = vrot.slane %v4081, 4
        %v4112 = vrot.slane %v4083, 4
        %v4113 = vrot.slane %v4085, 4
        %v4114 = vrot.slane %v4087, 4
        %4115 = vst [vmem:[#allocation1] ss:$2 sm:$0xff] %v4073
        %s4116 = scalar_lea.vmem [#allocation1], 1
        %4117 = vst [vmem:[%s4116] ss:$2 sm:$0xff] %v4107
        %s4118 = scalar_lea.vmem [#allocation1], 16
        %4119 = vst [vmem:[%s4118] ss:$2 sm:$0xff] %v4074
        %s4120 = scalar_lea.vmem [#allocation1], 17
        %4121 = vst [vmem:[%s4120] ss:$2 sm:$0xff] %v4075
        %s4122 = scalar_lea.vmem [#allocation1], 32
        %4123 = vst [vmem:[%s4122] ss:$2 sm:$0xff] %v4108
        %s4124 = scalar_lea.vmem [#allocation1], 33
        %4125 = vst [vmem:[%s4124] ss:$2 sm:$0xff] %v4076
        %s4126 = scalar_lea.vmem [#allocation1], 48
        %4127 = vst [vmem:[%s4126] ss:$2 sm:$0xff] %v4077
        %s4128 = scalar_lea.vmem [#allocation1], 49
        %4129 = vst [vmem:[%s4128] ss:$2 sm:$0xff] %v4109
        %v4130 = vld.sshfl [vmem:[#allocation1] sm:$0xff pattern:$0x75316420]
        %v4131 = vld.sshfl [vmem:[#allocation1 + $0x10] sm:$0xff pattern:$0x75316420]
        %v4132 = vld.sshfl [vmem:[#allocation1 + $0x20] sm:$0xff pattern:$0x75316420]
        %v4133 = vld.sshfl [vmem:[#allocation1 + $0x30] sm:$0xff pattern:$0x75316420]
        %4134 = vst [vmem:[#allocation1] ss:$2 sm:$0xff] %v4078
        %4135 = vst [vmem:[%s4116] ss:$2 sm:$0xff] %v4079
        %4136 = vst [vmem:[%s4118] ss:$2 sm:$0xff] %v4110
        %4137 = vst [vmem:[%s4120] ss:$2 sm:$0xff] %v4080
        %4138 = vst [vmem:[%s4122] ss:$2 sm:$0xff] %v4081
        %4139 = vst [vmem:[%s4124] ss:$2 sm:$0xff] %v4111
        %4140 = vst [vmem:[%s4126] ss:$2 sm:$0xff] %v4082
        %4141 = vst [vmem:[%s4128] ss:$2 sm:$0xff] %v4083
        %v4142 = vld.sshfl [vmem:[#allocation1] sm:$0xff pattern:$0x75316420]
        %v4143 = vld.sshfl [vmem:[#allocation1 + $0x10] sm:$0xff pattern:$0x75316420]
        %v4144 = vld.sshfl [vmem:[#allocation1 + $0x20] sm:$0xff pattern:$0x75316420]
        %v4145 = vld.sshfl [vmem:[#allocation1 + $0x30] sm:$0xff pattern:$0x75316420]
        %4146 = vst [vmem:[#allocation1] ss:$2 sm:$0xff] %v4112
        %4147 = vst [vmem:[%s4116] ss:$2 sm:$0xff] %v4084
        %4148 = vst [vmem:[%s4118] ss:$2 sm:$0xff] %v4085
        %4149 = vst [vmem:[%s4120] ss:$2 sm:$0xff] %v4113
        %4150 = vst [vmem:[%s4122] ss:$2 sm:$0xff] %v4086
        %4151 = vst [vmem:[%s4124] ss:$2 sm:$0xff] %v4087
        %4152 = vst [vmem:[%s4126] ss:$2 sm:$0xff] %v4114
        %4153 = vst [vmem:[%s4128] ss:$2 sm:$0xff] %v4088
        %v4154 = vld.sshfl [vmem:[#allocation1] sm:$0xff pattern:$0x75316420]
        %v4155 = vld.sshfl [vmem:[#allocation1 + $0x10] sm:$0xff pattern:$0x75316420]
        %v4156 = vld.sshfl [vmem:[#allocation1 + $0x20] sm:$0xff pattern:$0x75316420]
        %v4157 = vld.sshfl [vmem:[#allocation1 + $0x30] sm:$0xff pattern:$0x75316420]
        %v4158 = vsel %vm3861, %v4130, 0
        %v4160 = vsel %vm3861, %v4131, 0
        %v4162 = vsel %vm3861, %v4132, 0
        %v4164 = vsel %vm3861, %v4133, 0
        %v4166 = vsel %vm3861, %v4142, 0
        %v4168 = vsel %vm3861, %v4143, 0
        %v4170 = vsel %vm3861, %v4144, 0
        %v4172 = vsel %vm3861, %v4145, 0
        %v4174 = vsel %vm3861, %v4154, 0
        %v4176 = vsel %vm3861, %v4155, 0
        %v4178 = vsel %vm3861, %v4156, 0
        %v4180 = vsel %vm3861, %v4157, 0
        %4182 = vmatpush.msra.mxu0 0.0
        %4183 = vmatpush.msra.mxu0 0.0
        %4184 = vmatpush.msra.mxu0 0.0
        %4185 = vmatpush.msra.mxu0 0.0
        %4186 = vmatpush.msra.mxu0 0.0
        %4187 = vmatpush.msra.mxu0 0.0
        %4188 = vmatpush.msra.mxu0 0.0
        %4189 = vmatpush.msra.mxu0 0.0
        %4190 = vmatpush.msra.mxu0 0.0
        %4191 = vmatpush.msra.mxu0 0.0
        %4192 = vmatpush.msra.mxu0 0.0
        %4193 = vmatpush.msra.mxu0 0.0
        %4194 = vmatpush.msra.mxu0 0.0
        %4195 = vmatpush.msra.mxu0 0.0
        %4196 = vmatpush.msra.mxu0 %v4090
        %4197 = vmatpush.msra.mxu0 %v4089
        %4198 = vmatmul.f32.gmra.mxu0 %v4158
        %v4199 = vpop.f32.mrf.mxu0
        %v4200 = vadd.f32 0.0, %v4199
        %4201 = vmatmul.f32.gmra.mxu0 %v4160
        %v4202 = vpop.f32.mrf.mxu0
        %v4203 = vadd.f32 0.0, %v4202
        %4204 = vmatmul.f32.gmra.mxu0 %v4162
        %v4205 = vpop.f32.mrf.mxu0
        %v4206 = vadd.f32 0.0, %v4205
        %4207 = vmatmul.f32.gmra.mxu0 %v4164
        %v4208 = vpop.f32.mrf.mxu0
        %v4209 = vadd.f32 0.0, %v4208
        %4210 = vmatmul.f32.gmra.mxu0 %v4166
        %v4211 = vpop.f32.mrf.mxu0
        %v4212 = vadd.f32 0.0, %v4211
        %4213 = vmatmul.f32.gmra.mxu0 %v4168
        %v4214 = vpop.f32.mrf.mxu0
        %v4215 = vadd.f32 0.0, %v4214
        %4216 = vmatmul.f32.gmra.mxu0 %v4170
        %v4217 = vpop.f32.mrf.mxu0
        %v4218 = vadd.f32 0.0, %v4217
        %4219 = vmatmul.f32.gmra.mxu0 %v4172
        %v4220 = vpop.f32.mrf.mxu0
        %v4221 = vadd.f32 0.0, %v4220
        %4222 = vmatmul.f32.gmra.mxu0 %v4174
        %v4223 = vpop.f32.mrf.mxu0
        %v4224 = vadd.f32 0.0, %v4223
        %4225 = vmatmul.f32.gmra.mxu0 %v4176
        %v4226 = vpop.f32.mrf.mxu0
        %v4227 = vadd.f32 0.0, %v4226
        %4228 = vmatmul.f32.gmra.mxu0 %v4178
        %v4229 = vpop.f32.mrf.mxu0
        %v4230 = vadd.f32 0.0, %v4229
        %4231 = vmatmul.f32.gmra.mxu0 %v4180
        %v4232 = vpop.f32.mrf.mxu0
        %v4233 = vadd.f32 0.0, %v4232
        %4234 = vdwg.mxu0
        %v4251 = vrot.slane %v4055, 4
        %v4252 = vrot.slane %v4057, 4
        %v4253 = vrot.slane %v4059, 4
        %v4254 = vrot.slane %v4061, 4
        %v4255 = vrot.slane %v4063, 4
        %v4256 = vrot.slane %v4065, 4
        %v4257 = vrot.slane %v4067, 4
        %v4258 = vrot.slane %v4069, 4
        %4259 = vst [vmem:[#allocation1] ss:$2 sm:$0xff] %v4055
        %s4260 = scalar_lea.vmem [#allocation1], 1
        %4261 = vst [vmem:[%s4260] ss:$2 sm:$0xff] %v4251
        %s4262 = scalar_lea.vmem [#allocation1], 16
        %4263 = vst [vmem:[%s4262] ss:$2 sm:$0xff] %v4056
        %s4264 = scalar_lea.vmem [#allocation1], 17
        %4265 = vst [vmem:[%s4264] ss:$2 sm:$0xff] %v4057
        %s4266 = scalar_lea.vmem [#allocation1], 32
        %4267 = vst [vmem:[%s4266] ss:$2 sm:$0xff] %v4252
        %s4268 = scalar_lea.vmem [#allocation1], 33
        %4269 = vst [vmem:[%s4268] ss:$2 sm:$0xff] %v4058
        %s4270 = scalar_lea.vmem [#allocation1], 48
        %4271 = vst [vmem:[%s4270] ss:$2 sm:$0xff] %v4059
        %s4272 = scalar_lea.vmem [#allocation1], 49
        %4273 = vst [vmem:[%s4272] ss:$2 sm:$0xff] %v4253
        %v4274 = vld.sshfl [vmem:[#allocation1] sm:$0xff pattern:$0x75316420]
        %v4275 = vld.sshfl [vmem:[#allocation1 + $0x10] sm:$0xff pattern:$0x75316420]
        %v4276 = vld.sshfl [vmem:[#allocation1 + $0x20] sm:$0xff pattern:$0x75316420]
        %v4277 = vld.sshfl [vmem:[#allocation1 + $0x30] sm:$0xff pattern:$0x75316420]
        %4278 = vst [vmem:[#allocation1] ss:$2 sm:$0xff] %v4060
        %4279 = vst [vmem:[%s4260] ss:$2 sm:$0xff] %v4061
        %4280 = vst [vmem:[%s4262] ss:$2 sm:$0xff] %v4254
        %4281 = vst [vmem:[%s4264] ss:$2 sm:$0xff] %v4062
        %4282 = vst [vmem:[%s4266] ss:$2 sm:$0xff] %v4063
        %4283 = vst [vmem:[%s4268] ss:$2 sm:$0xff] %v4255
        %4284 = vst [vmem:[%s4270] ss:$2 sm:$0xff] %v4064
        %4285 = vst [vmem:[%s4272] ss:$2 sm:$0xff] %v4065
        %v4286 = vld.sshfl [vmem:[#allocation1] sm:$0xff pattern:$0x75316420]
        %v4287 = vld.sshfl [vmem:[#allocation1 + $0x10] sm:$0xff pattern:$0x75316420]
        %v4288 = vld.sshfl [vmem:[#allocation1 + $0x20] sm:$0xff pattern:$0x75316420]
        %v4289 = vld.sshfl [vmem:[#allocation1 + $0x30] sm:$0xff pattern:$0x75316420]
        %4290 = vst [vmem:[#allocation1] ss:$2 sm:$0xff] %v4256
        %4291 = vst [vmem:[%s4260] ss:$2 sm:$0xff] %v4066
        %4292 = vst [vmem:[%s4262] ss:$2 sm:$0xff] %v4067
        %4293 = vst [vmem:[%s4264] ss:$2 sm:$0xff] %v4257
        %4294 = vst [vmem:[%s4266] ss:$2 sm:$0xff] %v4068
        %4295 = vst [vmem:[%s4268] ss:$2 sm:$0xff] %v4069
        %4296 = vst [vmem:[%s4270] ss:$2 sm:$0xff] %v4258
        %4297 = vst [vmem:[%s4272] ss:$2 sm:$0xff] %v4070
        %v4298 = vld.sshfl [vmem:[#allocation1] sm:$0xff pattern:$0x75316420]
        %v4299 = vld.sshfl [vmem:[#allocation1 + $0x10] sm:$0xff pattern:$0x75316420]
        %v4300 = vld.sshfl [vmem:[#allocation1 + $0x20] sm:$0xff pattern:$0x75316420]
        %v4301 = vld.sshfl [vmem:[#allocation1 + $0x30] sm:$0xff pattern:$0x75316420]
        %v4302 = vsel %vm3861, %v4274, 0
        %v4304 = vsel %vm3861, %v4275, 0
        %v4306 = vsel %vm3861, %v4276, 0
        %v4308 = vsel %vm3861, %v4277, 0
        %v4310 = vsel %vm3861, %v4286, 0
        %v4312 = vsel %vm3861, %v4287, 0
        %v4314 = vsel %vm3861, %v4288, 0
        %v4316 = vsel %vm3861, %v4289, 0
        %v4318 = vsel %vm3861, %v4298, 0
        %v4320 = vsel %vm3861, %v4299, 0
        %v4322 = vsel %vm3861, %v4300, 0
        %v4324 = vsel %vm3861, %v4301, 0
        %4326 = vmatpush.msra.mxu0 0.0
        %4327 = vmatpush.msra.mxu0 0.0
        %4328 = vmatpush.msra.mxu0 0.0
        %4329 = vmatpush.msra.mxu0 0.0
        %4330 = vmatpush.msra.mxu0 0.0
        %4331 = vmatpush.msra.mxu0 0.0
        %4332 = vmatpush.msra.mxu0 0.0
        %4333 = vmatpush.msra.mxu0 0.0
        %4334 = vmatpush.msra.mxu0 0.0
        %4335 = vmatpush.msra.mxu0 0.0
        %4336 = vmatpush.msra.mxu0 0.0
        %4337 = vmatpush.msra.mxu0 0.0
        %4338 = vmatpush.msra.mxu0 0.0
        %4339 = vmatpush.msra.mxu0 0.0
        %4340 = vmatpush.msra.mxu0 %v4072
        %4341 = vmatpush.msra.mxu0 %v4071
        %4342 = vmatmul.f32.gmra.mxu0 %v4302
        %v4343 = vpop.f32.mrf.mxu0
        %v4344 = vadd.f32 %v4200, %v4343
        %4345 = vmatmul.f32.gmra.mxu0 %v4304
        %v4346 = vpop.f32.mrf.mxu0
        %v4347 = vadd.f32 %v4203, %v4346
        %4348 = vmatmul.f32.gmra.mxu0 %v4306
        %v4349 = vpop.f32.mrf.mxu0
        %v4350 = vadd.f32 %v4206, %v4349
        %4351 = vmatmul.f32.gmra.mxu0 %v4308
        %v4352 = vpop.f32.mrf.mxu0
        %v4353 = vadd.f32 %v4209, %v4352
        %4354 = vmatmul.f32.gmra.mxu0 %v4310
        %v4355 = vpop.f32.mrf.mxu0
        %v4356 = vadd.f32 %v4212, %v4355
        %4357 = vmatmul.f32.gmra.mxu0 %v4312
        %v4358 = vpop.f32.mrf.mxu0
        %v4359 = vadd.f32 %v4215, %v4358
        %4360 = vmatmul.f32.gmra.mxu0 %v4314
        %v4361 = vpop.f32.mrf.mxu0
        %v4362 = vadd.f32 %v4218, %v4361
        %4363 = vmatmul.f32.gmra.mxu0 %v4316
        %v4364 = vpop.f32.mrf.mxu0
        %v4365 = vadd.f32 %v4221, %v4364
        %4366 = vmatmul.f32.gmra.mxu0 %v4318
        %v4367 = vpop.f32.mrf.mxu0
        %v4368 = vadd.f32 %v4224, %v4367
        %4369 = vmatmul.f32.gmra.mxu0 %v4320
        %v4370 = vpop.f32.mrf.mxu0
        %v4371 = vadd.f32 %v4227, %v4370
        %4372 = vmatmul.f32.gmra.mxu0 %v4322
        %v4373 = vpop.f32.mrf.mxu0
        %v4374 = vadd.f32 %v4230, %v4373
        %4375 = vmatmul.f32.gmra.mxu0 %v4324
        %v4376 = vpop.f32.mrf.mxu0
        %v4377 = vadd.f32 %v4233, %v4376
        %4378 = vdwg.mxu0
        %v4391 = vrot.slane %v4344, 4
        %v4392 = vrot.slane %v4347, 4
        %v4393 = vrot.slane %v4350, 4
        %v4394 = vrot.slane %v4353, 4
        %v4395 = vrot.slane %v4356, 4
        %v4396 = vrot.slane %v4359, 4
        %v4397 = vrot.slane %v4362, 4
        %v4398 = vrot.slane %v4365, 4
        %v4399 = vrot.slane %v4368, 4
        %v4400 = vrot.slane %v4371, 4
        %v4401 = vrot.slane %v4374, 4
        %v4402 = vrot.slane %v4377, 4
        %v4415 = vld [vmem:[#allocation3 + $0x2] sm:$0xff]
        %v4416 = vld [vmem:[#allocation3 + $0xa] sm:$0xf]
        %v4417 = vld [vmem:[#allocation3 + $0x12] sm:$0xff]
        %v4418 = vld [vmem:[#allocation3 + $0x1a] sm:$0xf]
        %v4419 = vld [vmem:[#allocation3 + $0x22] sm:$0xff]
        %v4420 = vld [vmem:[#allocation3 + $0x2a] sm:$0xf]
        %v4421 = vld [vmem:[#allocation3 + $0x32] sm:$0xff]
        %v4422 = vld [vmem:[#allocation3 + $0x3a] sm:$0xf]
        %v4423 = vld [vmem:[#allocation3 + $0x42] sm:$0xff]
        %v4424 = vld [vmem:[#allocation3 + $0x4a] sm:$0xf]
        %v4425 = vld [vmem:[#allocation3 + $0x52] sm:$0xff]
        %v4426 = vld [vmem:[#allocation3 + $0x5a] sm:$0xf]
        %v4427 = vld [vmem:[#allocation3 + $0x62] sm:$0xff]
        %v4428 = vld [vmem:[#allocation3 + $0x6a] sm:$0xf]
        %v4429 = vld [vmem:[#allocation3 + $0x72] sm:$0xff]
        %v4430 = vld [vmem:[#allocation3 + $0x7a] sm:$0xf]
        %v4431 = vld [vmem:[%s1 + $0x50] sm:$0xff]
        %v4432 = vld [vmem:[%s1 + $0x58] sm:$0xff]
        %v4449 = vrot.slane %v4415, 4
        %v4450 = vrot.slane %v4417, 4
        %v4451 = vrot.slane %v4419, 4
        %v4452 = vrot.slane %v4421, 4
        %v4453 = vrot.slane %v4423, 4
        %v4454 = vrot.slane %v4425, 4
        %v4455 = vrot.slane %v4427, 4
        %v4456 = vrot.slane %v4429, 4
        %4457 = vst [vmem:[#allocation1] ss:$2 sm:$0xff] %v4415
        %s4458 = scalar_lea.vmem [#allocation1], 1
        %4459 = vst [vmem:[%s4458] ss:$2 sm:$0xff] %v4449
        %s4460 = scalar_lea.vmem [#allocation1], 16
        %4461 = vst [vmem:[%s4460] ss:$2 sm:$0xff] %v4416
        %s4462 = scalar_lea.vmem [#allocation1], 17
        %4463 = vst [vmem:[%s4462] ss:$2 sm:$0xff] %v4417
        %s4464 = scalar_lea.vmem [#allocation1], 32
        %4465 = vst [vmem:[%s4464] ss:$2 sm:$0xff] %v4450
        %s4466 = scalar_lea.vmem [#allocation1], 33
        %4467 = vst [vmem:[%s4466] ss:$2 sm:$0xff] %v4418
        %s4468 = scalar_lea.vmem [#allocation1], 48
        %4469 = vst [vmem:[%s4468] ss:$2 sm:$0xff] %v4419
        %s4470 = scalar_lea.vmem [#allocation1], 49
        %4471 = vst [vmem:[%s4470] ss:$2 sm:$0xff] %v4451
        %v4472 = vld.sshfl [vmem:[#allocation1] sm:$0xff pattern:$0x75316420]
        %v4473 = vld.sshfl [vmem:[#allocation1 + $0x10] sm:$0xff pattern:$0x75316420]
        %v4474 = vld.sshfl [vmem:[#allocation1 + $0x20] sm:$0xff pattern:$0x75316420]
        %v4475 = vld.sshfl [vmem:[#allocation1 + $0x30] sm:$0xff pattern:$0x75316420]
        %4476 = vst [vmem:[#allocation1] ss:$2 sm:$0xff] %v4420
        %4477 = vst [vmem:[%s4458] ss:$2 sm:$0xff] %v4421
        %4478 = vst [vmem:[%s4460] ss:$2 sm:$0xff] %v4452
        %4479 = vst [vmem:[%s4462] ss:$2 sm:$0xff] %v4422
        %4480 = vst [vmem:[%s4464] ss:$2 sm:$0xff] %v4423
        %4481 = vst [vmem:[%s4466] ss:$2 sm:$0xff] %v4453
        %4482 = vst [vmem:[%s4468] ss:$2 sm:$0xff] %v4424
        %4483 = vst [vmem:[%s4470] ss:$2 sm:$0xff] %v4425
        %v4484 = vld.sshfl [vmem:[#allocation1] sm:$0xff pattern:$0x75316420]
        %v4485 = vld.sshfl [vmem:[#allocation1 + $0x10] sm:$0xff pattern:$0x75316420]
        %v4486 = vld.sshfl [vmem:[#allocation1 + $0x20] sm:$0xff pattern:$0x75316420]
        %v4487 = vld.sshfl [vmem:[#allocation1 + $0x30] sm:$0xff pattern:$0x75316420]
        %4488 = vst [vmem:[#allocation1] ss:$2 sm:$0xff] %v4454
        %4489 = vst [vmem:[%s4458] ss:$2 sm:$0xff] %v4426
        %4490 = vst [vmem:[%s4460] ss:$2 sm:$0xff] %v4427
        %4491 = vst [vmem:[%s4462] ss:$2 sm:$0xff] %v4455
        %4492 = vst [vmem:[%s4464] ss:$2 sm:$0xff] %v4428
        %4493 = vst [vmem:[%s4466] ss:$2 sm:$0xff] %v4429
        %4494 = vst [vmem:[%s4468] ss:$2 sm:$0xff] %v4456
        %4495 = vst [vmem:[%s4470] ss:$2 sm:$0xff] %v4430
        %v4496 = vld.sshfl [vmem:[#allocation1] sm:$0xff pattern:$0x75316420]
        %v4497 = vld.sshfl [vmem:[#allocation1 + $0x10] sm:$0xff pattern:$0x75316420]
        %v4498 = vld.sshfl [vmem:[#allocation1 + $0x20] sm:$0xff pattern:$0x75316420]
        %v4499 = vld.sshfl [vmem:[#allocation1 + $0x30] sm:$0xff pattern:$0x75316420]
        %v4500 = vsel %vm3861, %v4472, 0
        %v4502 = vsel %vm3861, %v4473, 0
        %v4504 = vsel %vm3861, %v4474, 0
        %v4506 = vsel %vm3861, %v4475, 0
        %v4508 = vsel %vm3861, %v4484, 0
        %v4510 = vsel %vm3861, %v4485, 0
        %v4512 = vsel %vm3861, %v4486, 0
        %v4514 = vsel %vm3861, %v4487, 0
        %v4516 = vsel %vm3861, %v4496, 0
        %v4518 = vsel %vm3861, %v4497, 0
        %v4520 = vsel %vm3861, %v4498, 0
        %v4522 = vsel %vm3861, %v4499, 0
        %4524 = vmatpush.msra.mxu0 0.0
        %4525 = vmatpush.msra.mxu0 0.0
        %4526 = vmatpush.msra.mxu0 0.0
        %4527 = vmatpush.msra.mxu0 0.0
        %4528 = vmatpush.msra.mxu0 0.0
        %4529 = vmatpush.msra.mxu0 0.0
        %4530 = vmatpush.msra.mxu0 0.0
        %4531 = vmatpush.msra.mxu0 0.0
        %4532 = vmatpush.msra.mxu0 0.0
        %4533 = vmatpush.msra.mxu0 0.0
        %4534 = vmatpush.msra.mxu0 0.0
        %4535 = vmatpush.msra.mxu0 0.0
        %4536 = vmatpush.msra.mxu0 0.0
        %4537 = vmatpush.msra.mxu0 0.0
        %4538 = vmatpush.msra.mxu0 %v4432
        %4539 = vmatpush.msra.mxu0 %v4431
        %4540 = vmatmul.f32.gmra.mxu0 %v4500
        %v4541 = vpop.f32.mrf.mxu0
        %v4542 = vadd.f32 0.0, %v4541
        %4543 = vmatmul.f32.gmra.mxu0 %v4502
        %v4544 = vpop.f32.mrf.mxu0
        %v4545 = vadd.f32 0.0, %v4544
        %4546 = vmatmul.f32.gmra.mxu0 %v4504
        %v4547 = vpop.f32.mrf.mxu0
        %v4548 = vadd.f32 0.0, %v4547
        %4549 = vmatmul.f32.gmra.mxu0 %v4506
        %v4550 = vpop.f32.mrf.mxu0
        %v4551 = vadd.f32 0.0, %v4550
        %4552 = vmatmul.f32.gmra.mxu0 %v4508
        %v4553 = vpop.f32.mrf.mxu0
        %v4554 = vadd.f32 0.0, %v4553
        %4555 = vmatmul.f32.gmra.mxu0 %v4510
        %v4556 = vpop.f32.mrf.mxu0
        %v4557 = vadd.f32 0.0, %v4556
        %4558 = vmatmul.f32.gmra.mxu0 %v4512
        %v4559 = vpop.f32.mrf.mxu0
        %v4560 = vadd.f32 0.0, %v4559
        %4561 = vmatmul.f32.gmra.mxu0 %v4514
        %v4562 = vpop.f32.mrf.mxu0
        %v4563 = vadd.f32 0.0, %v4562
        %4564 = vmatmul.f32.gmra.mxu0 %v4516
        %v4565 = vpop.f32.mrf.mxu0
        %v4566 = vadd.f32 0.0, %v4565
        %4567 = vmatmul.f32.gmra.mxu0 %v4518
        %v4568 = vpop.f32.mrf.mxu0
        %v4569 = vadd.f32 0.0, %v4568
        %4570 = vmatmul.f32.gmra.mxu0 %v4520
        %v4571 = vpop.f32.mrf.mxu0
        %v4572 = vadd.f32 0.0, %v4571
        %4573 = vmatmul.f32.gmra.mxu0 %v4522
        %v4574 = vpop.f32.mrf.mxu0
        %v4575 = vadd.f32 0.0, %v4574
        %4576 = vdwg.mxu0
        %v4589 = vrot.slane %v4542, 4
        %v4590 = vrot.slane %v4545, 4
        %v4591 = vrot.slane %v4548, 4
        %v4592 = vrot.slane %v4551, 4
        %v4593 = vrot.slane %v4554, 4
        %v4594 = vrot.slane %v4557, 4
        %v4595 = vrot.slane %v4560, 4
        %v4596 = vrot.slane %v4563, 4
        %v4597 = vrot.slane %v4566, 4
        %v4598 = vrot.slane %v4569, 4
        %v4599 = vrot.slane %v4572, 4
        %v4600 = vrot.slane %v4575, 4
        %v4613 = vadd.f32 %v4344, %v4542
        %v4614 = vadd.f32 %v4391, %v4589
        %v4615 = vadd.f32 %v4347, %v4545
        %v4616 = vadd.f32 %v4392, %v4590
        %v4617 = vadd.f32 %v4350, %v4548
        %v4618 = vadd.f32 %v4393, %v4591
        %v4619 = vadd.f32 %v4353, %v4551
        %v4620 = vadd.f32 %v4394, %v4592
        %v4621 = vadd.f32 %v4356, %v4554
        %v4622 = vadd.f32 %v4395, %v4593
        %v4623 = vadd.f32 %v4359, %v4557
        %v4624 = vadd.f32 %v4396, %v4594
        %v4625 = vadd.f32 %v4362, %v4560
        %v4626 = vadd.f32 %v4397, %v4595
        %v4627 = vadd.f32 %v4365, %v4563
        %v4628 = vadd.f32 %v4398, %v4596
        %v4629 = vadd.f32 %v4368, %v4566
        %v4630 = vadd.f32 %v4399, %v4597
        %v4631 = vadd.f32 %v4371, %v4569
        %v4632 = vadd.f32 %v4400, %v4598
        %v4633 = vadd.f32 %v4374, %v4572
        %v4634 = vadd.f32 %v4401, %v4599
        %v4635 = vadd.f32 %v4377, %v4575
        %v4636 = vadd.f32 %v4402, %v4600
        %v4637 = vld [vmem:[%s1 + $0x112] sm:$0x1]
        %v4638 = vld [vmem:[%s1 + $0x113] sm:$0x1]
        %v4639 = vperm.slane %v4637, 0
        %v4641 = vrot.slane %v4639, 4
        %v4643 = vmul.f32 %v4613, %v4639
        %v4644 = vmul.f32 %v4614, %v4641
        %v4645 = vmul.f32 %v4615, %v4639
        %v4646 = vmul.f32 %v4616, %v4639
        %v4647 = vmul.f32 %v4617, %v4641
        %v4648 = vmul.f32 %v4618, %v4639
        %v4649 = vmul.f32 %v4619, %v4639
        %v4650 = vmul.f32 %v4620, %v4641
        %v4651 = vmul.f32 %v4621, %v4639
        %v4652 = vmul.f32 %v4622, %v4639
        %v4653 = vmul.f32 %v4623, %v4641
        %v4654 = vmul.f32 %v4624, %v4639
        %v4655 = vmul.f32 %v4625, %v4639
        %v4656 = vmul.f32 %v4626, %v4641
        %v4657 = vmul.f32 %v4627, %v4639
        %v4658 = vmul.f32 %v4628, %v4639
        %v4659 = vmul.f32 %v4629, %v4641
        %v4660 = vmul.f32 %v4630, %v4639
        %v4661 = vmul.f32 %v4631, %v4639
        %v4662 = vmul.f32 %v4632, %v4641
        %v4663 = vmul.f32 %v4633, %v4639
        %v4664 = vmul.f32 %v4634, %v4639
        %v4665 = vmul.f32 %v4635, %v4641
        %v4666 = vmul.f32 %v4636, %v4639
        %v4667 = vperm.slane %v4638, 0
        %v4669 = vrot.slane %v4667, 4
        %v4671 = vadd.f32 %v4643, %v4667
        %v4672 = vadd.f32 %v4644, %v4669
        %v4673 = vadd.f32 %v4645, %v4667
        %v4674 = vadd.f32 %v4646, %v4667
        %v4675 = vadd.f32 %v4647, %v4669
        %v4676 = vadd.f32 %v4648, %v4667
        %v4677 = vadd.f32 %v4649, %v4667
        %v4678 = vadd.f32 %v4650, %v4669
        %v4679 = vadd.f32 %v4651, %v4667
        %v4680 = vadd.f32 %v4652, %v4667
        %v4681 = vadd.f32 %v4653, %v4669
        %v4682 = vadd.f32 %v4654, %v4667
        %v4683 = vadd.f32 %v4655, %v4667
        %v4684 = vadd.f32 %v4656, %v4669
        %v4685 = vadd.f32 %v4657, %v4667
        %v4686 = vadd.f32 %v4658, %v4667
        %v4687 = vadd.f32 %v4659, %v4669
        %v4688 = vadd.f32 %v4660, %v4667
        %v4689 = vadd.f32 %v4661, %v4667
        %v4690 = vadd.f32 %v4662, %v4669
        %v4691 = vadd.f32 %v4663, %v4667
        %v4692 = vadd.f32 %v4664, %v4667
        %v4693 = vadd.f32 %v4665, %v4669
        %v4694 = vadd.f32 %v4666, %v4667
        %v4695 = vmax.f32 %v4671, 0.0
        %v4696 = vmax.f32 %v4672, 0.0
        %v4697 = vmax.f32 %v4673, 0.0
        %v4698 = vmax.f32 %v4674, 0.0
        %v4699 = vmax.f32 %v4675, 0.0
        %v4700 = vmax.f32 %v4676, 0.0
        %v4701 = vmax.f32 %v4677, 0.0
        %v4702 = vmax.f32 %v4678, 0.0
        %v4703 = vmax.f32 %v4679, 0.0
        %v4704 = vmax.f32 %v4680, 0.0
        %v4705 = vmax.f32 %v4681, 0.0
        %v4706 = vmax.f32 %v4682, 0.0
        %v4707 = vmax.f32 %v4683, 0.0
        %v4708 = vmax.f32 %v4684, 0.0
        %v4709 = vmax.f32 %v4685, 0.0
        %v4710 = vmax.f32 %v4686, 0.0
        %v4711 = vmax.f32 %v4687, 0.0
        %v4712 = vmax.f32 %v4688, 0.0
        %v4713 = vmax.f32 %v4689, 0.0
        %v4714 = vmax.f32 %v4690, 0.0
        %v4715 = vmax.f32 %v4691, 0.0
        %v4716 = vmax.f32 %v4692, 0.0
        %v4717 = vmax.f32 %v4693, 0.0
        %v4718 = vmax.f32 %v4694, 0.0
        %4743 = vst [vmem:[#allocation1] ss:$2 sm:$0xff] %v4695
        %s4744 = scalar_lea.vmem [#allocation1], 1
        %4745 = vst [vmem:[%s4744] ss:$2 sm:$0xff] %v4696
        %s4746 = scalar_lea.vmem [#allocation1], 16
        %4747 = vst [vmem:[%s4746] ss:$2 sm:$0xff] %v4697
        %v4748 = vld.sshfl [vmem:[#allocation1] sm:$0xff pattern:$0x75316420]
        %v4749 = vld.sshfl [vmem:[#allocation1 + $0x10] sm:$0xff pattern:$0x75316420]
        %s4750 = scalar_lea.vmem [#allocation1], 32
        %4751 = vst [vmem:[%s4750] ss:$2 sm:$0xff] %v4698
        %s4752 = scalar_lea.vmem [#allocation1], 33
        %4753 = vst [vmem:[%s4752] ss:$2 sm:$0xff] %v4699
        %s4754 = scalar_lea.vmem [#allocation1], 48
        %4755 = vst [vmem:[%s4754] ss:$2 sm:$0xff] %v4700
        %v4756 = vld.sshfl [vmem:[#allocation1 + $0x20] sm:$0xff pattern:$0x75316420]
        %v4757 = vld.sshfl [vmem:[#allocation1 + $0x30] sm:$0xff pattern:$0x75316420]
        %4758 = vst [vmem:[#allocation1] ss:$2 sm:$0xff] %v4701
        %4759 = vst [vmem:[%s4744] ss:$2 sm:$0xff] %v4702
        %4760 = vst [vmem:[%s4746] ss:$2 sm:$0xff] %v4703
        %v4761 = vld.sshfl [vmem:[#allocation1] sm:$0xff pattern:$0x75316420]
        %v4762 = vld.sshfl [vmem:[#allocation1 + $0x10] sm:$0xff pattern:$0x75316420]
        %4763 = vst [vmem:[%s4750] ss:$2 sm:$0xff] %v4704
        %4764 = vst [vmem:[%s4752] ss:$2 sm:$0xff] %v4705
        %4765 = vst [vmem:[%s4754] ss:$2 sm:$0xff] %v4706
        %v4766 = vld.sshfl [vmem:[#allocation1 + $0x20] sm:$0xff pattern:$0x75316420]
        %v4767 = vld.sshfl [vmem:[#allocation1 + $0x30] sm:$0xff pattern:$0x75316420]
        %4768 = vst [vmem:[#allocation1] ss:$2 sm:$0xff] %v4707
        %4769 = vst [vmem:[%s4744] ss:$2 sm:$0xff] %v4708
        %4770 = vst [vmem:[%s4746] ss:$2 sm:$0xff] %v4709
        %v4771 = vld.sshfl [vmem:[#allocation1] sm:$0xff pattern:$0x75316420]
        %v4772 = vld.sshfl [vmem:[#allocation1 + $0x10] sm:$0xff pattern:$0x75316420]
        %4773 = vst [vmem:[%s4750] ss:$2 sm:$0xff] %v4710
        %4774 = vst [vmem:[%s4752] ss:$2 sm:$0xff] %v4711
        %4775 = vst [vmem:[%s4754] ss:$2 sm:$0xff] %v4712
        %v4776 = vld.sshfl [vmem:[#allocation1 + $0x20] sm:$0xff pattern:$0x75316420]
        %v4777 = vld.sshfl [vmem:[#allocation1 + $0x30] sm:$0xff pattern:$0x75316420]
        %4778 = vst [vmem:[#allocation1] ss:$2 sm:$0xff] %v4713
        %4779 = vst [vmem:[%s4744] ss:$2 sm:$0xff] %v4714
        %4780 = vst [vmem:[%s4746] ss:$2 sm:$0xff] %v4715
        %v4781 = vld.sshfl [vmem:[#allocation1] sm:$0xff pattern:$0x75316420]
        %v4782 = vld.sshfl [vmem:[#allocation1 + $0x10] sm:$0xff pattern:$0x75316420]
        %4783 = vst [vmem:[%s4750] ss:$2 sm:$0xff] %v4716
        %4784 = vst [vmem:[%s4752] ss:$2 sm:$0xff] %v4717
        %4785 = vst [vmem:[%s4754] ss:$2 sm:$0xff] %v4718
        %v4786 = vld.sshfl [vmem:[#allocation1 + $0x20] sm:$0xff pattern:$0x75316420]
        %v4787 = vld.sshfl [vmem:[#allocation1 + $0x30] sm:$0xff pattern:$0x75316420]
        %vm4804 = vcmask 261120
        %4805 = vst.msk [vmem:[#allocation4] sm:$0xff] %vm4804, %v4748
        %vm4806 = vcmask 257024
        %4807 = vst.msk [vmem:[#allocation4 + $0x8] sm:$0xf] %vm4806, %v4749
        %4808 = vst.msk [vmem:[#allocation4 + $0x10] sm:$0xff] %vm4804, %v4756
        %4809 = vst.msk [vmem:[#allocation4 + $0x18] sm:$0xf] %vm4806, %v4757
        %4810 = vst.msk [vmem:[#allocation4 + $0x20] sm:$0xff] %vm4804, %v4761
        %4811 = vst.msk [vmem:[#allocation4 + $0x28] sm:$0xf] %vm4806, %v4762
        %4812 = vst.msk [vmem:[#allocation4 + $0x30] sm:$0xff] %vm4804, %v4766
        %4813 = vst.msk [vmem:[#allocation4 + $0x38] sm:$0xf] %vm4806, %v4767
        %4814 = vst.msk [vmem:[#allocation4 + $0x40] sm:$0xff] %vm4804, %v4771
        %4815 = vst.msk [vmem:[#allocation4 + $0x48] sm:$0xf] %vm4806, %v4772
        %4816 = vst.msk [vmem:[#allocation4 + $0x50] sm:$0xff] %vm4804, %v4776
        %4817 = vst.msk [vmem:[#allocation4 + $0x58] sm:$0xf] %vm4806, %v4777
        %4818 = vst.msk [vmem:[#allocation4 + $0x60] sm:$0xff] %vm4804, %v4781
        %4819 = vst.msk [vmem:[#allocation4 + $0x68] sm:$0xf] %vm4806, %v4782
        %4820 = vst.msk [vmem:[#allocation4 + $0x70] sm:$0xff] %vm4804, %v4786
        %4821 = vst.msk [vmem:[#allocation4 + $0x78] sm:$0xf] %vm4806, %v4787
        %v4822 = vld [vmem:[#allocation4] ss:$3 sm:$0xf]
        %s4823 = scalar_lea.vmem [#allocation4], 16
        %v4824 = vld [vmem:[%s4823] ss:$3 sm:$0xf]
        %s4825 = scalar_lea.vmem [#allocation4], 32
        %v4826 = vld [vmem:[%s4825] ss:$3 sm:$0xf]
        %s4827 = scalar_lea.vmem [#allocation4], 48
        %v4828 = vld [vmem:[%s4827] ss:$3 sm:$0xf]
        %s4829 = scalar_lea.vmem [#allocation4], 64
        %v4830 = vld [vmem:[%s4829] ss:$3 sm:$0xf]
        %s4831 = scalar_lea.vmem [#allocation4], 80
        %v4832 = vld [vmem:[%s4831] ss:$3 sm:$0xf]
        %s4833 = scalar_lea.vmem [#allocation4], 96
        %v4834 = vld [vmem:[%s4833] ss:$3 sm:$0xf]
        %s4835 = scalar_lea.vmem [#allocation4], 112
        %v4836 = vld [vmem:[%s4835] ss:$3 sm:$0xf]
        %s4837 = scalar_lea.vmem [#allocation4], 1
        %v4838 = vld [vmem:[%s4837] ss:$3 sm:$0xf]
        %s4839 = scalar_lea.vmem [#allocation4], 17
        %v4840 = vld [vmem:[%s4839] ss:$3 sm:$0xf]
        %s4841 = scalar_lea.vmem [#allocation4], 33
        %v4842 = vld [vmem:[%s4841] ss:$3 sm:$0xf]
        %s4843 = scalar_lea.vmem [#allocation4], 49
        %v4844 = vld [vmem:[%s4843] ss:$3 sm:$0xf]
        %s4845 = scalar_lea.vmem [#allocation4], 65
        %v4846 = vld [vmem:[%s4845] ss:$3 sm:$0xf]
        %s4847 = scalar_lea.vmem [#allocation4], 81
        %v4848 = vld [vmem:[%s4847] ss:$3 sm:$0xf]
        %s4849 = scalar_lea.vmem [#allocation4], 97
        %v4850 = vld [vmem:[%s4849] ss:$3 sm:$0xf]
        %s4851 = scalar_lea.vmem [#allocation4], 113
        %v4852 = vld [vmem:[%s4851] ss:$3 sm:$0xf]
        %v4853 = vmax.f32 %v4822, %v4838
        %v4854 = vmax.f32 %v4824, %v4840
        %v4855 = vmax.f32 %v4826, %v4842
        %v4856 = vmax.f32 %v4828, %v4844
        %v4857 = vmax.f32 %v4830, %v4846
        %v4858 = vmax.f32 %v4832, %v4848
        %v4859 = vmax.f32 %v4834, %v4850
        %v4860 = vmax.f32 %v4836, %v4852
        %s4861 = scalar_lea.vmem [#allocation4], 2
        %v4862 = vld [vmem:[%s4861] ss:$3 sm:$0xf]
        %s4863 = scalar_lea.vmem [#allocation4], 18
        %v4864 = vld [vmem:[%s4863] ss:$3 sm:$0xf]
        %s4865 = scalar_lea.vmem [#allocation4], 34
        %v4866 = vld [vmem:[%s4865] ss:$3 sm:$0xf]
        %s4867 = scalar_lea.vmem [#allocation4], 50
        %v4868 = vld [vmem:[%s4867] ss:$3 sm:$0xf]
        %s4869 = scalar_lea.vmem [#allocation4], 66
        %v4870 = vld [vmem:[%s4869] ss:$3 sm:$0xf]
        %s4871 = scalar_lea.vmem [#allocation4], 82
        %v4872 = vld [vmem:[%s4871] ss:$3 sm:$0xf]
        %s4873 = scalar_lea.vmem [#allocation4], 98
        %v4874 = vld [vmem:[%s4873] ss:$3 sm:$0xf]
        %s4875 = scalar_lea.vmem [#allocation4], 114
        %v4876 = vld [vmem:[%s4875] ss:$3 sm:$0xf]
        %v4877 = vmax.f32 %v4853, %v4862
        %v4878 = vmax.f32 %v4854, %v4864
        %v4879 = vmax.f32 %v4855, %v4866
        %v4880 = vmax.f32 %v4856, %v4868
        %v4881 = vmax.f32 %v4857, %v4870
        %v4882 = vmax.f32 %v4858, %v4872
        %v4883 = vmax.f32 %v4859, %v4874
        %v4884 = vmax.f32 %v4860, %v4876
        %v4885 = vld [vmem:[%s1 + $0x60] sm:$0xff]
        %v4886 = vld [vmem:[%s1 + $0x68] sm:$0xff]
        %v4887 = vld [vmem:[%s1 + $0x70] sm:$0xff]
        %v4888 = vld [vmem:[%s1 + $0x78] sm:$0xff]
        %v4889 = vld [vmem:[%s1 + $0x80] sm:$0xff]
        %v4890 = vld [vmem:[%s1 + $0x88] sm:$0xff]
        %v4891 = vld [vmem:[%s1 + $0x90] sm:$0xff]
        %v4892 = vld [vmem:[%s1 + $0x98] sm:$0xff]
        %v4901 = vrot.slane %v4877, 1
        %vm4902 = vcmask 1041409
        %v4903 = vsel %vm4902, %v4878, %v4901
        %v4904 = vrot.slane %v4879, 7
        %vm4905 = vcmask 1042434
        %v4906 = vsel %vm4905, %v4904, %v4903
        %v4907 = vrot.slane %v4880, 6
        %vm4908 = vcmask 1043459
        %v4909 = vsel %vm4908, %v4907, %v4906
        %v4910 = vrot.slane %v4881, 5
        %vm4911 = vcmask 1044484
        %v4912 = vsel %vm4911, %v4910, %v4909
        %v4913 = vrot.slane %v4882, 4
        %vm4914 = vcmask 1045509
        %v4915 = vsel %vm4914, %v4913, %v4912
        %v4916 = vrot.slane %v4883, 3
        %vm4917 = vcmask 1046534
        %v4918 = vsel %vm4917, %v4916, %v4915
        %v4919 = vrot.slane %v4884, 2
        %vm4920 = vcmask 1047559
        %v4921 = vsel %vm4920, %v4919, %v4918
        %v4922 = vsel %vm4804, %v4921, 0
        %4924 = vmatpush.msra.mxu0 0.0
        %4925 = vmatpush.msra.mxu0 0.0
        %4926 = vmatpush.msra.mxu0 0.0
        %4927 = vmatpush.msra.mxu0 0.0
        %4928 = vmatpush.msra.mxu0 0.0
        %4929 = vmatpush.msra.mxu0 0.0
        %4930 = vmatpush.msra.mxu0 0.0
        %4931 = vmatpush.msra.mxu0 0.0
        %4932 = vmatpush.msra.mxu0 0.0
        %4933 = vmatpush.msra.mxu0 0.0
        %4934 = vmatpush.msra.mxu0 0.0
        %4935 = vmatpush.msra.mxu0 0.0
        %4936 = vmatpush.msra.mxu0 %v4892
        %4937 = vmatpush.msra.mxu0 %v4891
        %4938 = vmatpush.msra.mxu0 %v4890
        %4939 = vmatpush.msra.mxu0 %v4889
        %4940 = vmatmul.f32.gmra.mxu0 %v4922
        %v4941 = vpop.f32.mrf.mxu0
        %v4942 = vadd.f32 0.0, %v4941
        %4943 = vdwg.mxu0
        %v4944 = vrot.slane %v4878, 7
        %v4945 = vsel %vm4902, %v4944, %v4877
        %v4946 = vrot.slane %v4879, 6
        %v4947 = vsel %vm4905, %v4946, %v4945
        %v4948 = vrot.slane %v4880, 5
        %v4949 = vsel %vm4908, %v4948, %v4947
        %v4950 = vrot.slane %v4881, 4
        %v4951 = vsel %vm4911, %v4950, %v4949
        %v4952 = vrot.slane %v4882, 3
        %v4953 = vsel %vm4914, %v4952, %v4951
        %v4954 = vrot.slane %v4883, 2
        %v4955 = vsel %vm4917, %v4954, %v4953
        %v4956 = vrot.slane %v4884, 1
        %v4957 = vsel %vm4920, %v4956, %v4955
        %v4958 = vsel %vm4804, %v4957, 0
        %4960 = vmatpush.msra.mxu0 0.0
        %4961 = vmatpush.msra.mxu0 0.0
        %4962 = vmatpush.msra.mxu0 0.0
        %4963 = vmatpush.msra.mxu0 0.0
        %4964 = vmatpush.msra.mxu0 0.0
        %4965 = vmatpush.msra.mxu0 0.0
        %4966 = vmatpush.msra.mxu0 0.0
        %4967 = vmatpush.msra.mxu0 0.0
        %4968 = vmatpush.msra.mxu0 0.0
        %4969 = vmatpush.msra.mxu0 0.0
        %4970 = vmatpush.msra.mxu0 0.0
        %4971 = vmatpush.msra.mxu0 0.0
        %4972 = vmatpush.msra.mxu0 %v4888
        %4973 = vmatpush.msra.mxu0 %v4887
        %4974 = vmatpush.msra.mxu0 %v4886
        %4975 = vmatpush.msra.mxu0 %v4885
        %4976 = vmatmul.f32.gmra.mxu0 %v4958
        %v4977 = vpop.f32.mrf.mxu0
        %v4978 = vadd.f32 %v4942, %v4977
        %4979 = vdwg.mxu0
        %v4980 = vld [vmem:[%s1 + $0xa0] sm:$0xff]
        %v4981 = vld [vmem:[%s1 + $0xa8] sm:$0xff]
        %v4982 = vld [vmem:[%s1 + $0xb0] sm:$0xff]
        %v4983 = vld [vmem:[%s1 + $0xb8] sm:$0xff]
        %v4984 = vrot.slane %v4877, 2
        %v4985 = vrot.slane %v4878, 1
        %v4986 = vsel %vm4902, %v4985, %v4984
        %v4987 = vsel %vm4905, %v4879, %v4986
        %v4988 = vrot.slane %v4880, 7
        %v4989 = vsel %vm4908, %v4988, %v4987
        %v4990 = vrot.slane %v4881, 6
        %v4991 = vsel %vm4911, %v4990, %v4989
        %v4992 = vrot.slane %v4882, 5
        %v4993 = vsel %vm4914, %v4992, %v4991
        %v4994 = vrot.slane %v4883, 4
        %v4995 = vsel %vm4917, %v4994, %v4993
        %v4996 = vrot.slane %v4884, 3
        %v4997 = vsel %vm4920, %v4996, %v4995
        %v4998 = vsel %vm4804, %v4997, 0
        %5000 = vmatpush.msra.mxu0 0.0
        %5001 = vmatpush.msra.mxu0 0.0
        %5002 = vmatpush.msra.mxu0 0.0
        %5003 = vmatpush.msra.mxu0 0.0
        %5004 = vmatpush.msra.mxu0 0.0
        %5005 = vmatpush.msra.mxu0 0.0
        %5006 = vmatpush.msra.mxu0 0.0
        %5007 = vmatpush.msra.mxu0 0.0
        %5008 = vmatpush.msra.mxu0 0.0
        %5009 = vmatpush.msra.mxu0 0.0
        %5010 = vmatpush.msra.mxu0 0.0
        %5011 = vmatpush.msra.mxu0 0.0
        %5012 = vmatpush.msra.mxu0 %v4983
        %5013 = vmatpush.msra.mxu0 %v4982
        %5014 = vmatpush.msra.mxu0 %v4981
        %5015 = vmatpush.msra.mxu0 %v4980
        %5016 = vmatmul.f32.gmra.mxu0 %v4998
        %v5017 = vpop.f32.mrf.mxu0
        %v5018 = vadd.f32 0.0, %v5017
        %5019 = vdwg.mxu0
        %v5020 = vadd.f32 %v4978, %v5018
        %v5021 = vld [vmem:[%s1 + $0xc0] sm:$0xff]
        %v5022 = vld [vmem:[%s1 + $0xc8] sm:$0xff]
        %v5023 = vld [vmem:[%s1 + $0xd0] sm:$0xff]
        %v5024 = vld [vmem:[%s1 + $0xd8] sm:$0xff]
        %v5025 = vrot.slane %v4877, 3
        %v5026 = vrot.slane %v4878, 2
        %v5027 = vsel %vm4902, %v5026, %v5025
        %v5028 = vrot.slane %v4879, 1
        %v5029 = vsel %vm4905, %v5028, %v5027
        %v5030 = vsel %vm4908, %v4880, %v5029
        %v5031 = vrot.slane %v4881, 7
        %v5032 = vsel %vm4911, %v5031, %v5030
        %v5033 = vrot.slane %v4882, 6
        %v5034 = vsel %vm4914, %v5033, %v5032
        %v5035 = vrot.slane %v4883, 5
        %v5036 = vsel %vm4917, %v5035, %v5034
        %v5037 = vrot.slane %v4884, 4
        %v5038 = vsel %vm4920, %v5037, %v5036
        %v5039 = vsel %vm4804, %v5038, 0
        %5041 = vmatpush.msra.mxu0 0.0
        %5042 = vmatpush.msra.mxu0 0.0
        %5043 = vmatpush.msra.mxu0 0.0
        %5044 = vmatpush.msra.mxu0 0.0
        %5045 = vmatpush.msra.mxu0 0.0
        %5046 = vmatpush.msra.mxu0 0.0
        %5047 = vmatpush.msra.mxu0 0.0
        %5048 = vmatpush.msra.mxu0 0.0
        %5049 = vmatpush.msra.mxu0 0.0
        %5050 = vmatpush.msra.mxu0 0.0
        %5051 = vmatpush.msra.mxu0 0.0
        %5052 = vmatpush.msra.mxu0 0.0
        %5053 = vmatpush.msra.mxu0 %v5024
        %5054 = vmatpush.msra.mxu0 %v5023
        %5055 = vmatpush.msra.mxu0 %v5022
        %5056 = vmatpush.msra.mxu0 %v5021
        %5057 = vmatmul.f32.gmra.mxu0 %v5039
        %v5058 = vpop.f32.mrf.mxu0
        %v5059 = vadd.f32 0.0, %v5058
        %5060 = vdwg.mxu0
        %v5061 = vadd.f32 %v5020, %v5059
        %v5062 = vld [vmem:[%s1 + $0x114] sm:$0x1]
        %v5063 = vperm.slane %v5062, 0
        %v5064 = vadd.f32 %v5061, %v5063
        %v5065 = vmax.f32 %v5064, 0.0
        %v5066 = vld [vmem:[%s1 + $0xe0] sm:$0xff]
        %v5067 = vld [vmem:[%s1 + $0xe8] sm:$0xff]
        %v5068 = vld [vmem:[%s1 + $0xf0] sm:$0xff]
        %v5069 = vld [vmem:[%s1 + $0xf8] sm:$0xff]
        %v5070 = vld [vmem:[%s1 + $0x115] sm:$0x1]
        %v5071 = vperm.slane %v5070, 0
        %v5073 = vsel %vm4804, %v5065, 0
        %5075 = vmatpush.msra.mxu0 0.0
        %5076 = vmatpush.msra.mxu0 0.0
        %5077 = vmatpush.msra.mxu0 0.0
        %5078 = vmatpush.msra.mxu0 0.0
        %5079 = vmatpush.msra.mxu0 0.0
        %5080 = vmatpush.msra.mxu0 0.0
        %5081 = vmatpush.msra.mxu0 0.0
        %5082 = vmatpush.msra.mxu0 0.0
        %5083 = vmatpush.msra.mxu0 0.0
        %5084 = vmatpush.msra.mxu0 0.0
        %5085 = vmatpush.msra.mxu0 0.0
        %5086 = vmatpush.msra.mxu0 0.0
        %5087 = vmatpush.msra.mxu0 %v5069
        %5088 = vmatpush.msra.mxu0 %v5068
        %5089 = vmatpush.msra.mxu0 %v5067
        %5090 = vmatpush.msra.mxu0 %v5066
        %5091 = vmatmul.f32.gmra.mxu0 %v5073
        %v5092 = vpop.f32.mrf.mxu0
        %v5093 = vadd.f32 %v5071, %v5092
        %5094 = vdwg.mxu0
        %v5095 = vmax.f32 %v5093, 0.0
        %v5096 = vld [vmem:[%s1 + $0x100] sm:$0xff]
        %v5097 = vld [vmem:[%s1 + $0x108] sm:$0xff]
        %v5098 = vld [vmem:[%s1 + $0x116] sm:$0x1]
        %v5099 = vperm.slane %v5098, 0
        %v5101 = vsel %vm3861, %v5095, 0
        %5103 = vmatpush.msra.mxu0 0.0
        %5104 = vmatpush.msra.mxu0 0.0
        %5105 = vmatpush.msra.mxu0 0.0
        %5106 = vmatpush.msra.mxu0 0.0
        %5107 = vmatpush.msra.mxu0 0.0
        %5108 = vmatpush.msra.mxu0 0.0
        %5109 = vmatpush.msra.mxu0 0.0
        %5110 = vmatpush.msra.mxu0 0.0
        %5111 = vmatpush.msra.mxu0 0.0
        %5112 = vmatpush.msra.mxu0 0.0
        %5113 = vmatpush.msra.mxu0 0.0
        %5114 = vmatpush.msra.mxu0 0.0
        %5115 = vmatpush.msra.mxu0 0.0
        %5116 = vmatpush.msra.mxu0 0.0
        %5117 = vmatpush.msra.mxu0 %v5097
        %5118 = vmatpush.msra.mxu0 %v5096
        %5119 = vmatmul.f32.gmra.mxu0 %v5101
        %v5120 = vpop.f32.mrf.mxu0
        %v5121 = vadd.f32 %v5099, %v5120
        %5122 = vdwg.mxu0
        %v5123 = vmax.f32 %v5121, 0.0
        %5124 = vst [vmem:[%s139] sm:$0xff] %v5123
        %s5125 = sand.u32 %s71, 1
        %s5126 = scalar_lea.sflag [#allocation6], %s5125
        %s5127 = sand.u32 %s71, 1
        %s5128 = smul.addr %s5127, 8
        %s5129 = scalar_lea.vmem [#allocation5], %s5128
        // Predicated region
        $region29: #{tpu_custom_call.1} parent=27 // pred_check
          %p5130 = pneg %p81
        $region30: #{tpu_custom_call.1} parent=27 // pred_check_branch
          %5132 = sbr.rel (%p5130) target = $region32
        $region31: #{tpu_custom_call.1} parent=27 // pred_region
          %5134 = vsyncadd %s5126, 0
          %s5135 = smul.addr %s16, 8
          %s5136 = scalar_lea.hbm %s2, %s5135
          %s5138 = sshll.u32 %s5129, 4
          %s5139 = int_to_ptr.vmem [resolvable:$true] %s5138
          %s5140 = sshll.u32 %s5136, 4
          %s5141 = int_to_ptr.hbm [resolvable:$true] %s5140
          %5143 = dma.vmem_to_hbm [thread:$0]  %s5139, 128, %s5141, %s5126
        $region32: #{tpu_custom_call.1} parent=27 // pred_fallthru
          _
      $region28: #{tpu_custom_call.1} parent=5 // pred_fallthru
        _
      %p5144 = scmp.le.s32.totalorder 2, %s11
      // Predicated region
      $region33: #{tpu_custom_call.1} parent=5 // pred_check
        %p5145 = pneg %p5144
      $region34: #{tpu_custom_call.1} parent=5 // pred_check_branch
        %5147 = sbr.rel (%p5145) target = $region36
      $region35: #{tpu_custom_call.1} parent=5 // pred_region
        %s5148 = ssub.s32 %s11, 2
        // Predicated region
        $region37: #{tpu_custom_call.1} parent=35 // pred_check
          %p5149 = pneg %p87
        $region38: #{tpu_custom_call.1} parent=35 // pred_check_branch
          %5151 = sbr.rel (%p5149) target = $region40
        $region39: #{tpu_custom_call.1} parent=35 // pred_region
          %s5152 = sand.u32 %s72, 1
          %s5153 = scalar_lea.sflag [#allocation6], %s5152
          %s5154 = sand.u32 %s72, 1
          %s5155 = smul.addr %s5154, 8
          %s5156 = scalar_lea.vmem [#allocation5], %s5155
          %5158 = dma.done %s5153, 128
        $region40: #{tpu_custom_call.1} parent=35 // pred_fallthru
          _
      $region36: #{tpu_custom_call.1} parent=5 // pred_fallthru
        _
    $region6: #{tpu_custom_call.1} parent=1 // loop_footer
      %s15 = sadd.s32 1, %s11
    $region7: #{tpu_custom_call.1} parent=1 // loop_footer_branch
      %10 = sbr.rel target = $region3
    $region8: #{tpu_custom_call.1} parent=1 // loop_exit
      _
    %5159 = vsyncpa [#allocation6], 1
    %s5160 = scalar_lea.sflag [#allocation6], 1
    %5161 = vsyncpa %s5160, 1

</llo_original>
